<compile_context>
chip_gen: v7x
topology: tpu7x:2x2x1
jax: 0.10.0
libtpu: 0.0.40
codegen_flags: <defaults>
</compile_context>

<pallas_src>
import functools

import jax
import jax.numpy as jnp
from jax.experimental import pallas as pl
from jax.experimental.pallas import tpu as pltpu

# ---------------------------------------------------------------------------
# Model hyper-parameters (match the PyTorch defaults)
# ---------------------------------------------------------------------------
D = 8                       # number of attenuation hidden layers
W = 256                     # hidden width
SKIPS = (4,)                # skip-connection layer indices
MULTIRES = 10               # num freqs for pts / view positional encoding
PTS_DIM = 3 + 3 * 2 * MULTIRES      # 63   (embedded pts)
VIEW_DIM = 3 + 3 * 2 * MULTIRES     # 63   (embedded view)
TX_DIM = 3                          # tx is NOT embedded (is_embeded['tx']=False)
ATTN_OUT = 2
SIG_OUT = 2
OUT_DIM = ATTN_OUT + SIG_OUT        # 4

PACK_W = 256                # packed input width (pts | pad | view | tx | pad)


def _round_up(x, m):
    return ((x + m - 1) // m) * m


# ---------------------------------------------------------------------------
# Positional encoding (JAX glue, elementwise — not the hot path)
# ---------------------------------------------------------------------------
def positional_encoding(x, num_freqs=MULTIRES):
    freqs = 2.0 ** jnp.arange(num_freqs, dtype=jnp.float32)
    parts = [x]
    for f in freqs:
        parts.append(jnp.sin(x * f))
        parts.append(jnp.cos(x * f))
    return jnp.concatenate(parts, axis=-1)


# ---------------------------------------------------------------------------
# Parameter construction (deterministic, PyTorch-Linear-like init)
# ---------------------------------------------------------------------------
def init_linear(key, fan_in, fan_out):
    kw, kb = jax.random.split(key)
    bound = 1.0 / jnp.sqrt(jnp.float32(fan_in))
    w = jax.random.uniform(kw, (fan_in, fan_out), jnp.float32, -bound, bound)
    b = jax.random.uniform(kb, (1, fan_out), jnp.float32, -bound, bound)
    return w, b


def init_params(key):
    """Flat list [w, b, w, b, ...] in PyTorch module order."""
    params = []
    keys = iter(jax.random.split(key, 32))

    in_dims = [PTS_DIM] + [W] * (D - 1)
    in_dims[5] = W + PTS_DIM                       # layer fed by skip concat
    for i in range(D):
        params.extend(init_linear(next(keys), in_dims[i], W))

    params.extend(init_linear(next(keys), W, ATTN_OUT))                 # attn head
    params.extend(init_linear(next(keys), W, W))                        # feature
    params.extend(init_linear(next(keys), W + VIEW_DIM + TX_DIM, W))    # sig 0
    params.extend(init_linear(next(keys), W, W // 2))                   # sig 1
    params.extend(init_linear(next(keys), W // 2, SIG_OUT))             # sig out
    return params


# ---------------------------------------------------------------------------
# Trace-time weight repacking:
#   * splits the concat-consuming weights (skip layer, sig0),
#   * composes the (linear, no-ReLU) feature layer into sig0,
#   * casts matmul weights to bf16 (biases stay f32).
# ---------------------------------------------------------------------------
def pack_params(params):
    (w0, b0, w1, b1, w2, b2, w3, b3, w4, b4, w5, b5, w6, b6, w7, b7,
     wa, ba, wf, bf_, ws0, bs0, ws1, bs1, wso, bso) = params
    bf16 = jnp.bfloat16

    def pad_k(w, k=128):           # zero-pad fan-in to 128
        return jnp.pad(w, ((0, k - w.shape[0]), (0, 0)))

    def pad_b(b, n=W):             # zero-pad bias width to 256
        return jnp.pad(b, ((0, 0), (0, n - b.shape[1])))

    # skip layer (input was cat([pts, x])): rows 0:63 -> pts, 63:319 -> x
    w5_pts, w5_x = w5[:PTS_DIM], w5[PTS_DIM:]
    # signal layer 0 (input was cat([feature, view, tx]))
    ws0_f, ws0_vt = ws0[:W], ws0[W:]          # (256,256), (66,256)=view|tx

    # stacked 128-K weights: [layer0, layer5-pts-part, sig0-view/tx-part]
    w128 = jnp.stack([pad_k(w0), pad_k(w5_pts), pad_k(ws0_vt)]).astype(bf16)
    # stacked 256-K weights: [W1..W4, W5_x, W6, W7]
    w256 = jnp.stack([w1, w2, w3, w4, w5_x, w6, w7]).astype(bf16)

    # compose feature layer into sig0 (product in f32, then one bf16 cast),
    # and fuse the attenuation head: W_big = [wf @ ws0_f | wa]  (256 x 258)
    wf_comp = wf @ ws0_f                                   # f32 (256,256)
    wbig = jnp.concatenate([wf_comp, wa], axis=1).astype(bf16)
    b_sig0 = bs0 + bf_ @ ws0_f                             # f32 (1,256)

    ws1_b = ws1.astype(bf16)                  # (256, 128)
    wso_b = wso.astype(bf16)                  # (128, 2)

    # packed biases, f32 rows: 0..7 trunk, 8 attn, 9 sig0', 10 sig1, 11 sig-out;
    # padded to 16 rows for sublane alignment.
    biases = jnp.concatenate(
        [b0, b1, b2, b3, b4, b5, b6, b7,
         pad_b(ba), b_sig0, pad_b(bs1), pad_b(bso)], axis=0)
    biases = jnp.pad(biases, ((0, 16 - biases.shape[0]), (0, 0)))
    biases = biases.astype(jnp.float32)

    return w256, w128, wbig, ws1_b, wso_b, biases


# ---------------------------------------------------------------------------
# Pallas kernel: full MLP chain for one row tile (no in-kernel feature concats)
# ---------------------------------------------------------------------------
def nerf2_kernel(inp_ref, w256_ref, w128_ref, wbig_ref, ws1_ref, wso_ref,
                 b_ref, out_ref):
    bf16 = jnp.bfloat16

    def dot(a, w):
        return jnp.dot(a, w, preferred_element_type=jnp.float32)

    def relu_bf16(acc, b):
        # fused bias + ReLU + bf16 cast; dots accumulate in f32, activations
        # are carried between layers in bf16.
        return jnp.maximum(acc + b, 0.0).astype(bf16)

    pts = inp_ref[:, 0:128]        # bf16: pts_e (63) | zeros
    vt = inp_ref[:, 128:256]       # bf16: view_e (63) | tx (3) | zeros

    # ---- attenuation trunk -------------------------------------------------
    x = relu_bf16(dot(pts, w128_ref[0]), b_ref[0:1, :])                 # layer 0
    for i in range(1, 5):                                               # layers 1-4
        x = relu_bf16(dot(x, w256_ref[i - 1]), b_ref[i:i + 1, :])
    # layer 5 (skip): relu(cat([pts, x]) @ W5 + b5) == relu(x@W5x + pts@W5p + b5)
    acc = dot(x, w256_ref[4])
    acc += dot(pts, w128_ref[1])
    x = relu_bf16(acc, b_ref[5:6, :])
    x = relu_bf16(dot(x, w256_ref[5]), b_ref[6:7, :])                   # layer 6
    x = relu_bf16(dot(x, w256_ref[6]), b_ref[7:8, :])                   # layer 7

    # ---- fused (feature ∘ sig0) + attenuation head: one (256 x 258) matmul --
    y = dot(x, wbig_ref[...])
    attn = y[:, W:W + ATTN_OUT] + b_ref[8:9, 0:ATTN_OUT]

    # sig0: relu(cat([feature, view, tx]) @ Ws0 + b)
    #     == relu(x7 @ (wf@ws0_f) + [view|tx] @ ws0_vt + (bs0 + bf@ws0_f))
    acc = y[:, 0:W]
    acc += dot(vt, w128_ref[2])
    s = relu_bf16(acc, b_ref[9:10, :])
    s = relu_bf16(dot(s, ws1_ref[...]), b_ref[10:11, 0:W // 2])         # sig1
    signal = dot(s, wso_ref[...]) + b_ref[11:12, 0:SIG_OUT]             # sig out

    out_ref[...] = jnp.concatenate([attn, signal], axis=-1).astype(out_ref.dtype)


# ---------------------------------------------------------------------------
# Wrapper
# ---------------------------------------------------------------------------
@functools.partial(jax.jit, static_argnames=("tile_rows",))
def nerf2_forward(pts, view, tx, params, *, tile_rows=1024):
    """pts/view/tx: [B, n_samples, 3] -> outputs [B, n_samples, 4]."""
    B, S, _ = pts.shape
    N = B * S

    # ---- row tile: multiples of 32 (bf16 (16,128) tiling); big tiles
    # ---- amortize the ~0.35us/step pipeline overhead; keep >= 2 grid steps
    # ---- when possible and prefer an even grid (two v7x TensorCores).
    tile = max(32, _round_up(int(tile_rows), 32))
    if N < 2 * tile:
        tile = max(32, _round_up((N + 1) // 2, 32))
    grid_n = pl.cdiv(N, tile)
    if grid_n > 1 and grid_n % 2 == 1:
        # rebalance (instead of adding a dead tile) so the grid count is even
        tile = max(32, _round_up(pl.cdiv(N, grid_n + 1), 32))
        grid_n = pl.cdiv(N, tile)
    N_pad = grid_n * tile
    grid = (grid_n,)

    # ---- embed + pack inputs into one lane-dense [N_pad, 256] bf16 array
    pts_e = positional_encoding(pts.reshape(N, 3).astype(jnp.float32))
    view_e = positional_encoding(view.reshape(N, 3).astype(jnp.float32))
    tx_f = tx.reshape(N, 3).astype(jnp.float32)
    packed = jnp.concatenate(
        [pts_e,
         jnp.zeros((N, 128 - PTS_DIM), jnp.float32),
         view_e,
         tx_f,
         jnp.zeros((N, 128 - VIEW_DIM - TX_DIM), jnp.float32)],
        axis=-1).astype(jnp.bfloat16)
    if N_pad != N:
        packed = jnp.pad(packed, ((0, N_pad - N), (0, 0)))

    # ---- repack weights (bf16, concat-free layout, composed feature layer)
    w256, w128, wbig, ws1_b, wso_b, biases = pack_params(params)

    # ---- specs
    data_spec = pl.BlockSpec((tile, PACK_W), lambda i: (i, 0))
    out_spec = pl.BlockSpec((tile, OUT_DIM), lambda i: (i, 0))
    w256_spec = pl.BlockSpec(w256.shape, lambda i: (0, 0, 0))
    w128_spec = pl.BlockSpec(w128.shape, lambda i: (0, 0, 0))
    wbig_spec = pl.BlockSpec(wbig.shape, lambda i: (0, 0))
    ws1_spec = pl.BlockSpec(ws1_b.shape, lambda i: (0, 0))
    wso_spec = pl.BlockSpec(wso_b.shape, lambda i: (0, 0))
    b_spec = pl.BlockSpec(biases.shape, lambda i: (0, 0))

    # ---- explicit VMEM budget: double-buffered weights + blocks + live
    # ---- activations headroom, clamped to 48 MiB (headroom on v7x's 64 MiB).
    weight_bytes = 2 * (w256.size + w128.size + wbig.size
                        + ws1_b.size + wso_b.size) + 4 * biases.size
    est = (2 * weight_bytes                     # double-buffered weights
           + 2 * tile * PACK_W * 2              # packed input blocks (bf16)
           + 2 * tile * OUT_DIM * 4             # output blocks
           + 12 * tile * W * 4)                 # live activation headroom
    vmem_limit = int(min(48 * 2**20, max(32 * 2**20, est)))

    out = pl.pallas_call(
        nerf2_kernel,
        out_shape=jax.ShapeDtypeStruct((N_pad, OUT_DIM), jnp.float32),
        grid_spec=pltpu.PrefetchScalarGridSpec(
            num_scalar_prefetch=0,
            grid=grid,
            in_specs=[data_spec, w256_spec, w128_spec, wbig_spec,
                      ws1_spec, wso_spec, b_spec],
            out_specs=out_spec,
        ),
        compiler_params=pltpu.CompilerParams(
            dimension_semantics=("parallel",),
            vmem_limit_bytes=vmem_limit,
        ),
    )(packed, w256, w128, wbig, ws1_b, wso_b, biases)

    return out[:N].reshape(B, S, OUT_DIM)


# ---------------------------------------------------------------------------
# Pure-JAX f32 reference (mirrors the PyTorch forward) for correctness check
# ---------------------------------------------------------------------------
def nerf2_reference(pts, view, tx, params):
    B, S, _ = pts.shape
    N = B * S
    pts_e = positional_encoding(pts.reshape(N, 3))
    view_e = positional_encoding(view.reshape(N, 3))
    tx_f = tx.reshape(N, 3)

    p = params
    idx = 0
    x = pts_e
    for i in range(D):
        w, b = p[idx], p[idx + 1]
        idx += 2
        x = jnp.maximum(x @ w + b, 0.0)
        if i in SKIPS:
            x = jnp.concatenate([pts_e, x], axis=-1)
    attn = x @ p[idx] + p[idx + 1]
    idx += 2
    feature = x @ p[idx] + p[idx + 1]
    idx += 2
    x = jnp.concatenate([feature, view_e, tx_f], axis=-1)
    for _ in range(2):
        w, b = p[idx], p[idx + 1]
        idx += 2
        x = jnp.maximum(x @ w + b, 0.0)
    signal = x @ p[idx] + p[idx + 1]
    out = jnp.concatenate([attn, signal], axis=-1)
    return out.reshape(B, S, OUT_DIM)


# ---------------------------------------------------------------------------
if __name__ == "__main__":
    key = jax.random.PRNGKey(0)
    k_params, k_pts, k_view, k_tx = jax.random.split(key, 4)

    params = init_params(k_params)

    batch, n_samples = 2, 128          # N = 256 rows
    pts = jax.random.uniform(k_pts, (batch, n_samples, 3), jnp.float32, -1.0, 1.0)
    view = jax.random.uniform(k_view, (batch, n_samples, 3), jnp.float32, -1.0, 1.0)
    tx = jax.random.uniform(k_tx, (batch, n_samples, 3), jnp.float32, -1.0, 1.0)

    out = nerf2_forward(pts, view, tx, params)
    out = jax.block_until_ready(out)

    ref = nerf2_reference(pts, view, tx, params)
    assert out.shape == (batch, n_samples, 4)
    # bf16 MXU path (with trace-time f32 weight composition) vs f32 reference.
    max_err = float(jnp.max(jnp.abs(out - ref)))
    assert max_err < 1e-1, f"mismatch vs reference: max abs err {max_err}"

    print("KERNEL_OK")
</pallas_src>

<mosaic_0001>
module attributes {stable_mosaic.version = 11 : i64} {
  func.func @nerf2_kernel(%arg0: i32, %arg1: memref<128x256xbf16, #tpu.memory_space<vmem>>, %arg2: memref<7x256x256xbf16, #tpu.memory_space<vmem>>, %arg3: memref<3x128x256xbf16, #tpu.memory_space<vmem>>, %arg4: memref<256x258xbf16, #tpu.memory_space<vmem>>, %arg5: memref<256x128xbf16, #tpu.memory_space<vmem>>, %arg6: memref<128x2xbf16, #tpu.memory_space<vmem>>, %arg7: memref<16x256xf32, #tpu.memory_space<vmem>>, %arg8: memref<128x4xf32, #tpu.memory_space<vmem>>) attributes {dimension_semantics = [#tpu.dimension_semantics<parallel>], iteration_bounds = array<i64: 2>, scalar_prefetch = 0 : i64, scratch_operands = 0 : i64, tpu.core_type = #tpu.core_type<tc>, window_params = [{transform_indices = @transform_0, window_bounds = array<i64: 128, 256>}, {pipeline_mode = #tpu.pipeline_mode<synchronous>, transform_indices = @transform_1, window_bounds = array<i64: 7, 256, 256>}, {pipeline_mode = #tpu.pipeline_mode<synchronous>, transform_indices = @transform_2, window_bounds = array<i64: 3, 128, 256>}, {pipeline_mode = #tpu.pipeline_mode<synchronous>, transform_indices = @transform_3, window_bounds = array<i64: 256, 258>}, {pipeline_mode = #tpu.pipeline_mode<synchronous>, transform_indices = @transform_4, window_bounds = array<i64: 256, 128>}, {pipeline_mode = #tpu.pipeline_mode<synchronous>, transform_indices = @transform_5, window_bounds = array<i64: 128, 2>}, {pipeline_mode = #tpu.pipeline_mode<synchronous>, transform_indices = @transform_6, window_bounds = array<i64: 16, 256>}, {transform_indices = @transform_7, window_bounds = array<i64: 128, 4>}]} {
    %c0 = arith.constant 0 : index
    %c0_0 = arith.constant 0 : index
    %0 = vector.load %arg1[%c0, %c0_0] : memref<128x256xbf16, #tpu.memory_space<vmem>>, vector<128x128xbf16>
    %c0_1 = arith.constant 0 : index
    %c128 = arith.constant 128 : index
    %1 = vector.load %arg1[%c0_1, %c128] : memref<128x256xbf16, #tpu.memory_space<vmem>>, vector<128x128xbf16>
    %c0_2 = arith.constant 0 : index
    %c0_3 = arith.constant 0 : index
    %c0_4 = arith.constant 0 : index
    %2 = vector.load %arg3[%c0_2, %c0_3, %c0_4] : memref<3x128x256xbf16, #tpu.memory_space<vmem>>, vector<1x128x256xbf16>
    %3 = vector.shape_cast %2 : vector<1x128x256xbf16> to vector<128x256xbf16>
    %cst = arith.constant dense<0.000000e+00> : vector<128x256xf32>
    %4 = tpu.matmul %0, %3, %cst {dimension_numbers = #tpu.dot_dimension_numbers<[1], [0], [0], [1], [0, 0, 1, 1], [], []>} : vector<128x128xbf16>, vector<128x256xbf16>, vector<128x256xf32> -> vector<128x256xf32>
    %c0_5 = arith.constant 0 : index
    %c0_6 = arith.constant 0 : index
    %5 = vector.load %arg7[%c0_5, %c0_6] : memref<16x256xf32, #tpu.memory_space<vmem>>, vector<1x256xf32>
    %6 = vector.broadcast %5 : vector<1x256xf32> to vector<128x256xf32>
    %7 = arith.addf %4, %6 : vector<128x256xf32>
    %cst_7 = arith.constant 0.000000e+00 : f32
    %8 = vector.broadcast %cst_7 : f32 to vector<128x256xf32>
    %9 = arith.maximumf %7, %8 : vector<128x256xf32>
    %10 = arith.truncf %9 : vector<128x256xf32> to vector<128x256xbf16>
    %c0_8 = arith.constant 0 : index
    %c0_9 = arith.constant 0 : index
    %c0_10 = arith.constant 0 : index
    %11 = vector.load %arg2[%c0_8, %c0_9, %c0_10] : memref<7x256x256xbf16, #tpu.memory_space<vmem>>, vector<1x256x256xbf16>
    %12 = vector.shape_cast %11 : vector<1x256x256xbf16> to vector<256x256xbf16>
    %cst_11 = arith.constant dense<0.000000e+00> : vector<128x256xf32>
    %13 = tpu.matmul %10, %12, %cst_11 {dimension_numbers = #tpu.dot_dimension_numbers<[1], [0], [0], [1], [0, 0, 1, 1], [], []>} : vector<128x256xbf16>, vector<256x256xbf16>, vector<128x256xf32> -> vector<128x256xf32>
    %c1 = arith.constant 1 : index
    %c0_12 = arith.constant 0 : index
    %14 = vector.load %arg7[%c1, %c0_12] : memref<16x256xf32, #tpu.memory_space<vmem>>, vector<1x256xf32>
    %15 = vector.broadcast %14 : vector<1x256xf32> to vector<128x256xf32>
    %16 = arith.addf %13, %15 : vector<128x256xf32>
    %cst_13 = arith.constant 0.000000e+00 : f32
    %17 = vector.broadcast %cst_13 : f32 to vector<128x256xf32>
    %18 = arith.maximumf %16, %17 : vector<128x256xf32>
    %19 = arith.truncf %18 : vector<128x256xf32> to vector<128x256xbf16>
    %c1_14 = arith.constant 1 : index
    %c0_15 = arith.constant 0 : index
    %c0_16 = arith.constant 0 : index
    %20 = vector.load %arg2[%c1_14, %c0_15, %c0_16] : memref<7x256x256xbf16, #tpu.memory_space<vmem>>, vector<1x256x256xbf16>
    %21 = vector.shape_cast %20 : vector<1x256x256xbf16> to vector<256x256xbf16>
    %cst_17 = arith.constant dense<0.000000e+00> : vector<128x256xf32>
    %22 = tpu.matmul %19, %21, %cst_17 {dimension_numbers = #tpu.dot_dimension_numbers<[1], [0], [0], [1], [0, 0, 1, 1], [], []>} : vector<128x256xbf16>, vector<256x256xbf16>, vector<128x256xf32> -> vector<128x256xf32>
    %c2 = arith.constant 2 : index
    %c0_18 = arith.constant 0 : index
    %23 = vector.load %arg7[%c2, %c0_18] : memref<16x256xf32, #tpu.memory_space<vmem>>, vector<1x256xf32>
    %24 = vector.broadcast %23 : vector<1x256xf32> to vector<128x256xf32>
    %25 = arith.addf %22, %24 : vector<128x256xf32>
    %cst_19 = arith.constant 0.000000e+00 : f32
    %26 = vector.broadcast %cst_19 : f32 to vector<128x256xf32>
    %27 = arith.maximumf %25, %26 : vector<128x256xf32>
    %28 = arith.truncf %27 : vector<128x256xf32> to vector<128x256xbf16>
    %c2_20 = arith.constant 2 : index
    %c0_21 = arith.constant 0 : index
    %c0_22 = arith.constant 0 : index
    %29 = vector.load %arg2[%c2_20, %c0_21, %c0_22] : memref<7x256x256xbf16, #tpu.memory_space<vmem>>, vector<1x256x256xbf16>
    %30 = vector.shape_cast %29 : vector<1x256x256xbf16> to vector<256x256xbf16>
    %cst_23 = arith.constant dense<0.000000e+00> : vector<128x256xf32>
    %31 = tpu.matmul %28, %30, %cst_23 {dimension_numbers = #tpu.dot_dimension_numbers<[1], [0], [0], [1], [0, 0, 1, 1], [], []>} : vector<128x256xbf16>, vector<256x256xbf16>, vector<128x256xf32> -> vector<128x256xf32>
    %c3 = arith.constant 3 : index
    %c0_24 = arith.constant 0 : index
    %32 = vector.load %arg7[%c3, %c0_24] : memref<16x256xf32, #tpu.memory_space<vmem>>, vector<1x256xf32>
    %33 = vector.broadcast %32 : vector<1x256xf32> to vector<128x256xf32>
    %34 = arith.addf %31, %33 : vector<128x256xf32>
    %cst_25 = arith.constant 0.000000e+00 : f32
    %35 = vector.broadcast %cst_25 : f32 to vector<128x256xf32>
    %36 = arith.maximumf %34, %35 : vector<128x256xf32>
    %37 = arith.truncf %36 : vector<128x256xf32> to vector<128x256xbf16>
    %c3_26 = arith.constant 3 : index
    %c0_27 = arith.constant 0 : index
    %c0_28 = arith.constant 0 : index
    %38 = vector.load %arg2[%c3_26, %c0_27, %c0_28] : memref<7x256x256xbf16, #tpu.memory_space<vmem>>, vector<1x256x256xbf16>
    %39 = vector.shape_cast %38 : vector<1x256x256xbf16> to vector<256x256xbf16>
    %cst_29 = arith.constant dense<0.000000e+00> : vector<128x256xf32>
    %40 = tpu.matmul %37, %39, %cst_29 {dimension_numbers = #tpu.dot_dimension_numbers<[1], [0], [0], [1], [0, 0, 1, 1], [], []>} : vector<128x256xbf16>, vector<256x256xbf16>, vector<128x256xf32> -> vector<128x256xf32>
    %c4 = arith.constant 4 : index
    %c0_30 = arith.constant 0 : index
    %41 = vector.load %arg7[%c4, %c0_30] : memref<16x256xf32, #tpu.memory_space<vmem>>, vector<1x256xf32>
    %42 = vector.broadcast %41 : vector<1x256xf32> to vector<128x256xf32>
    %43 = arith.addf %40, %42 : vector<128x256xf32>
    %cst_31 = arith.constant 0.000000e+00 : f32
    %44 = vector.broadcast %cst_31 : f32 to vector<128x256xf32>
    %45 = arith.maximumf %43, %44 : vector<128x256xf32>
    %46 = arith.truncf %45 : vector<128x256xf32> to vector<128x256xbf16>
    %c4_32 = arith.constant 4 : index
    %c0_33 = arith.constant 0 : index
    %c0_34 = arith.constant 0 : index
    %47 = vector.load %arg2[%c4_32, %c0_33, %c0_34] : memref<7x256x256xbf16, #tpu.memory_space<vmem>>, vector<1x256x256xbf16>
    %48 = vector.shape_cast %47 : vector<1x256x256xbf16> to vector<256x256xbf16>
    %cst_35 = arith.constant dense<0.000000e+00> : vector<128x256xf32>
    %49 = tpu.matmul %46, %48, %cst_35 {dimension_numbers = #tpu.dot_dimension_numbers<[1], [0], [0], [1], [0, 0, 1, 1], [], []>} : vector<128x256xbf16>, vector<256x256xbf16>, vector<128x256xf32> -> vector<128x256xf32>
    %c1_36 = arith.constant 1 : index
    %c0_37 = arith.constant 0 : index
    %c0_38 = arith.constant 0 : index
    %50 = vector.load %arg3[%c1_36, %c0_37, %c0_38] : memref<3x128x256xbf16, #tpu.memory_space<vmem>>, vector<1x128x256xbf16>
    %51 = vector.shape_cast %50 : vector<1x128x256xbf16> to vector<128x256xbf16>
    %cst_39 = arith.constant dense<0.000000e+00> : vector<128x256xf32>
    %52 = tpu.matmul %0, %51, %cst_39 {dimension_numbers = #tpu.dot_dimension_numbers<[1], [0], [0], [1], [0, 0, 1, 1], [], []>} : vector<128x128xbf16>, vector<128x256xbf16>, vector<128x256xf32> -> vector<128x256xf32>
    %53 = arith.addf %49, %52 : vector<128x256xf32>
    %c5 = arith.constant 5 : index
    %c0_40 = arith.constant 0 : index
    %54 = vector.load %arg7[%c5, %c0_40] : memref<16x256xf32, #tpu.memory_space<vmem>>, vector<1x256xf32>
    %55 = vector.broadcast %54 : vector<1x256xf32> to vector<128x256xf32>
    %56 = arith.addf %53, %55 : vector<128x256xf32>
    %cst_41 = arith.constant 0.000000e+00 : f32
    %57 = vector.broadcast %cst_41 : f32 to vector<128x256xf32>
    %58 = arith.maximumf %56, %57 : vector<128x256xf32>
    %59 = arith.truncf %58 : vector<128x256xf32> to vector<128x256xbf16>
    %c5_42 = arith.constant 5 : index
    %c0_43 = arith.constant 0 : index
    %c0_44 = arith.constant 0 : index
    %60 = vector.load %arg2[%c5_42, %c0_43, %c0_44] : memref<7x256x256xbf16, #tpu.memory_space<vmem>>, vector<1x256x256xbf16>
    %61 = vector.shape_cast %60 : vector<1x256x256xbf16> to vector<256x256xbf16>
    %cst_45 = arith.constant dense<0.000000e+00> : vector<128x256xf32>
    %62 = tpu.matmul %59, %61, %cst_45 {dimension_numbers = #tpu.dot_dimension_numbers<[1], [0], [0], [1], [0, 0, 1, 1], [], []>} : vector<128x256xbf16>, vector<256x256xbf16>, vector<128x256xf32> -> vector<128x256xf32>
    %c6 = arith.constant 6 : index
    %c0_46 = arith.constant 0 : index
    %63 = vector.load %arg7[%c6, %c0_46] : memref<16x256xf32, #tpu.memory_space<vmem>>, vector<1x256xf32>
    %64 = vector.broadcast %63 : vector<1x256xf32> to vector<128x256xf32>
    %65 = arith.addf %62, %64 : vector<128x256xf32>
    %cst_47 = arith.constant 0.000000e+00 : f32
    %66 = vector.broadcast %cst_47 : f32 to vector<128x256xf32>
    %67 = arith.maximumf %65, %66 : vector<128x256xf32>
    %68 = arith.truncf %67 : vector<128x256xf32> to vector<128x256xbf16>
    %c6_48 = arith.constant 6 : index
    %c0_49 = arith.constant 0 : index
    %c0_50 = arith.constant 0 : index
    %69 = vector.load %arg2[%c6_48, %c0_49, %c0_50] : memref<7x256x256xbf16, #tpu.memory_space<vmem>>, vector<1x256x256xbf16>
    %70 = vector.shape_cast %69 : vector<1x256x256xbf16> to vector<256x256xbf16>
    %cst_51 = arith.constant dense<0.000000e+00> : vector<128x256xf32>
    %71 = tpu.matmul %68, %70, %cst_51 {dimension_numbers = #tpu.dot_dimension_numbers<[1], [0], [0], [1], [0, 0, 1, 1], [], []>} : vector<128x256xbf16>, vector<256x256xbf16>, vector<128x256xf32> -> vector<128x256xf32>
    %c7 = arith.constant 7 : index
    %c0_52 = arith.constant 0 : index
    %72 = vector.load %arg7[%c7, %c0_52] : memref<16x256xf32, #tpu.memory_space<vmem>>, vector<1x256xf32>
    %73 = vector.broadcast %72 : vector<1x256xf32> to vector<128x256xf32>
    %74 = arith.addf %71, %73 : vector<128x256xf32>
    %cst_53 = arith.constant 0.000000e+00 : f32
    %75 = vector.broadcast %cst_53 : f32 to vector<128x256xf32>
    %76 = arith.maximumf %74, %75 : vector<128x256xf32>
    %77 = arith.truncf %76 : vector<128x256xf32> to vector<128x256xbf16>
    %c0_54 = arith.constant 0 : index
    %c0_55 = arith.constant 0 : index
    %78 = vector.load %arg4[%c0_54, %c0_55] : memref<256x258xbf16, #tpu.memory_space<vmem>>, vector<256x258xbf16>
    %cst_56 = arith.constant dense<0.000000e+00> : vector<128x258xf32>
    %79 = tpu.matmul %77, %78, %cst_56 {dimension_numbers = #tpu.dot_dimension_numbers<[1], [0], [0], [1], [0, 0, 1, 1], [], []>} : vector<128x256xbf16>, vector<256x258xbf16>, vector<128x258xf32> -> vector<128x258xf32>
    %80 = vector.extract_strided_slice %79 {offsets = [0, 256], sizes = [128, 2], strides = [1, 1]} : vector<128x258xf32> to vector<128x2xf32>
    %c8 = arith.constant 8 : index
    %c0_57 = arith.constant 0 : index
    %81 = vector.load %arg7[%c8, %c0_57] : memref<16x256xf32, #tpu.memory_space<vmem>>, vector<1x2xf32>
    %82 = vector.broadcast %81 : vector<1x2xf32> to vector<128x2xf32>
    %83 = arith.addf %80, %82 : vector<128x2xf32>
    %84 = vector.extract_strided_slice %79 {offsets = [0, 0], sizes = [128, 256], strides = [1, 1]} : vector<128x258xf32> to vector<128x256xf32>
    %c2_58 = arith.constant 2 : index
    %c0_59 = arith.constant 0 : index
    %c0_60 = arith.constant 0 : index
    %85 = vector.load %arg3[%c2_58, %c0_59, %c0_60] : memref<3x128x256xbf16, #tpu.memory_space<vmem>>, vector<1x128x256xbf16>
    %86 = vector.shape_cast %85 : vector<1x128x256xbf16> to vector<128x256xbf16>
    %cst_61 = arith.constant dense<0.000000e+00> : vector<128x256xf32>
    %87 = tpu.matmul %1, %86, %cst_61 {dimension_numbers = #tpu.dot_dimension_numbers<[1], [0], [0], [1], [0, 0, 1, 1], [], []>} : vector<128x128xbf16>, vector<128x256xbf16>, vector<128x256xf32> -> vector<128x256xf32>
    %88 = arith.addf %84, %87 : vector<128x256xf32>
    %c9 = arith.constant 9 : index
    %c0_62 = arith.constant 0 : index
    %89 = vector.load %arg7[%c9, %c0_62] : memref<16x256xf32, #tpu.memory_space<vmem>>, vector<1x256xf32>
    %90 = vector.broadcast %89 : vector<1x256xf32> to vector<128x256xf32>
    %91 = arith.addf %88, %90 : vector<128x256xf32>
    %cst_63 = arith.constant 0.000000e+00 : f32
    %92 = vector.broadcast %cst_63 : f32 to vector<128x256xf32>
    %93 = arith.maximumf %91, %92 : vector<128x256xf32>
    %94 = arith.truncf %93 : vector<128x256xf32> to vector<128x256xbf16>
    %c0_64 = arith.constant 0 : index
    %c0_65 = arith.constant 0 : index
    %95 = vector.load %arg5[%c0_64, %c0_65] : memref<256x128xbf16, #tpu.memory_space<vmem>>, vector<256x128xbf16>
    %cst_66 = arith.constant dense<0.000000e+00> : vector<128x128xf32>
    %96 = tpu.matmul %94, %95, %cst_66 {dimension_numbers = #tpu.dot_dimension_numbers<[1], [0], [0], [1], [0, 0, 1, 1], [], []>} : vector<128x256xbf16>, vector<256x128xbf16>, vector<128x128xf32> -> vector<128x128xf32>
    %c10 = arith.constant 10 : index
    %c0_67 = arith.constant 0 : index
    %97 = vector.load %arg7[%c10, %c0_67] : memref<16x256xf32, #tpu.memory_space<vmem>>, vector<1x128xf32>
    %98 = vector.broadcast %97 : vector<1x128xf32> to vector<128x128xf32>
    %99 = arith.addf %96, %98 : vector<128x128xf32>
    %cst_68 = arith.constant 0.000000e+00 : f32
    %100 = vector.broadcast %cst_68 : f32 to vector<128x128xf32>
    %101 = arith.maximumf %99, %100 : vector<128x128xf32>
    %102 = arith.truncf %101 : vector<128x128xf32> to vector<128x128xbf16>
    %c0_69 = arith.constant 0 : index
    %c0_70 = arith.constant 0 : index
    %103 = vector.load %arg6[%c0_69, %c0_70] : memref<128x2xbf16, #tpu.memory_space<vmem>>, vector<128x2xbf16>
    %cst_71 = arith.constant dense<0.000000e+00> : vector<128x2xf32>
    %104 = tpu.matmul %102, %103, %cst_71 {dimension_numbers = #tpu.dot_dimension_numbers<[1], [0], [0], [1], [0, 0, 1, 1], [], []>} : vector<128x128xbf16>, vector<128x2xbf16>, vector<128x2xf32> -> vector<128x2xf32>
    %c11 = arith.constant 11 : index
    %c0_72 = arith.constant 0 : index
    %105 = vector.load %arg7[%c11, %c0_72] : memref<16x256xf32, #tpu.memory_space<vmem>>, vector<1x2xf32>
    %106 = vector.broadcast %105 : vector<1x2xf32> to vector<128x2xf32>
    %107 = arith.addf %104, %106 : vector<128x2xf32>
    %108 = tpu.concatenate %83, %107 in 1 : vector<128x2xf32>, vector<128x2xf32> -> vector<128x4xf32>
    %c0_73 = arith.constant 0 : index
    %c0_74 = arith.constant 0 : index
    %109 = vector.load %arg8[%c0_73, %c0_74] : memref<128x4xf32, #tpu.memory_space<vmem>>, vector<128x4xf32>
    tpu.vector_store %arg8[%c0_73, %c0_74], %108 {strides = array<i32>} : memref<128x4xf32, #tpu.memory_space<vmem>>, vector<128x4xf32>,
    return
  }
  func.func @transform_0(%arg0: i32) -> (i32, i32) {
    %c0_i32 = arith.constant 0 : i32
    %c0_i32_0 = arith.constant 0 : i32
    return %arg0, %c0_i32 : i32, i32
  }
  func.func @transform_1(%arg0: i32) -> (i32, i32, i32) {
    %c0_i32 = arith.constant 0 : i32
    %c0_i32_0 = arith.constant 0 : i32
    %c0_i32_1 = arith.constant 0 : i32
    %c0_i32_2 = arith.constant 0 : i32
    return %c0_i32, %c0_i32_0, %c0_i32_1 : i32, i32, i32
  }
  func.func @transform_2(%arg0: i32) -> (i32, i32, i32) {
    %c0_i32 = arith.constant 0 : i32
    %c0_i32_0 = arith.constant 0 : i32
    %c0_i32_1 = arith.constant 0 : i32
    %c0_i32_2 = arith.constant 0 : i32
    return %c0_i32, %c0_i32_0, %c0_i32_1 : i32, i32, i32
  }
  func.func @transform_3(%arg0: i32) -> (i32, i32) {
    %c0_i32 = arith.constant 0 : i32
    %c0_i32_0 = arith.constant 0 : i32
    %c0_i32_1 = arith.constant 0 : i32
    return %c0_i32, %c0_i32_0 : i32, i32
  }
  func.func @transform_4(%arg0: i32) -> (i32, i32) {
    %c0_i32 = arith.constant 0 : i32
    %c0_i32_0 = arith.constant 0 : i32
    %c0_i32_1 = arith.constant 0 : i32
    return %c0_i32, %c0_i32_0 : i32, i32
  }
  func.func @transform_5(%arg0: i32) -> (i32, i32) {
    %c0_i32 = arith.constant 0 : i32
    %c0_i32_0 = arith.constant 0 : i32
    %c0_i32_1 = arith.constant 0 : i32
    return %c0_i32, %c0_i32_0 : i32, i32
  }
  func.func @transform_6(%arg0: i32) -> (i32, i32) {
    %c0_i32 = arith.constant 0 : i32
    %c0_i32_0 = arith.constant 0 : i32
    %c0_i32_1 = arith.constant 0 : i32
    return %c0_i32, %c0_i32_0 : i32, i32
  }
  func.func @transform_7(%arg0: i32) -> (i32, i32) {
    %c0_i32 = arith.constant 0 : i32
    %c0_i32_0 = arith.constant 0 : i32
    return %arg0, %c0_i32 : i32, i32
  }
}

</mosaic_0001>

<llo_original>
// kernel: nerf2_forward.1
$region0: #{nerf2_forward.1}
  #allocation0 [shape = 'u32[]', space=smem, size = 0x4, offset = 0x4, fixed_abs, tag = 'smem constant byte address 0x4 - core index']
  #allocation1 [shape = 'u32[144,128]{1,0:T(1,128)}', space=vmem, size = 0x12000, scoped, tag = 'internal scratch']
  %s0 = inlined_call_operand.vmem [shape: bf16[256,256], index: 0, kind: input, shape index: {}]
  %s1 = inlined_call_operand.vmem [shape: bf16[7,256,256], index: 1, kind: input, shape index: {}]
  %s2 = inlined_call_operand.vmem [shape: bf16[3,128,256], index: 2, kind: input, shape index: {}]
  %s3 = inlined_call_operand.vmem [shape: bf16[256,258], index: 3, kind: input, shape index: {}]
  %s4 = inlined_call_operand.vmem [shape: bf16[256,128], index: 4, kind: input, shape index: {}]
  %s5 = inlined_call_operand.vmem [shape: bf16[128,2], index: 5, kind: input, shape index: {}]
  %s6 = inlined_call_operand.vmem [shape: f32[16,256], index: 6, kind: input, shape index: {}]
  %s7 = inlined_call_operand.vmem [shape: f32[256,4], index: 7, kind: output, shape index: {}]
  %s8 = sld [smem:[#allocation0]]
  $region61: #{nerf2_forward.1} parent=0
    _
  %s10 = ssub.s32 1, %s8
  %s11 = scalar_select 0, %s10, %s8
  loop: start=0, step=1, limit=4
  $region2: #{nerf2_forward.1} parent=0 // loop_pre_header
    _
  $region3: #{nerf2_forward.1} parent=0 // loop_header
    %s13 = sphi 0, %s17
    %p14 = scmp.ge.s32.totalorder %s13, 4
    %s23 = sphi 0, %s25
    %s26 = sphi 0, %s23
    %s27 = sphi 0, %s26
    %s43 = sphi 0, %s27
    %s47 = sphi 0, %s47
    %s49 = sphi 0, %s47
    %s50 = sphi 0, %s49
    %s64 = sphi 0, %s50
    %s68 = sphi 0, %s68
    %s70 = sphi 0, %s68
    %s71 = sphi 0, %s70
    %s85 = sphi 0, %s71
    %s89 = sphi 0, %s89
    %s91 = sphi 0, %s89
    %s92 = sphi 0, %s91
    %s106 = sphi 0, %s92
    %s110 = sphi 0, %s110
    %s112 = sphi 0, %s110
    %s113 = sphi 0, %s112
    %s127 = sphi 0, %s113
    %s131 = sphi 0, %s131
    %s133 = sphi 0, %s131
    %s134 = sphi 0, %s133
    %s148 = sphi 0, %s134
    %s152 = sphi 0, %s152
    %s154 = sphi 0, %s152
    %s155 = sphi 0, %s154
    %s169 = sphi 0, %s155
    %s175 = sphi 0, %s177
    %s178 = sphi 0, %s175
    %s179 = sphi 0, %s178
    %s195 = sphi 0, %s179
  $region4: #{nerf2_forward.1} parent=0 // loop_header_branch
    %16 = sbr.rel (%p14) target = $region8
  $region5: #{nerf2_forward.1} parent=0 // loop_body
    %s18 = ssub.s32 %s13, 1
    %s19 = ssub.s32 %s13, 2
    %s20 = sadd.s32 %s13, 1
    %s21 = ssub.s32 %s13, %s20
    %p22 = scmp.eq.s32.totalorder %s21, 0
    %s24 = sadd.s32 %s23, 1
    %s25 = scalar_select %p22, %s23, %s24
    %p28 = pneg %p22
    %p29 = scmp.eq.s32.totalorder %s13, 1
    %p30 = por %p28, %p29
    %p31 = scmp.ne.s32.totalorder %s23, %s26
    %p32 = scmp.eq.s32.totalorder %s13, 0
    %p33 = por %p31, %p32
    %p34 = scmp.ne.s32.totalorder %s23, %s26
    %p35 = scmp.eq.s32.totalorder %s18, 1
    %p36 = por %p34, %p35
    %p37 = scmp.ne.s32.totalorder %s26, %s27
    %p38 = scmp.eq.s32.totalorder %s18, 0
    %p39 = por %p37, %p38
    %p40 = scmp.ne.s32.totalorder %s26, %s27
    %p41 = scmp.eq.s32.totalorder %s19, 1
    %p42 = por %p40, %p41
    %p44 = scmp.ne.s32.totalorder %s27, %s43
    %p45 = scmp.eq.s32.totalorder %s19, 0
    %p46 = por %p44, %p45
    %s48 = sadd.s32 %s47, 1
    %p51 = scmp.eq.s32.totalorder %s13, 1
    %p52 = scmp.ne.s32.totalorder %s47, %s49
    %p53 = scmp.eq.s32.totalorder %s13, 0
    %p54 = por %p52, %p53
    %p55 = scmp.ne.s32.totalorder %s47, %s49
    %p56 = scmp.eq.s32.totalorder %s18, 1
    %p57 = por %p55, %p56
    %p58 = scmp.ne.s32.totalorder %s49, %s50
    %p59 = scmp.eq.s32.totalorder %s18, 0
    %p60 = por %p58, %p59
    %p61 = scmp.ne.s32.totalorder %s49, %s50
    %p62 = scmp.eq.s32.totalorder %s19, 1
    %p63 = por %p61, %p62
    %p65 = scmp.ne.s32.totalorder %s50, %s64
    %p66 = scmp.eq.s32.totalorder %s19, 0
    %p67 = por %p65, %p66
    %s69 = sadd.s32 %s68, 1
    %p72 = scmp.eq.s32.totalorder %s13, 1
    %p73 = scmp.ne.s32.totalorder %s68, %s70
    %p74 = scmp.eq.s32.totalorder %s13, 0
    %p75 = por %p73, %p74
    %p76 = scmp.ne.s32.totalorder %s68, %s70
    %p77 = scmp.eq.s32.totalorder %s18, 1
    %p78 = por %p76, %p77
    %p79 = scmp.ne.s32.totalorder %s70, %s71
    %p80 = scmp.eq.s32.totalorder %s18, 0
    %p81 = por %p79, %p80
    %p82 = scmp.ne.s32.totalorder %s70, %s71
    %p83 = scmp.eq.s32.totalorder %s19, 1
    %p84 = por %p82, %p83
    %p86 = scmp.ne.s32.totalorder %s71, %s85
    %p87 = scmp.eq.s32.totalorder %s19, 0
    %p88 = por %p86, %p87
    %s90 = sadd.s32 %s89, 1
    %p93 = scmp.eq.s32.totalorder %s13, 1
    %p94 = scmp.ne.s32.totalorder %s89, %s91
    %p95 = scmp.eq.s32.totalorder %s13, 0
    %p96 = por %p94, %p95
    %p97 = scmp.ne.s32.totalorder %s89, %s91
    %p98 = scmp.eq.s32.totalorder %s18, 1
    %p99 = por %p97, %p98
    %p100 = scmp.ne.s32.totalorder %s91, %s92
    %p101 = scmp.eq.s32.totalorder %s18, 0
    %p102 = por %p100, %p101
    %p103 = scmp.ne.s32.totalorder %s91, %s92
    %p104 = scmp.eq.s32.totalorder %s19, 1
    %p105 = por %p103, %p104
    %p107 = scmp.ne.s32.totalorder %s92, %s106
    %p108 = scmp.eq.s32.totalorder %s19, 0
    %p109 = por %p107, %p108
    %s111 = sadd.s32 %s110, 1
    %p114 = scmp.eq.s32.totalorder %s13, 1
    %p115 = scmp.ne.s32.totalorder %s110, %s112
    %p116 = scmp.eq.s32.totalorder %s13, 0
    %p117 = por %p115, %p116
    %p118 = scmp.ne.s32.totalorder %s110, %s112
    %p119 = scmp.eq.s32.totalorder %s18, 1
    %p120 = por %p118, %p119
    %p121 = scmp.ne.s32.totalorder %s112, %s113
    %p122 = scmp.eq.s32.totalorder %s18, 0
    %p123 = por %p121, %p122
    %p124 = scmp.ne.s32.totalorder %s112, %s113
    %p125 = scmp.eq.s32.totalorder %s19, 1
    %p126 = por %p124, %p125
    %p128 = scmp.ne.s32.totalorder %s113, %s127
    %p129 = scmp.eq.s32.totalorder %s19, 0
    %p130 = por %p128, %p129
    %s132 = sadd.s32 %s131, 1
    %p135 = scmp.eq.s32.totalorder %s13, 1
    %p136 = scmp.ne.s32.totalorder %s131, %s133
    %p137 = scmp.eq.s32.totalorder %s13, 0
    %p138 = por %p136, %p137
    %p139 = scmp.ne.s32.totalorder %s131, %s133
    %p140 = scmp.eq.s32.totalorder %s18, 1
    %p141 = por %p139, %p140
    %p142 = scmp.ne.s32.totalorder %s133, %s134
    %p143 = scmp.eq.s32.totalorder %s18, 0
    %p144 = por %p142, %p143
    %p145 = scmp.ne.s32.totalorder %s133, %s134
    %p146 = scmp.eq.s32.totalorder %s19, 1
    %p147 = por %p145, %p146
    %p149 = scmp.ne.s32.totalorder %s134, %s148
    %p150 = scmp.eq.s32.totalorder %s19, 0
    %p151 = por %p149, %p150
    %s153 = sadd.s32 %s152, 1
    %p156 = scmp.eq.s32.totalorder %s13, 1
    %p157 = scmp.ne.s32.totalorder %s152, %s154
    %p158 = scmp.eq.s32.totalorder %s13, 0
    %p159 = por %p157, %p158
    %p160 = scmp.ne.s32.totalorder %s152, %s154
    %p161 = scmp.eq.s32.totalorder %s18, 1
    %p162 = por %p160, %p161
    %p163 = scmp.ne.s32.totalorder %s154, %s155
    %p164 = scmp.eq.s32.totalorder %s18, 0
    %p165 = por %p163, %p164
    %p166 = scmp.ne.s32.totalorder %s154, %s155
    %p167 = scmp.eq.s32.totalorder %s19, 1
    %p168 = por %p166, %p167
    %p170 = scmp.ne.s32.totalorder %s155, %s169
    %p171 = scmp.eq.s32.totalorder %s19, 0
    %p172 = por %p170, %p171
    %s173 = ssub.s32 %s13, %s20
    %p174 = scmp.eq.s32.totalorder %s173, 0
    %s176 = sadd.s32 %s175, 1
    %s177 = scalar_select %p174, %s175, %s176
    %p180 = pneg %p174
    %p181 = scmp.eq.s32.totalorder %s13, 1
    %p182 = por %p180, %p181
    %p183 = scmp.ne.s32.totalorder %s175, %s178
    %p184 = scmp.eq.s32.totalorder %s13, 0
    %p185 = por %p183, %p184
    %p186 = scmp.ne.s32.totalorder %s175, %s178
    %p187 = scmp.eq.s32.totalorder %s18, 1
    %p188 = por %p186, %p187
    %p189 = scmp.ne.s32.totalorder %s178, %s179
    %p190 = scmp.eq.s32.totalorder %s18, 0
    %p191 = por %p189, %p190
    %p192 = scmp.ne.s32.totalorder %s178, %s179
    %p193 = scmp.eq.s32.totalorder %s19, 1
    %p194 = por %p192, %p193
    %p196 = scmp.ne.s32.totalorder %s179, %s195
    %p197 = scmp.eq.s32.totalorder %s19, 0
    %p198 = por %p196, %p197
    %p199 = scmp.le.s32.totalorder 1, %s13
    %p200 = scmp.lt.s32.totalorder %s13, 3
    %p201 = pnand %p199, %p200
    %p202 = pneg %p201
    // Predicated region
    $region9: #{nerf2_forward.1} parent=5 // pred_check
      _
    $region10: #{nerf2_forward.1} parent=5 // pred_check_branch
      %204 = sbr.rel (%p201) target = $region12
    $region11: #{nerf2_forward.1} parent=5 // pred_region
      %s205 = ssub.s32 %s13, 1
      // Predicated region
      $region13: #{nerf2_forward.1} parent=11 // pred_check
        %p206 = pneg %p60
      $region14: #{nerf2_forward.1} parent=11 // pred_check_branch
        %208 = sbr.rel (%p206) target = $region16
      $region15: #{nerf2_forward.1} parent=11 // pred_region
        _
      $region16: #{nerf2_forward.1} parent=11 // pred_fallthru
        _
      // Predicated region
      $region17: #{nerf2_forward.1} parent=11 // pred_check
        %p209 = pneg %p81
      $region18: #{nerf2_forward.1} parent=11 // pred_check_branch
        %211 = sbr.rel (%p209) target = $region20
      $region19: #{nerf2_forward.1} parent=11 // pred_region
        _
      $region20: #{nerf2_forward.1} parent=11 // pred_fallthru
        _
      // Predicated region
      $region21: #{nerf2_forward.1} parent=11 // pred_check
        %p212 = pneg %p102
      $region22: #{nerf2_forward.1} parent=11 // pred_check_branch
        %214 = sbr.rel (%p212) target = $region24
      $region23: #{nerf2_forward.1} parent=11 // pred_region
        _
      $region24: #{nerf2_forward.1} parent=11 // pred_fallthru
        _
      // Predicated region
      $region25: #{nerf2_forward.1} parent=11 // pred_check
        %p215 = pneg %p123
      $region26: #{nerf2_forward.1} parent=11 // pred_check_branch
        %217 = sbr.rel (%p215) target = $region28
      $region27: #{nerf2_forward.1} parent=11 // pred_region
        _
      $region28: #{nerf2_forward.1} parent=11 // pred_fallthru
        _
      // Predicated region
      $region29: #{nerf2_forward.1} parent=11 // pred_check
        %p218 = pneg %p144
      $region30: #{nerf2_forward.1} parent=11 // pred_check_branch
        %220 = sbr.rel (%p218) target = $region32
      $region31: #{nerf2_forward.1} parent=11 // pred_region
        _
      $region32: #{nerf2_forward.1} parent=11 // pred_fallthru
        _
      // Predicated region
      $region33: #{nerf2_forward.1} parent=11 // pred_check
        %p221 = pneg %p165
      $region34: #{nerf2_forward.1} parent=11 // pred_check_branch
        %223 = sbr.rel (%p221) target = $region36
      $region35: #{nerf2_forward.1} parent=11 // pred_region
        _
      $region36: #{nerf2_forward.1} parent=11 // pred_fallthru
        _
    $region12: #{nerf2_forward.1} parent=5 // pred_fallthru
      _
    %p224 = scmp.lt.s32.totalorder %s13, 2
    // Predicated region
    $region37: #{nerf2_forward.1} parent=5 // pred_check
      %p225 = pneg %p224
    $region38: #{nerf2_forward.1} parent=5 // pred_check_branch
      %227 = sbr.rel (%p225) target = $region40
    $region39: #{nerf2_forward.1} parent=5 // pred_region
      // Predicated region
      $region41: #{nerf2_forward.1} parent=39 // pred_check
        %p228 = pneg %p33
      $region42: #{nerf2_forward.1} parent=39 // pred_check_branch
        %230 = sbr.rel (%p228) target = $region44
      $region43: #{nerf2_forward.1} parent=39 // pred_region
        %s231 = smul.u32 16, %s13
        %p232 = scmp.lt.s32.totalorder %s231, 31
        %s233 = scalar_select %p232, %s231, 31
        %s234 = smul.addr %s233, 2
        %s235 = smul.addr %s234, 4
        %s236 = scalar_lea.vmem %s0, %s235
        %s237 = smul.u32 16, %s13
      $region44: #{nerf2_forward.1} parent=39 // pred_fallthru
        _
    $region40: #{nerf2_forward.1} parent=5 // pred_fallthru
      _
    %p238 = scmp.le.s32.totalorder 1, %s13
    %p239 = scmp.lt.s32.totalorder %s13, 3
    %p240 = pnand %p238, %p239
    %p241 = pneg %p240
    // Predicated region
    $region45: #{nerf2_forward.1} parent=5 // pred_check
      _
    $region46: #{nerf2_forward.1} parent=5 // pred_check_branch
      %243 = sbr.rel (%p240) target = $region48
    $region47: #{nerf2_forward.1} parent=5 // pred_region
      %s244 = ssub.s32 %s13, 1
      %s245 = smul.u32 16, %s18
      %p246 = scmp.lt.s32.totalorder %s245, 31
      %s247 = scalar_select %p246, %s245, 31
      %s248 = smul.addr %s247, 2
      %s249 = smul.addr %s248, 4
      %s250 = scalar_lea.vmem %s0, %s249
      %p251 = pneg %p39
      %p252 = pneg %p36
      %p253 = pneg %p60
      %p254 = pneg %p57
      %p255 = pneg %p81
      %p256 = pneg %p78
      %p257 = pneg %p102
      %p258 = pneg %p99
      %p259 = pneg %p123
      %p260 = pneg %p120
      %p261 = pneg %p144
      %p262 = pneg %p141
      %p263 = pneg %p165
      %p264 = pneg %p162
      %p265 = pneg %p191
      %p266 = pneg %p188
      %s267 = smul.u32 16, %s18
      %p268 = scmp.lt.s32.totalorder %s267, 31
      %s269 = scalar_select %p268, %s267, 31
      %s270 = smul.addr %s269, 8
      %s271 = scalar_lea.vmem %s7, %s270
      %s272 = smul.u32 16, %s18
      %p273 = scmp.lt.s32.totalorder %s272, 31
      %s274 = scalar_select %p273, %s272, 31
      %s275 = smul.addr %s274, 2
      %s276 = smul.addr %s275, 4
      %s277 = scalar_lea.vmem %s0, %s276
      %s278 = smul.u32 16, %s18
      %s279 = smul.u32 16, %s18
      %p280 = scmp.lt.s32.totalorder %s279, 31
      %s281 = scalar_select %p280, %s279, 31
      %s282 = smul.addr %s281, 8
      %s283 = scalar_lea.vmem %s7, %s282
      %s284 = smul.u32 16, %s18
      %v286 = vld [vmem:[%s277] sm:$0xf]
      %v287 = vld [vmem:[%s277 + $0x8] sm:$0xf]
      %v288 = vld [vmem:[%s277 + $0x10] sm:$0xf]
      %v289 = vld [vmem:[%s277 + $0x18] sm:$0xf]
      %v290 = vld [vmem:[%s277 + $0x20] sm:$0xf]
      %v291 = vld [vmem:[%s277 + $0x28] sm:$0xf]
      %v292 = vld [vmem:[%s277 + $0x30] sm:$0xf]
      %v293 = vld [vmem:[%s277 + $0x38] sm:$0xf]
      %v294 = vld [vmem:[%s277 + $0x40] sm:$0xf]
      %v295 = vld [vmem:[%s277 + $0x48] sm:$0xf]
      %v296 = vld [vmem:[%s277 + $0x50] sm:$0xf]
      %v297 = vld [vmem:[%s277 + $0x58] sm:$0xf]
      %v298 = vld [vmem:[%s277 + $0x60] sm:$0xf]
      %v299 = vld [vmem:[%s277 + $0x68] sm:$0xf]
      %v300 = vld [vmem:[%s277 + $0x70] sm:$0xf]
      %v301 = vld [vmem:[%s277 + $0x78] sm:$0xf]
      %v302 = vld [vmem:[%s277 + $0x4] sm:$0xf]
      %v303 = vld [vmem:[%s277 + $0xc] sm:$0xf]
      %v304 = vld [vmem:[%s277 + $0x14] sm:$0xf]
      %v305 = vld [vmem:[%s277 + $0x1c] sm:$0xf]
      %v306 = vld [vmem:[%s277 + $0x24] sm:$0xf]
      %v307 = vld [vmem:[%s277 + $0x2c] sm:$0xf]
      %v308 = vld [vmem:[%s277 + $0x34] sm:$0xf]
      %v309 = vld [vmem:[%s277 + $0x3c] sm:$0xf]
      %v310 = vld [vmem:[%s277 + $0x44] sm:$0xf]
      %v311 = vld [vmem:[%s277 + $0x4c] sm:$0xf]
      %v312 = vld [vmem:[%s277 + $0x54] sm:$0xf]
      %v313 = vld [vmem:[%s277 + $0x5c] sm:$0xf]
      %v314 = vld [vmem:[%s277 + $0x64] sm:$0xf]
      %v315 = vld [vmem:[%s277 + $0x6c] sm:$0xf]
      %v316 = vld [vmem:[%s277 + $0x74] sm:$0xf]
      %v317 = vld [vmem:[%s277 + $0x7c] sm:$0xf]
      %v318 = vld [vmem:[%s2] sm:$0xff]
      %v319 = vld [vmem:[%s2 + $0x8] sm:$0xff]
      %v320 = vld [vmem:[%s2 + $0x10] sm:$0xff]
      %v321 = vld [vmem:[%s2 + $0x18] sm:$0xff]
      %v322 = vld [vmem:[%s2 + $0x20] sm:$0xff]
      %v323 = vld [vmem:[%s2 + $0x28] sm:$0xff]
      %v324 = vld [vmem:[%s2 + $0x30] sm:$0xff]
      %v325 = vld [vmem:[%s2 + $0x38] sm:$0xff]
      %v326 = vld [vmem:[%s2 + $0x40] sm:$0xff]
      %v327 = vld [vmem:[%s2 + $0x48] sm:$0xff]
      %v328 = vld [vmem:[%s2 + $0x50] sm:$0xff]
      %v329 = vld [vmem:[%s2 + $0x58] sm:$0xff]
      %v330 = vld [vmem:[%s2 + $0x60] sm:$0xff]
      %v331 = vld [vmem:[%s2 + $0x68] sm:$0xff]
      %v332 = vld [vmem:[%s2 + $0x70] sm:$0xff]
      %v333 = vld [vmem:[%s2 + $0x78] sm:$0xff]
      %v334 = vld [vmem:[%s6] ss:$8 sm:$0x3]
      %v336 = vlaneseq
      %v337 = vshrl.u32 %v336, 7
      %v338 = vsub.s32 0, %v337
      %v339 = vrot.slane %v334, %v338
      %v340 = vlaneseq
      %v341 = vshrl.u32 %v340, 7
      %v342 = vsub.s32 1, %v341
      %v343 = vrot.slane %v334, %v342
      %v362 = vunpack.c.l.b16 %v286
      %v363 = vunpack.c.l.b16 %v287
      %v364 = vunpack.c.l.b16 %v288
      %v365 = vunpack.c.l.b16 %v289
      %v366 = vunpack.c.l.b16 %v290
      %v367 = vunpack.c.l.b16 %v291
      %v368 = vunpack.c.l.b16 %v292
      %v369 = vunpack.c.l.b16 %v293
      %v370 = vunpack.c.l.b16 %v294
      %v371 = vunpack.c.l.b16 %v295
      %v372 = vunpack.c.l.b16 %v296
      %v373 = vunpack.c.l.b16 %v297
      %v374 = vunpack.c.l.b16 %v298
      %v375 = vunpack.c.l.b16 %v299
      %v376 = vunpack.c.l.b16 %v300
      %v377 = vunpack.c.l.b16 %v301
      %v378 = vpack.c.b16 %v363, %v362
      %v379 = vpack.c.b16 %v365, %v364
      %v380 = vpack.c.b16 %v367, %v366
      %v381 = vpack.c.b16 %v369, %v368
      %v382 = vpack.c.b16 %v371, %v370
      %v383 = vpack.c.b16 %v373, %v372
      %v384 = vpack.c.b16 %v375, %v374
      %v385 = vpack.c.b16 %v377, %v376
      %v410 = vunpack.c.l.b16 %v318
      %v411 = vunpack.c.h.b16 %v318
      %v412 = vunpack.c.l.b16 %v319
      %v413 = vunpack.c.h.b16 %v319
      %v414 = vunpack.c.l.b16 %v320
      %v415 = vunpack.c.h.b16 %v320
      %v416 = vunpack.c.l.b16 %v321
      %v417 = vunpack.c.h.b16 %v321
      %v418 = vunpack.c.l.b16 %v322
      %v419 = vunpack.c.h.b16 %v322
      %v420 = vunpack.c.l.b16 %v323
      %v421 = vunpack.c.h.b16 %v323
      %v422 = vunpack.c.l.b16 %v324
      %v423 = vunpack.c.h.b16 %v324
      %v424 = vunpack.c.l.b16 %v325
      %v425 = vunpack.c.h.b16 %v325
      %v426 = vunpack.c.l.b16 %v326
      %v427 = vunpack.c.h.b16 %v326
      %v428 = vunpack.c.l.b16 %v327
      %v429 = vunpack.c.h.b16 %v327
      %v430 = vunpack.c.l.b16 %v328
      %v431 = vunpack.c.h.b16 %v328
      %v432 = vunpack.c.l.b16 %v329
      %v433 = vunpack.c.h.b16 %v329
      %v434 = vunpack.c.l.b16 %v330
      %v435 = vunpack.c.h.b16 %v330
      %v436 = vunpack.c.l.b16 %v331
      %v437 = vunpack.c.h.b16 %v331
      %v438 = vunpack.c.l.b16 %v332
      %v439 = vunpack.c.h.b16 %v332
      %v440 = vunpack.c.l.b16 %v333
      %v441 = vunpack.c.h.b16 %v333
      %v442 = vpack.c.b16 %v412, %v410
      %v443 = vpack.c.b16 %v413, %v411
      %v444 = vpack.c.b16 %v416, %v414
      %v445 = vpack.c.b16 %v417, %v415
      %v446 = vpack.c.b16 %v420, %v418
      %v447 = vpack.c.b16 %v421, %v419
      %v448 = vpack.c.b16 %v424, %v422
      %v449 = vpack.c.b16 %v425, %v423
      %v450 = vpack.c.b16 %v428, %v426
      %v451 = vpack.c.b16 %v429, %v427
      %v452 = vpack.c.b16 %v432, %v430
      %v453 = vpack.c.b16 %v433, %v431
      %v454 = vpack.c.b16 %v436, %v434
      %v455 = vpack.c.b16 %v437, %v435
      %v456 = vpack.c.b16 %v440, %v438
      %v457 = vpack.c.b16 %v441, %v439
      %474 = vmatprep.subr.bf16.mxu0 %v443
      %475 = vmatpush1.bf16.msra.mxu0 %v442
      %476 = vmatprep.subr.bf16.mxu0 %v445
      %477 = vmatpush1.bf16.msra.mxu0 %v444
      %478 = vmatprep.subr.bf16.mxu0 %v447
      %479 = vmatpush1.bf16.msra.mxu0 %v446
      %480 = vmatprep.subr.bf16.mxu0 %v449
      %481 = vmatpush1.bf16.msra.mxu0 %v448
      %482 = vmatprep.subr.bf16.mxu0 %v451
      %483 = vmatpush1.bf16.msra.mxu0 %v450
      %484 = vmatprep.subr.bf16.mxu0 %v453
      %485 = vmatpush1.bf16.msra.mxu0 %v452
      %486 = vmatprep.subr.bf16.mxu0 %v455
      %487 = vmatpush1.bf16.msra.mxu0 %v454
      %488 = vmatprep.subr.bf16.mxu0 %v457
      %489 = vmatpush1.bf16.msra.mxu0 %v456
      %490 = vmatprep.subr.bf16.mxu0 0
      %491 = vmatpush1.bf16.msra.mxu0 0
      %492 = vmatprep.subr.bf16.mxu0 0
      %493 = vmatpush1.bf16.msra.mxu0 0
      %494 = vmatprep.subr.bf16.mxu0 0
      %495 = vmatpush1.bf16.msra.mxu0 0
      %496 = vmatprep.subr.bf16.mxu0 0
      %497 = vmatpush1.bf16.msra.mxu0 0
      %498 = vmatprep.subr.bf16.mxu0 0
      %499 = vmatpush1.bf16.msra.mxu0 0
      %500 = vmatprep.subr.bf16.mxu0 0
      %501 = vmatpush1.bf16.msra.mxu0 0
      %502 = vmatprep.subr.bf16.mxu0 0
      %503 = vmatpush1.bf16.msra.mxu0 0
      %504 = vmatprep.subr.bf16.mxu0 0
      %505 = vmatpush1.bf16.msra.mxu0 0
      %506 = vmatprep.mubr.bf16.mxu0 0
      %507 = vmatmul.mubr.bf16.gmra.mrb[0].mxu0 %v378
      %v508 = vpop.f32.mrb[0].mxu0
      %v509 = vadd.f32 %v339, %v508
      %v510 = vpop.f32.mrb[0].mxu0
      %v511 = vadd.f32 %v343, %v510
      %v512 = vpop.f32.mrb[0].mxu0
      %v513 = vadd.f32 %v339, %v512
      %v514 = vpop.f32.mrb[0].mxu0
      %v515 = vadd.f32 %v343, %v514
      %516 = vmatprep.mubr.bf16.mxu0 0
      %517 = vmatmul.mubr.bf16.gmra.mrb[0].mxu0 %v379
      %v518 = vpop.f32.mrb[0].mxu0
      %v519 = vadd.f32 %v339, %v518
      %v520 = vpop.f32.mrb[0].mxu0
      %v521 = vadd.f32 %v343, %v520
      %v522 = vpop.f32.mrb[0].mxu0
      %v523 = vadd.f32 %v339, %v522
      %v524 = vpop.f32.mrb[0].mxu0
      %v525 = vadd.f32 %v343, %v524
      %526 = vmatprep.mubr.bf16.mxu0 0
      %527 = vmatmul.mubr.bf16.gmra.mrb[0].mxu0 %v380
      %v528 = vpop.f32.mrb[0].mxu0
      %v529 = vadd.f32 %v339, %v528
      %v530 = vpop.f32.mrb[0].mxu0
      %v531 = vadd.f32 %v343, %v530
      %v532 = vpop.f32.mrb[0].mxu0
      %v533 = vadd.f32 %v339, %v532
      %v534 = vpop.f32.mrb[0].mxu0
      %v535 = vadd.f32 %v343, %v534
      %536 = vmatprep.mubr.bf16.mxu0 0
      %537 = vmatmul.mubr.bf16.gmra.mrb[0].mxu0 %v381
      %v538 = vpop.f32.mrb[0].mxu0
      %v539 = vadd.f32 %v339, %v538
      %v540 = vpop.f32.mrb[0].mxu0
      %v541 = vadd.f32 %v343, %v540
      %v542 = vpop.f32.mrb[0].mxu0
      %v543 = vadd.f32 %v339, %v542
      %v544 = vpop.f32.mrb[0].mxu0
      %v545 = vadd.f32 %v343, %v544
      %546 = vmatprep.mubr.bf16.mxu0 0
      %547 = vmatmul.mubr.bf16.gmra.mrb[0].mxu0 %v382
      %v548 = vpop.f32.mrb[0].mxu0
      %v549 = vadd.f32 %v339, %v548
      %v550 = vpop.f32.mrb[0].mxu0
      %v551 = vadd.f32 %v343, %v550
      %v552 = vpop.f32.mrb[0].mxu0
      %v553 = vadd.f32 %v339, %v552
      %v554 = vpop.f32.mrb[0].mxu0
      %v555 = vadd.f32 %v343, %v554
      %556 = vmatprep.mubr.bf16.mxu0 0
      %557 = vmatmul.mubr.bf16.gmra.mrb[0].mxu0 %v383
      %v558 = vpop.f32.mrb[0].mxu0
      %v559 = vadd.f32 %v339, %v558
      %v560 = vpop.f32.mrb[0].mxu0
      %v561 = vadd.f32 %v343, %v560
      %v562 = vpop.f32.mrb[0].mxu0
      %v563 = vadd.f32 %v339, %v562
      %v564 = vpop.f32.mrb[0].mxu0
      %v565 = vadd.f32 %v343, %v564
      %566 = vmatprep.mubr.bf16.mxu0 0
      %567 = vmatmul.mubr.bf16.gmra.mrb[0].mxu0 %v384
      %v568 = vpop.f32.mrb[0].mxu0
      %v569 = vadd.f32 %v339, %v568
      %v570 = vpop.f32.mrb[0].mxu0
      %v571 = vadd.f32 %v343, %v570
      %v572 = vpop.f32.mrb[0].mxu0
      %v573 = vadd.f32 %v339, %v572
      %v574 = vpop.f32.mrb[0].mxu0
      %v575 = vadd.f32 %v343, %v574
      %576 = vmatprep.mubr.bf16.mxu0 0
      %577 = vmatmul.mubr.bf16.gmra.mrb[0].mxu0 %v385
      %v578 = vpop.f32.mrb[0].mxu0
      %v579 = vadd.f32 %v339, %v578
      %v580 = vpop.f32.mrb[0].mxu0
      %v581 = vadd.f32 %v343, %v580
      %v582 = vpop.f32.mrb[0].mxu0
      %v583 = vadd.f32 %v339, %v582
      %v584 = vpop.f32.mrb[0].mxu0
      %v585 = vadd.f32 %v343, %v584
      %586 = vdwg.mxu0
      %v587 = vmax.f32 %v509, 0.0
      %v588 = vmax.f32 %v511, 0.0
      %v589 = vmax.f32 %v513, 0.0
      %v590 = vmax.f32 %v515, 0.0
      %v591 = vmax.f32 %v519, 0.0
      %v592 = vmax.f32 %v521, 0.0
      %v593 = vmax.f32 %v523, 0.0
      %v594 = vmax.f32 %v525, 0.0
      %v595 = vmax.f32 %v529, 0.0
      %v596 = vmax.f32 %v531, 0.0
      %v597 = vmax.f32 %v533, 0.0
      %v598 = vmax.f32 %v535, 0.0
      %v599 = vmax.f32 %v539, 0.0
      %v600 = vmax.f32 %v541, 0.0
      %v601 = vmax.f32 %v543, 0.0
      %v602 = vmax.f32 %v545, 0.0
      %v603 = vmax.f32 %v549, 0.0
      %v604 = vmax.f32 %v551, 0.0
      %v605 = vmax.f32 %v553, 0.0
      %v606 = vmax.f32 %v555, 0.0
      %v607 = vmax.f32 %v559, 0.0
      %v608 = vmax.f32 %v561, 0.0
      %v609 = vmax.f32 %v563, 0.0
      %v610 = vmax.f32 %v565, 0.0
      %v611 = vmax.f32 %v569, 0.0
      %v612 = vmax.f32 %v571, 0.0
      %v613 = vmax.f32 %v573, 0.0
      %v614 = vmax.f32 %v575, 0.0
      %v615 = vmax.f32 %v579, 0.0
      %v616 = vmax.f32 %v581, 0.0
      %v617 = vmax.f32 %v583, 0.0
      %v618 = vmax.f32 %v585, 0.0
      %v619 = vpack.c.bf16 %v589, %v587
      %v620 = vpack.c.bf16 %v590, %v588
      %v621 = vpack.c.bf16 %v593, %v591
      %v622 = vpack.c.bf16 %v594, %v592
      %v623 = vpack.c.bf16 %v597, %v595
      %v624 = vpack.c.bf16 %v598, %v596
      %v625 = vpack.c.bf16 %v601, %v599
      %v626 = vpack.c.bf16 %v602, %v600
      %v627 = vpack.c.bf16 %v605, %v603
      %v628 = vpack.c.bf16 %v606, %v604
      %v629 = vpack.c.bf16 %v609, %v607
      %v630 = vpack.c.bf16 %v610, %v608
      %v631 = vpack.c.bf16 %v613, %v611
      %v632 = vpack.c.bf16 %v614, %v612
      %v633 = vpack.c.bf16 %v617, %v615
      %v634 = vpack.c.bf16 %v618, %v616
      %v635 = vld [vmem:[%s1] sm:$0xff]
      %v636 = vld [vmem:[%s1 + $0x8] sm:$0xff]
      %v637 = vld [vmem:[%s1 + $0x10] sm:$0xff]
      %v638 = vld [vmem:[%s1 + $0x18] sm:$0xff]
      %v639 = vld [vmem:[%s1 + $0x20] sm:$0xff]
      %v640 = vld [vmem:[%s1 + $0x28] sm:$0xff]
      %v641 = vld [vmem:[%s1 + $0x30] sm:$0xff]
      %v642 = vld [vmem:[%s1 + $0x38] sm:$0xff]
      %v643 = vld [vmem:[%s1 + $0x40] sm:$0xff]
      %v644 = vld [vmem:[%s1 + $0x48] sm:$0xff]
      %v645 = vld [vmem:[%s1 + $0x50] sm:$0xff]
      %v646 = vld [vmem:[%s1 + $0x58] sm:$0xff]
      %v647 = vld [vmem:[%s1 + $0x60] sm:$0xff]
      %v648 = vld [vmem:[%s1 + $0x68] sm:$0xff]
      %v649 = vld [vmem:[%s1 + $0x70] sm:$0xff]
      %v650 = vld [vmem:[%s1 + $0x78] sm:$0xff]
      %v651 = vld [vmem:[%s1 + $0x80] sm:$0xff]
      %v652 = vld [vmem:[%s1 + $0x88] sm:$0xff]
      %v653 = vld [vmem:[%s1 + $0x90] sm:$0xff]
      %v654 = vld [vmem:[%s1 + $0x98] sm:$0xff]
      %v655 = vld [vmem:[%s1 + $0xa0] sm:$0xff]
      %v656 = vld [vmem:[%s1 + $0xa8] sm:$0xff]
      %v657 = vld [vmem:[%s1 + $0xb0] sm:$0xff]
      %v658 = vld [vmem:[%s1 + $0xb8] sm:$0xff]
      %v659 = vld [vmem:[%s1 + $0xc0] sm:$0xff]
      %v660 = vld [vmem:[%s1 + $0xc8] sm:$0xff]
      %v661 = vld [vmem:[%s1 + $0xd0] sm:$0xff]
      %v662 = vld [vmem:[%s1 + $0xd8] sm:$0xff]
      %v663 = vld [vmem:[%s1 + $0xe0] sm:$0xff]
      %v664 = vld [vmem:[%s1 + $0xe8] sm:$0xff]
      %v665 = vld [vmem:[%s1 + $0xf0] sm:$0xff]
      %v666 = vld [vmem:[%s1 + $0xf8] sm:$0xff]
      %s667 = scalar_lea.vmem %s6, 1
      %v668 = vld [vmem:[%s667] ss:$8 sm:$0x3]
      %v670 = vlaneseq
      %v671 = vshrl.u32 %v670, 7
      %v672 = vsub.s32 0, %v671
      %v673 = vrot.slane %v668, %v672
      %v674 = vlaneseq
      %v675 = vshrl.u32 %v674, 7
      %v676 = vsub.s32 1, %v675
      %v677 = vrot.slane %v668, %v676
      %v712 = vunpack.c.l.b16 %v635
      %v713 = vunpack.c.h.b16 %v635
      %v714 = vunpack.c.l.b16 %v636
      %v715 = vunpack.c.h.b16 %v636
      %v716 = vunpack.c.l.b16 %v637
      %v717 = vunpack.c.h.b16 %v637
      %v718 = vunpack.c.l.b16 %v638
      %v719 = vunpack.c.h.b16 %v638
      %v720 = vunpack.c.l.b16 %v639
      %v721 = vunpack.c.h.b16 %v639
      %v722 = vunpack.c.l.b16 %v640
      %v723 = vunpack.c.h.b16 %v640
      %v724 = vunpack.c.l.b16 %v641
      %v725 = vunpack.c.h.b16 %v641
      %v726 = vunpack.c.l.b16 %v642
      %v727 = vunpack.c.h.b16 %v642
      %v728 = vunpack.c.l.b16 %v643
      %v729 = vunpack.c.h.b16 %v643
      %v730 = vunpack.c.l.b16 %v644
      %v731 = vunpack.c.h.b16 %v644
      %v732 = vunpack.c.l.b16 %v645
      %v733 = vunpack.c.h.b16 %v645
      %v734 = vunpack.c.l.b16 %v646
      %v735 = vunpack.c.h.b16 %v646
      %v736 = vunpack.c.l.b16 %v647
      %v737 = vunpack.c.h.b16 %v647
      %v738 = vunpack.c.l.b16 %v648
      %v739 = vunpack.c.h.b16 %v648
      %v740 = vunpack.c.l.b16 %v649
      %v741 = vunpack.c.h.b16 %v649
      %v742 = vunpack.c.l.b16 %v650
      %v743 = vunpack.c.h.b16 %v650
      %v744 = vunpack.c.l.b16 %v651
      %v745 = vunpack.c.h.b16 %v651
      %v746 = vunpack.c.l.b16 %v652
      %v747 = vunpack.c.h.b16 %v652
      %v748 = vunpack.c.l.b16 %v653
      %v749 = vunpack.c.h.b16 %v653
      %v750 = vunpack.c.l.b16 %v654
      %v751 = vunpack.c.h.b16 %v654
      %v752 = vunpack.c.l.b16 %v655
      %v753 = vunpack.c.h.b16 %v655
      %v754 = vunpack.c.l.b16 %v656
      %v755 = vunpack.c.h.b16 %v656
      %v756 = vunpack.c.l.b16 %v657
      %v757 = vunpack.c.h.b16 %v657
      %v758 = vunpack.c.l.b16 %v658
      %v759 = vunpack.c.h.b16 %v658
      %v760 = vunpack.c.l.b16 %v659
      %v761 = vunpack.c.h.b16 %v659
      %v762 = vunpack.c.l.b16 %v660
      %v763 = vunpack.c.h.b16 %v660
      %v764 = vunpack.c.l.b16 %v661
      %v765 = vunpack.c.h.b16 %v661
      %v766 = vunpack.c.l.b16 %v662
      %v767 = vunpack.c.h.b16 %v662
      %v768 = vunpack.c.l.b16 %v663
      %v769 = vunpack.c.h.b16 %v663
      %v770 = vunpack.c.l.b16 %v664
      %v771 = vunpack.c.h.b16 %v664
      %v772 = vunpack.c.l.b16 %v665
      %v773 = vunpack.c.h.b16 %v665
      %v774 = vunpack.c.l.b16 %v666
      %v775 = vunpack.c.h.b16 %v666
      %v776 = vpack.c.b16 %v714, %v712
      %v777 = vpack.c.b16 %v715, %v713
      %v778 = vpack.c.b16 %v718, %v716
      %v779 = vpack.c.b16 %v719, %v717
      %v780 = vpack.c.b16 %v722, %v720
      %v781 = vpack.c.b16 %v723, %v721
      %v782 = vpack.c.b16 %v726, %v724
      %v783 = vpack.c.b16 %v727, %v725
      %v784 = vpack.c.b16 %v730, %v728
      %v785 = vpack.c.b16 %v731, %v729
      %v786 = vpack.c.b16 %v734, %v732
      %v787 = vpack.c.b16 %v735, %v733
      %v788 = vpack.c.b16 %v738, %v736
      %v789 = vpack.c.b16 %v739, %v737
      %v790 = vpack.c.b16 %v742, %v740
      %v791 = vpack.c.b16 %v743, %v741
      %v792 = vpack.c.b16 %v746, %v744
      %v793 = vpack.c.b16 %v747, %v745
      %v794 = vpack.c.b16 %v750, %v748
      %v795 = vpack.c.b16 %v751, %v749
      %v796 = vpack.c.b16 %v754, %v752
      %v797 = vpack.c.b16 %v755, %v753
      %v798 = vpack.c.b16 %v758, %v756
      %v799 = vpack.c.b16 %v759, %v757
      %v800 = vpack.c.b16 %v762, %v760
      %v801 = vpack.c.b16 %v763, %v761
      %v802 = vpack.c.b16 %v766, %v764
      %v803 = vpack.c.b16 %v767, %v765
      %v804 = vpack.c.b16 %v770, %v768
      %v805 = vpack.c.b16 %v771, %v769
      %v806 = vpack.c.b16 %v774, %v772
      %v807 = vpack.c.b16 %v775, %v773
      %840 = vmatprep.subr.bf16.mxu0 %v777
      %841 = vmatpush1.bf16.msra.mxu0 %v776
      %842 = vmatprep.subr.bf16.mxu0 %v779
      %843 = vmatpush1.bf16.msra.mxu0 %v778
      %844 = vmatprep.subr.bf16.mxu0 %v781
      %845 = vmatpush1.bf16.msra.mxu0 %v780
      %846 = vmatprep.subr.bf16.mxu0 %v783
      %847 = vmatpush1.bf16.msra.mxu0 %v782
      %848 = vmatprep.subr.bf16.mxu0 %v785
      %849 = vmatpush1.bf16.msra.mxu0 %v784
      %850 = vmatprep.subr.bf16.mxu0 %v787
      %851 = vmatpush1.bf16.msra.mxu0 %v786
      %852 = vmatprep.subr.bf16.mxu0 %v789
      %853 = vmatpush1.bf16.msra.mxu0 %v788
      %854 = vmatprep.subr.bf16.mxu0 %v791
      %855 = vmatpush1.bf16.msra.mxu0 %v790
      %856 = vmatprep.subr.bf16.mxu0 %v793
      %857 = vmatpush1.bf16.msra.mxu0 %v792
      %858 = vmatprep.subr.bf16.mxu0 %v795
      %859 = vmatpush1.bf16.msra.mxu0 %v794
      %860 = vmatprep.subr.bf16.mxu0 %v797
      %861 = vmatpush1.bf16.msra.mxu0 %v796
      %862 = vmatprep.subr.bf16.mxu0 %v799
      %863 = vmatpush1.bf16.msra.mxu0 %v798
      %864 = vmatprep.subr.bf16.mxu0 %v801
      %865 = vmatpush1.bf16.msra.mxu0 %v800
      %866 = vmatprep.subr.bf16.mxu0 %v803
      %867 = vmatpush1.bf16.msra.mxu0 %v802
      %868 = vmatprep.subr.bf16.mxu0 %v805
      %869 = vmatpush1.bf16.msra.mxu0 %v804
      %870 = vmatprep.subr.bf16.mxu0 %v807
      %871 = vmatpush1.bf16.msra.mxu0 %v806
      %872 = vmatprep.mubr.bf16.mxu0 %v620
      %873 = vmatmul.mubr.bf16.gmra.mrb[0].mxu0 %v619
      %v874 = vpop.f32.mrb[0].mxu0
      %v875 = vadd.f32 %v673, %v874
      %v876 = vpop.f32.mrb[0].mxu0
      %v877 = vadd.f32 %v677, %v876
      %v878 = vpop.f32.mrb[0].mxu0
      %v879 = vadd.f32 %v673, %v878
      %v880 = vpop.f32.mrb[0].mxu0
      %v881 = vadd.f32 %v677, %v880
      %882 = vmatprep.mubr.bf16.mxu0 %v622
      %883 = vmatmul.mubr.bf16.gmra.mrb[0].mxu0 %v621
      %v884 = vpop.f32.mrb[0].mxu0
      %v885 = vadd.f32 %v673, %v884
      %v886 = vpop.f32.mrb[0].mxu0
      %v887 = vadd.f32 %v677, %v886
      %v888 = vpop.f32.mrb[0].mxu0
      %v889 = vadd.f32 %v673, %v888
      %v890 = vpop.f32.mrb[0].mxu0
      %v891 = vadd.f32 %v677, %v890
      %892 = vmatprep.mubr.bf16.mxu0 %v624
      %893 = vmatmul.mubr.bf16.gmra.mrb[0].mxu0 %v623
      %v894 = vpop.f32.mrb[0].mxu0
      %v895 = vadd.f32 %v673, %v894
      %v896 = vpop.f32.mrb[0].mxu0
      %v897 = vadd.f32 %v677, %v896
      %v898 = vpop.f32.mrb[0].mxu0
      %v899 = vadd.f32 %v673, %v898
      %v900 = vpop.f32.mrb[0].mxu0
      %v901 = vadd.f32 %v677, %v900
      %902 = vmatprep.mubr.bf16.mxu0 %v626
      %903 = vmatmul.mubr.bf16.gmra.mrb[0].mxu0 %v625
      %v904 = vpop.f32.mrb[0].mxu0
      %v905 = vadd.f32 %v673, %v904
      %v906 = vpop.f32.mrb[0].mxu0
      %v907 = vadd.f32 %v677, %v906
      %v908 = vpop.f32.mrb[0].mxu0
      %v909 = vadd.f32 %v673, %v908
      %v910 = vpop.f32.mrb[0].mxu0
      %v911 = vadd.f32 %v677, %v910
      %912 = vmatprep.mubr.bf16.mxu0 %v628
      %913 = vmatmul.mubr.bf16.gmra.mrb[0].mxu0 %v627
      %v914 = vpop.f32.mrb[0].mxu0
      %v915 = vadd.f32 %v673, %v914
      %v916 = vpop.f32.mrb[0].mxu0
      %v917 = vadd.f32 %v677, %v916
      %v918 = vpop.f32.mrb[0].mxu0
      %v919 = vadd.f32 %v673, %v918
      %v920 = vpop.f32.mrb[0].mxu0
      %v921 = vadd.f32 %v677, %v920
      %922 = vmatprep.mubr.bf16.mxu0 %v630
      %923 = vmatmul.mubr.bf16.gmra.mrb[0].mxu0 %v629
      %v924 = vpop.f32.mrb[0].mxu0
      %v925 = vadd.f32 %v673, %v924
      %v926 = vpop.f32.mrb[0].mxu0
      %v927 = vadd.f32 %v677, %v926
      %v928 = vpop.f32.mrb[0].mxu0
      %v929 = vadd.f32 %v673, %v928
      %v930 = vpop.f32.mrb[0].mxu0
      %v931 = vadd.f32 %v677, %v930
      %932 = vmatprep.mubr.bf16.mxu0 %v632
      %933 = vmatmul.mubr.bf16.gmra.mrb[0].mxu0 %v631
      %v934 = vpop.f32.mrb[0].mxu0
      %v935 = vadd.f32 %v673, %v934
      %v936 = vpop.f32.mrb[0].mxu0
      %v937 = vadd.f32 %v677, %v936
      %v938 = vpop.f32.mrb[0].mxu0
      %v939 = vadd.f32 %v673, %v938
      %v940 = vpop.f32.mrb[0].mxu0
      %v941 = vadd.f32 %v677, %v940
      %942 = vmatprep.mubr.bf16.mxu0 %v634
      %943 = vmatmul.mubr.bf16.gmra.mrb[0].mxu0 %v633
      %v944 = vpop.f32.mrb[0].mxu0
      %v945 = vadd.f32 %v673, %v944
      %v946 = vpop.f32.mrb[0].mxu0
      %v947 = vadd.f32 %v677, %v946
      %v948 = vpop.f32.mrb[0].mxu0
      %v949 = vadd.f32 %v673, %v948
      %v950 = vpop.f32.mrb[0].mxu0
      %v951 = vadd.f32 %v677, %v950
      %952 = vdwg.mxu0
      %v953 = vmax.f32 %v875, 0.0
      %v954 = vmax.f32 %v877, 0.0
      %v955 = vmax.f32 %v879, 0.0
      %v956 = vmax.f32 %v881, 0.0
      %v957 = vmax.f32 %v885, 0.0
      %v958 = vmax.f32 %v887, 0.0
      %v959 = vmax.f32 %v889, 0.0
      %v960 = vmax.f32 %v891, 0.0
      %v961 = vmax.f32 %v895, 0.0
      %v962 = vmax.f32 %v897, 0.0
      %v963 = vmax.f32 %v899, 0.0
      %v964 = vmax.f32 %v901, 0.0
      %v965 = vmax.f32 %v905, 0.0
      %v966 = vmax.f32 %v907, 0.0
      %v967 = vmax.f32 %v909, 0.0
      %v968 = vmax.f32 %v911, 0.0
      %v969 = vmax.f32 %v915, 0.0
      %v970 = vmax.f32 %v917, 0.0
      %v971 = vmax.f32 %v919, 0.0
      %v972 = vmax.f32 %v921, 0.0
      %v973 = vmax.f32 %v925, 0.0
      %v974 = vmax.f32 %v927, 0.0
      %v975 = vmax.f32 %v929, 0.0
      %v976 = vmax.f32 %v931, 0.0
      %v977 = vmax.f32 %v935, 0.0
      %v978 = vmax.f32 %v937, 0.0
      %v979 = vmax.f32 %v939, 0.0
      %v980 = vmax.f32 %v941, 0.0
      %v981 = vmax.f32 %v945, 0.0
      %v982 = vmax.f32 %v947, 0.0
      %v983 = vmax.f32 %v949, 0.0
      %v984 = vmax.f32 %v951, 0.0
      %v985 = vpack.c.bf16 %v955, %v953
      %v986 = vpack.c.bf16 %v956, %v954
      %v987 = vpack.c.bf16 %v959, %v957
      %v988 = vpack.c.bf16 %v960, %v958
      %v989 = vpack.c.bf16 %v963, %v961
      %v990 = vpack.c.bf16 %v964, %v962
      %v991 = vpack.c.bf16 %v967, %v965
      %v992 = vpack.c.bf16 %v968, %v966
      %v993 = vpack.c.bf16 %v971, %v969
      %v994 = vpack.c.bf16 %v972, %v970
      %v995 = vpack.c.bf16 %v975, %v973
      %v996 = vpack.c.bf16 %v976, %v974
      %v997 = vpack.c.bf16 %v979, %v977
      %v998 = vpack.c.bf16 %v980, %v978
      %v999 = vpack.c.bf16 %v983, %v981
      %v1000 = vpack.c.bf16 %v984, %v982
      %s1001 = scalar_lea.vmem %s1, 256
      %v1002 = vld [vmem:[%s1001] sm:$0xff]
      %v1003 = vld [vmem:[%s1001 + $0x8] sm:$0xff]
      %v1004 = vld [vmem:[%s1001 + $0x10] sm:$0xff]
      %v1005 = vld [vmem:[%s1001 + $0x18] sm:$0xff]
      %v1006 = vld [vmem:[%s1001 + $0x20] sm:$0xff]
      %v1007 = vld [vmem:[%s1001 + $0x28] sm:$0xff]
      %v1008 = vld [vmem:[%s1001 + $0x30] sm:$0xff]
      %v1009 = vld [vmem:[%s1001 + $0x38] sm:$0xff]
      %v1010 = vld [vmem:[%s1001 + $0x40] sm:$0xff]
      %v1011 = vld [vmem:[%s1001 + $0x48] sm:$0xff]
      %v1012 = vld [vmem:[%s1001 + $0x50] sm:$0xff]
      %v1013 = vld [vmem:[%s1001 + $0x58] sm:$0xff]
      %v1014 = vld [vmem:[%s1001 + $0x60] sm:$0xff]
      %v1015 = vld [vmem:[%s1001 + $0x68] sm:$0xff]
      %v1016 = vld [vmem:[%s1001 + $0x70] sm:$0xff]
      %v1017 = vld [vmem:[%s1001 + $0x78] sm:$0xff]
      %v1018 = vld [vmem:[%s1001 + $0x80] sm:$0xff]
      %v1019 = vld [vmem:[%s1001 + $0x88] sm:$0xff]
      %v1020 = vld [vmem:[%s1001 + $0x90] sm:$0xff]
      %v1021 = vld [vmem:[%s1001 + $0x98] sm:$0xff]
      %v1022 = vld [vmem:[%s1001 + $0xa0] sm:$0xff]
      %v1023 = vld [vmem:[%s1001 + $0xa8] sm:$0xff]
      %v1024 = vld [vmem:[%s1001 + $0xb0] sm:$0xff]
      %v1025 = vld [vmem:[%s1001 + $0xb8] sm:$0xff]
      %v1026 = vld [vmem:[%s1001 + $0xc0] sm:$0xff]
      %v1027 = vld [vmem:[%s1001 + $0xc8] sm:$0xff]
      %v1028 = vld [vmem:[%s1001 + $0xd0] sm:$0xff]
      %v1029 = vld [vmem:[%s1001 + $0xd8] sm:$0xff]
      %v1030 = vld [vmem:[%s1001 + $0xe0] sm:$0xff]
      %v1031 = vld [vmem:[%s1001 + $0xe8] sm:$0xff]
      %v1032 = vld [vmem:[%s1001 + $0xf0] sm:$0xff]
      %v1033 = vld [vmem:[%s1001 + $0xf8] sm:$0xff]
      %s1034 = scalar_lea.vmem %s6, 2
      %v1035 = vld [vmem:[%s1034] ss:$8 sm:$0x3]
      %v1037 = vlaneseq
      %v1038 = vshrl.u32 %v1037, 7
      %v1039 = vsub.s32 0, %v1038
      %v1040 = vrot.slane %v1035, %v1039
      %v1041 = vlaneseq
      %v1042 = vshrl.u32 %v1041, 7
      %v1043 = vsub.s32 1, %v1042
      %v1044 = vrot.slane %v1035, %v1043
      %v1079 = vunpack.c.l.b16 %v1002
      %v1080 = vunpack.c.h.b16 %v1002
      %v1081 = vunpack.c.l.b16 %v1003
      %v1082 = vunpack.c.h.b16 %v1003
      %v1083 = vunpack.c.l.b16 %v1004
      %v1084 = vunpack.c.h.b16 %v1004
      %v1085 = vunpack.c.l.b16 %v1005
      %v1086 = vunpack.c.h.b16 %v1005
      %v1087 = vunpack.c.l.b16 %v1006
      %v1088 = vunpack.c.h.b16 %v1006
      %v1089 = vunpack.c.l.b16 %v1007
      %v1090 = vunpack.c.h.b16 %v1007
      %v1091 = vunpack.c.l.b16 %v1008
      %v1092 = vunpack.c.h.b16 %v1008
      %v1093 = vunpack.c.l.b16 %v1009
      %v1094 = vunpack.c.h.b16 %v1009
      %v1095 = vunpack.c.l.b16 %v1010
      %v1096 = vunpack.c.h.b16 %v1010
      %v1097 = vunpack.c.l.b16 %v1011
      %v1098 = vunpack.c.h.b16 %v1011
      %v1099 = vunpack.c.l.b16 %v1012
      %v1100 = vunpack.c.h.b16 %v1012
      %v1101 = vunpack.c.l.b16 %v1013
      %v1102 = vunpack.c.h.b16 %v1013
      %v1103 = vunpack.c.l.b16 %v1014
      %v1104 = vunpack.c.h.b16 %v1014
      %v1105 = vunpack.c.l.b16 %v1015
      %v1106 = vunpack.c.h.b16 %v1015
      %v1107 = vunpack.c.l.b16 %v1016
      %v1108 = vunpack.c.h.b16 %v1016
      %v1109 = vunpack.c.l.b16 %v1017
      %v1110 = vunpack.c.h.b16 %v1017
      %v1111 = vunpack.c.l.b16 %v1018
      %v1112 = vunpack.c.h.b16 %v1018
      %v1113 = vunpack.c.l.b16 %v1019
      %v1114 = vunpack.c.h.b16 %v1019
      %v1115 = vunpack.c.l.b16 %v1020
      %v1116 = vunpack.c.h.b16 %v1020
      %v1117 = vunpack.c.l.b16 %v1021
      %v1118 = vunpack.c.h.b16 %v1021
      %v1119 = vunpack.c.l.b16 %v1022
      %v1120 = vunpack.c.h.b16 %v1022
      %v1121 = vunpack.c.l.b16 %v1023
      %v1122 = vunpack.c.h.b16 %v1023
      %v1123 = vunpack.c.l.b16 %v1024
      %v1124 = vunpack.c.h.b16 %v1024
      %v1125 = vunpack.c.l.b16 %v1025
      %v1126 = vunpack.c.h.b16 %v1025
      %v1127 = vunpack.c.l.b16 %v1026
      %v1128 = vunpack.c.h.b16 %v1026
      %v1129 = vunpack.c.l.b16 %v1027
      %v1130 = vunpack.c.h.b16 %v1027
      %v1131 = vunpack.c.l.b16 %v1028
      %v1132 = vunpack.c.h.b16 %v1028
      %v1133 = vunpack.c.l.b16 %v1029
      %v1134 = vunpack.c.h.b16 %v1029
      %v1135 = vunpack.c.l.b16 %v1030
      %v1136 = vunpack.c.h.b16 %v1030
      %v1137 = vunpack.c.l.b16 %v1031
      %v1138 = vunpack.c.h.b16 %v1031
      %v1139 = vunpack.c.l.b16 %v1032
      %v1140 = vunpack.c.h.b16 %v1032
      %v1141 = vunpack.c.l.b16 %v1033
      %v1142 = vunpack.c.h.b16 %v1033
      %v1143 = vpack.c.b16 %v1081, %v1079
      %v1144 = vpack.c.b16 %v1082, %v1080
      %v1145 = vpack.c.b16 %v1085, %v1083
      %v1146 = vpack.c.b16 %v1086, %v1084
      %v1147 = vpack.c.b16 %v1089, %v1087
      %v1148 = vpack.c.b16 %v1090, %v1088
      %v1149 = vpack.c.b16 %v1093, %v1091
      %v1150 = vpack.c.b16 %v1094, %v1092
      %v1151 = vpack.c.b16 %v1097, %v1095
      %v1152 = vpack.c.b16 %v1098, %v1096
      %v1153 = vpack.c.b16 %v1101, %v1099
      %v1154 = vpack.c.b16 %v1102, %v1100
      %v1155 = vpack.c.b16 %v1105, %v1103
      %v1156 = vpack.c.b16 %v1106, %v1104
      %v1157 = vpack.c.b16 %v1109, %v1107
      %v1158 = vpack.c.b16 %v1110, %v1108
      %v1159 = vpack.c.b16 %v1113, %v1111
      %v1160 = vpack.c.b16 %v1114, %v1112
      %v1161 = vpack.c.b16 %v1117, %v1115
      %v1162 = vpack.c.b16 %v1118, %v1116
      %v1163 = vpack.c.b16 %v1121, %v1119
      %v1164 = vpack.c.b16 %v1122, %v1120
      %v1165 = vpack.c.b16 %v1125, %v1123
      %v1166 = vpack.c.b16 %v1126, %v1124
      %v1167 = vpack.c.b16 %v1129, %v1127
      %v1168 = vpack.c.b16 %v1130, %v1128
      %v1169 = vpack.c.b16 %v1133, %v1131
      %v1170 = vpack.c.b16 %v1134, %v1132
      %v1171 = vpack.c.b16 %v1137, %v1135
      %v1172 = vpack.c.b16 %v1138, %v1136
      %v1173 = vpack.c.b16 %v1141, %v1139
      %v1174 = vpack.c.b16 %v1142, %v1140
      %1207 = vmatprep.subr.bf16.mxu0 %v1144
      %1208 = vmatpush1.bf16.msra.mxu0 %v1143
      %1209 = vmatprep.subr.bf16.mxu0 %v1146
      %1210 = vmatpush1.bf16.msra.mxu0 %v1145
      %1211 = vmatprep.subr.bf16.mxu0 %v1148
      %1212 = vmatpush1.bf16.msra.mxu0 %v1147
      %1213 = vmatprep.subr.bf16.mxu0 %v1150
      %1214 = vmatpush1.bf16.msra.mxu0 %v1149
      %1215 = vmatprep.subr.bf16.mxu0 %v1152
      %1216 = vmatpush1.bf16.msra.mxu0 %v1151
      %1217 = vmatprep.subr.bf16.mxu0 %v1154
      %1218 = vmatpush1.bf16.msra.mxu0 %v1153
      %1219 = vmatprep.subr.bf16.mxu0 %v1156
      %1220 = vmatpush1.bf16.msra.mxu0 %v1155
      %1221 = vmatprep.subr.bf16.mxu0 %v1158
      %1222 = vmatpush1.bf16.msra.mxu0 %v1157
      %1223 = vmatprep.subr.bf16.mxu0 %v1160
      %1224 = vmatpush1.bf16.msra.mxu0 %v1159
      %1225 = vmatprep.subr.bf16.mxu0 %v1162
      %1226 = vmatpush1.bf16.msra.mxu0 %v1161
      %1227 = vmatprep.subr.bf16.mxu0 %v1164
      %1228 = vmatpush1.bf16.msra.mxu0 %v1163
      %1229 = vmatprep.subr.bf16.mxu0 %v1166
      %1230 = vmatpush1.bf16.msra.mxu0 %v1165
      %1231 = vmatprep.subr.bf16.mxu0 %v1168
      %1232 = vmatpush1.bf16.msra.mxu0 %v1167
      %1233 = vmatprep.subr.bf16.mxu0 %v1170
      %1234 = vmatpush1.bf16.msra.mxu0 %v1169
      %1235 = vmatprep.subr.bf16.mxu0 %v1172
      %1236 = vmatpush1.bf16.msra.mxu0 %v1171
      %1237 = vmatprep.subr.bf16.mxu0 %v1174
      %1238 = vmatpush1.bf16.msra.mxu0 %v1173
      %1239 = vmatprep.mubr.bf16.mxu0 %v986
      %1240 = vmatmul.mubr.bf16.gmra.mrb[0].mxu0 %v985
      %v1241 = vpop.f32.mrb[0].mxu0
      %v1242 = vadd.f32 %v1040, %v1241
      %v1243 = vpop.f32.mrb[0].mxu0
      %v1244 = vadd.f32 %v1044, %v1243
      %v1245 = vpop.f32.mrb[0].mxu0
      %v1246 = vadd.f32 %v1040, %v1245
      %v1247 = vpop.f32.mrb[0].mxu0
      %v1248 = vadd.f32 %v1044, %v1247
      %1249 = vmatprep.mubr.bf16.mxu0 %v988
      %1250 = vmatmul.mubr.bf16.gmra.mrb[0].mxu0 %v987
      %v1251 = vpop.f32.mrb[0].mxu0
      %v1252 = vadd.f32 %v1040, %v1251
      %v1253 = vpop.f32.mrb[0].mxu0
      %v1254 = vadd.f32 %v1044, %v1253
      %v1255 = vpop.f32.mrb[0].mxu0
      %v1256 = vadd.f32 %v1040, %v1255
      %v1257 = vpop.f32.mrb[0].mxu0
      %v1258 = vadd.f32 %v1044, %v1257
      %1259 = vmatprep.mubr.bf16.mxu0 %v990
      %1260 = vmatmul.mubr.bf16.gmra.mrb[0].mxu0 %v989
      %v1261 = vpop.f32.mrb[0].mxu0
      %v1262 = vadd.f32 %v1040, %v1261
      %v1263 = vpop.f32.mrb[0].mxu0
      %v1264 = vadd.f32 %v1044, %v1263
      %v1265 = vpop.f32.mrb[0].mxu0
      %v1266 = vadd.f32 %v1040, %v1265
      %v1267 = vpop.f32.mrb[0].mxu0
      %v1268 = vadd.f32 %v1044, %v1267
      %1269 = vmatprep.mubr.bf16.mxu0 %v992
      %1270 = vmatmul.mubr.bf16.gmra.mrb[0].mxu0 %v991
      %v1271 = vpop.f32.mrb[0].mxu0
      %v1272 = vadd.f32 %v1040, %v1271
      %v1273 = vpop.f32.mrb[0].mxu0
      %v1274 = vadd.f32 %v1044, %v1273
      %v1275 = vpop.f32.mrb[0].mxu0
      %v1276 = vadd.f32 %v1040, %v1275
      %v1277 = vpop.f32.mrb[0].mxu0
      %v1278 = vadd.f32 %v1044, %v1277
      %1279 = vmatprep.mubr.bf16.mxu0 %v994
      %1280 = vmatmul.mubr.bf16.gmra.mrb[0].mxu0 %v993
      %v1281 = vpop.f32.mrb[0].mxu0
      %v1282 = vadd.f32 %v1040, %v1281
      %v1283 = vpop.f32.mrb[0].mxu0
      %v1284 = vadd.f32 %v1044, %v1283
      %v1285 = vpop.f32.mrb[0].mxu0
      %v1286 = vadd.f32 %v1040, %v1285
      %v1287 = vpop.f32.mrb[0].mxu0
      %v1288 = vadd.f32 %v1044, %v1287
      %1289 = vmatprep.mubr.bf16.mxu0 %v996
      %1290 = vmatmul.mubr.bf16.gmra.mrb[0].mxu0 %v995
      %v1291 = vpop.f32.mrb[0].mxu0
      %v1292 = vadd.f32 %v1040, %v1291
      %v1293 = vpop.f32.mrb[0].mxu0
      %v1294 = vadd.f32 %v1044, %v1293
      %v1295 = vpop.f32.mrb[0].mxu0
      %v1296 = vadd.f32 %v1040, %v1295
      %v1297 = vpop.f32.mrb[0].mxu0
      %v1298 = vadd.f32 %v1044, %v1297
      %1299 = vmatprep.mubr.bf16.mxu0 %v998
      %1300 = vmatmul.mubr.bf16.gmra.mrb[0].mxu0 %v997
      %v1301 = vpop.f32.mrb[0].mxu0
      %v1302 = vadd.f32 %v1040, %v1301
      %v1303 = vpop.f32.mrb[0].mxu0
      %v1304 = vadd.f32 %v1044, %v1303
      %v1305 = vpop.f32.mrb[0].mxu0
      %v1306 = vadd.f32 %v1040, %v1305
      %v1307 = vpop.f32.mrb[0].mxu0
      %v1308 = vadd.f32 %v1044, %v1307
      %1309 = vmatprep.mubr.bf16.mxu0 %v1000
      %1310 = vmatmul.mubr.bf16.gmra.mrb[0].mxu0 %v999
      %v1311 = vpop.f32.mrb[0].mxu0
      %v1312 = vadd.f32 %v1040, %v1311
      %v1313 = vpop.f32.mrb[0].mxu0
      %v1314 = vadd.f32 %v1044, %v1313
      %v1315 = vpop.f32.mrb[0].mxu0
      %v1316 = vadd.f32 %v1040, %v1315
      %v1317 = vpop.f32.mrb[0].mxu0
      %v1318 = vadd.f32 %v1044, %v1317
      %1319 = vdwg.mxu0
      %v1320 = vmax.f32 %v1242, 0.0
      %v1321 = vmax.f32 %v1244, 0.0
      %v1322 = vmax.f32 %v1246, 0.0
      %v1323 = vmax.f32 %v1248, 0.0
      %v1324 = vmax.f32 %v1252, 0.0
      %v1325 = vmax.f32 %v1254, 0.0
      %v1326 = vmax.f32 %v1256, 0.0
      %v1327 = vmax.f32 %v1258, 0.0
      %v1328 = vmax.f32 %v1262, 0.0
      %v1329 = vmax.f32 %v1264, 0.0
      %v1330 = vmax.f32 %v1266, 0.0
      %v1331 = vmax.f32 %v1268, 0.0
      %v1332 = vmax.f32 %v1272, 0.0
      %v1333 = vmax.f32 %v1274, 0.0
      %v1334 = vmax.f32 %v1276, 0.0
      %v1335 = vmax.f32 %v1278, 0.0
      %v1336 = vmax.f32 %v1282, 0.0
      %v1337 = vmax.f32 %v1284, 0.0
      %v1338 = vmax.f32 %v1286, 0.0
      %v1339 = vmax.f32 %v1288, 0.0
      %v1340 = vmax.f32 %v1292, 0.0
      %v1341 = vmax.f32 %v1294, 0.0
      %v1342 = vmax.f32 %v1296, 0.0
      %v1343 = vmax.f32 %v1298, 0.0
      %v1344 = vmax.f32 %v1302, 0.0
      %v1345 = vmax.f32 %v1304, 0.0
      %v1346 = vmax.f32 %v1306, 0.0
      %v1347 = vmax.f32 %v1308, 0.0
      %v1348 = vmax.f32 %v1312, 0.0
      %v1349 = vmax.f32 %v1314, 0.0
      %v1350 = vmax.f32 %v1316, 0.0
      %v1351 = vmax.f32 %v1318, 0.0
      %v1352 = vpack.c.bf16 %v1322, %v1320
      %v1353 = vpack.c.bf16 %v1323, %v1321
      %v1354 = vpack.c.bf16 %v1326, %v1324
      %v1355 = vpack.c.bf16 %v1327, %v1325
      %v1356 = vpack.c.bf16 %v1330, %v1328
      %v1357 = vpack.c.bf16 %v1331, %v1329
      %v1358 = vpack.c.bf16 %v1334, %v1332
      %v1359 = vpack.c.bf16 %v1335, %v1333
      %v1360 = vpack.c.bf16 %v1338, %v1336
      %v1361 = vpack.c.bf16 %v1339, %v1337
      %v1362 = vpack.c.bf16 %v1342, %v1340
      %v1363 = vpack.c.bf16 %v1343, %v1341
      %v1364 = vpack.c.bf16 %v1346, %v1344
      %v1365 = vpack.c.bf16 %v1347, %v1345
      %v1366 = vpack.c.bf16 %v1350, %v1348
      %v1367 = vpack.c.bf16 %v1351, %v1349
      %s1368 = scalar_lea.vmem %s1, 512
      %v1369 = vld [vmem:[%s1368] sm:$0xff]
      %v1370 = vld [vmem:[%s1368 + $0x8] sm:$0xff]
      %v1371 = vld [vmem:[%s1368 + $0x10] sm:$0xff]
      %v1372 = vld [vmem:[%s1368 + $0x18] sm:$0xff]
      %v1373 = vld [vmem:[%s1368 + $0x20] sm:$0xff]
      %v1374 = vld [vmem:[%s1368 + $0x28] sm:$0xff]
      %v1375 = vld [vmem:[%s1368 + $0x30] sm:$0xff]
      %v1376 = vld [vmem:[%s1368 + $0x38] sm:$0xff]
      %v1377 = vld [vmem:[%s1368 + $0x40] sm:$0xff]
      %v1378 = vld [vmem:[%s1368 + $0x48] sm:$0xff]
      %v1379 = vld [vmem:[%s1368 + $0x50] sm:$0xff]
      %v1380 = vld [vmem:[%s1368 + $0x58] sm:$0xff]
      %v1381 = vld [vmem:[%s1368 + $0x60] sm:$0xff]
      %v1382 = vld [vmem:[%s1368 + $0x68] sm:$0xff]
      %v1383 = vld [vmem:[%s1368 + $0x70] sm:$0xff]
      %v1384 = vld [vmem:[%s1368 + $0x78] sm:$0xff]
      %v1385 = vld [vmem:[%s1368 + $0x80] sm:$0xff]
      %v1386 = vld [vmem:[%s1368 + $0x88] sm:$0xff]
      %v1387 = vld [vmem:[%s1368 + $0x90] sm:$0xff]
      %v1388 = vld [vmem:[%s1368 + $0x98] sm:$0xff]
      %v1389 = vld [vmem:[%s1368 + $0xa0] sm:$0xff]
      %v1390 = vld [vmem:[%s1368 + $0xa8] sm:$0xff]
      %v1391 = vld [vmem:[%s1368 + $0xb0] sm:$0xff]
      %v1392 = vld [vmem:[%s1368 + $0xb8] sm:$0xff]
      %v1393 = vld [vmem:[%s1368 + $0xc0] sm:$0xff]
      %v1394 = vld [vmem:[%s1368 + $0xc8] sm:$0xff]
      %v1395 = vld [vmem:[%s1368 + $0xd0] sm:$0xff]
      %v1396 = vld [vmem:[%s1368 + $0xd8] sm:$0xff]
      %v1397 = vld [vmem:[%s1368 + $0xe0] sm:$0xff]
      %v1398 = vld [vmem:[%s1368 + $0xe8] sm:$0xff]
      %v1399 = vld [vmem:[%s1368 + $0xf0] sm:$0xff]
      %v1400 = vld [vmem:[%s1368 + $0xf8] sm:$0xff]
      %s1401 = scalar_lea.vmem %s6, 3
      %v1402 = vld [vmem:[%s1401] ss:$8 sm:$0x3]
      %v1404 = vlaneseq
      %v1405 = vshrl.u32 %v1404, 7
      %v1406 = vsub.s32 0, %v1405
      %v1407 = vrot.slane %v1402, %v1406
      %v1408 = vlaneseq
      %v1409 = vshrl.u32 %v1408, 7
      %v1410 = vsub.s32 1, %v1409
      %v1411 = vrot.slane %v1402, %v1410
      %v1446 = vunpack.c.l.b16 %v1369
      %v1447 = vunpack.c.h.b16 %v1369
      %v1448 = vunpack.c.l.b16 %v1370
      %v1449 = vunpack.c.h.b16 %v1370
      %v1450 = vunpack.c.l.b16 %v1371
      %v1451 = vunpack.c.h.b16 %v1371
      %v1452 = vunpack.c.l.b16 %v1372
      %v1453 = vunpack.c.h.b16 %v1372
      %v1454 = vunpack.c.l.b16 %v1373
      %v1455 = vunpack.c.h.b16 %v1373
      %v1456 = vunpack.c.l.b16 %v1374
      %v1457 = vunpack.c.h.b16 %v1374
      %v1458 = vunpack.c.l.b16 %v1375
      %v1459 = vunpack.c.h.b16 %v1375
      %v1460 = vunpack.c.l.b16 %v1376
      %v1461 = vunpack.c.h.b16 %v1376
      %v1462 = vunpack.c.l.b16 %v1377
      %v1463 = vunpack.c.h.b16 %v1377
      %v1464 = vunpack.c.l.b16 %v1378
      %v1465 = vunpack.c.h.b16 %v1378
      %v1466 = vunpack.c.l.b16 %v1379
      %v1467 = vunpack.c.h.b16 %v1379
      %v1468 = vunpack.c.l.b16 %v1380
      %v1469 = vunpack.c.h.b16 %v1380
      %v1470 = vunpack.c.l.b16 %v1381
      %v1471 = vunpack.c.h.b16 %v1381
      %v1472 = vunpack.c.l.b16 %v1382
      %v1473 = vunpack.c.h.b16 %v1382
      %v1474 = vunpack.c.l.b16 %v1383
      %v1475 = vunpack.c.h.b16 %v1383
      %v1476 = vunpack.c.l.b16 %v1384
      %v1477 = vunpack.c.h.b16 %v1384
      %v1478 = vunpack.c.l.b16 %v1385
      %v1479 = vunpack.c.h.b16 %v1385
      %v1480 = vunpack.c.l.b16 %v1386
      %v1481 = vunpack.c.h.b16 %v1386
      %v1482 = vunpack.c.l.b16 %v1387
      %v1483 = vunpack.c.h.b16 %v1387
      %v1484 = vunpack.c.l.b16 %v1388
      %v1485 = vunpack.c.h.b16 %v1388
      %v1486 = vunpack.c.l.b16 %v1389
      %v1487 = vunpack.c.h.b16 %v1389
      %v1488 = vunpack.c.l.b16 %v1390
      %v1489 = vunpack.c.h.b16 %v1390
      %v1490 = vunpack.c.l.b16 %v1391
      %v1491 = vunpack.c.h.b16 %v1391
      %v1492 = vunpack.c.l.b16 %v1392
      %v1493 = vunpack.c.h.b16 %v1392
      %v1494 = vunpack.c.l.b16 %v1393
      %v1495 = vunpack.c.h.b16 %v1393
      %v1496 = vunpack.c.l.b16 %v1394
      %v1497 = vunpack.c.h.b16 %v1394
      %v1498 = vunpack.c.l.b16 %v1395
      %v1499 = vunpack.c.h.b16 %v1395
      %v1500 = vunpack.c.l.b16 %v1396
      %v1501 = vunpack.c.h.b16 %v1396
      %v1502 = vunpack.c.l.b16 %v1397
      %v1503 = vunpack.c.h.b16 %v1397
      %v1504 = vunpack.c.l.b16 %v1398
      %v1505 = vunpack.c.h.b16 %v1398
      %v1506 = vunpack.c.l.b16 %v1399
      %v1507 = vunpack.c.h.b16 %v1399
      %v1508 = vunpack.c.l.b16 %v1400
      %v1509 = vunpack.c.h.b16 %v1400
      %v1510 = vpack.c.b16 %v1448, %v1446
      %v1511 = vpack.c.b16 %v1449, %v1447
      %v1512 = vpack.c.b16 %v1452, %v1450
      %v1513 = vpack.c.b16 %v1453, %v1451
      %v1514 = vpack.c.b16 %v1456, %v1454
      %v1515 = vpack.c.b16 %v1457, %v1455
      %v1516 = vpack.c.b16 %v1460, %v1458
      %v1517 = vpack.c.b16 %v1461, %v1459
      %v1518 = vpack.c.b16 %v1464, %v1462
      %v1519 = vpack.c.b16 %v1465, %v1463
      %v1520 = vpack.c.b16 %v1468, %v1466
      %v1521 = vpack.c.b16 %v1469, %v1467
      %v1522 = vpack.c.b16 %v1472, %v1470
      %v1523 = vpack.c.b16 %v1473, %v1471
      %v1524 = vpack.c.b16 %v1476, %v1474
      %v1525 = vpack.c.b16 %v1477, %v1475
      %v1526 = vpack.c.b16 %v1480, %v1478
      %v1527 = vpack.c.b16 %v1481, %v1479
      %v1528 = vpack.c.b16 %v1484, %v1482
      %v1529 = vpack.c.b16 %v1485, %v1483
      %v1530 = vpack.c.b16 %v1488, %v1486
      %v1531 = vpack.c.b16 %v1489, %v1487
      %v1532 = vpack.c.b16 %v1492, %v1490
      %v1533 = vpack.c.b16 %v1493, %v1491
      %v1534 = vpack.c.b16 %v1496, %v1494
      %v1535 = vpack.c.b16 %v1497, %v1495
      %v1536 = vpack.c.b16 %v1500, %v1498
      %v1537 = vpack.c.b16 %v1501, %v1499
      %v1538 = vpack.c.b16 %v1504, %v1502
      %v1539 = vpack.c.b16 %v1505, %v1503
      %v1540 = vpack.c.b16 %v1508, %v1506
      %v1541 = vpack.c.b16 %v1509, %v1507
      %1574 = vmatprep.subr.bf16.mxu0 %v1511
      %1575 = vmatpush1.bf16.msra.mxu0 %v1510
      %1576 = vmatprep.subr.bf16.mxu0 %v1513
      %1577 = vmatpush1.bf16.msra.mxu0 %v1512
      %1578 = vmatprep.subr.bf16.mxu0 %v1515
      %1579 = vmatpush1.bf16.msra.mxu0 %v1514
      %1580 = vmatprep.subr.bf16.mxu0 %v1517
      %1581 = vmatpush1.bf16.msra.mxu0 %v1516
      %1582 = vmatprep.subr.bf16.mxu0 %v1519
      %1583 = vmatpush1.bf16.msra.mxu0 %v1518
      %1584 = vmatprep.subr.bf16.mxu0 %v1521
      %1585 = vmatpush1.bf16.msra.mxu0 %v1520
      %1586 = vmatprep.subr.bf16.mxu0 %v1523
      %1587 = vmatpush1.bf16.msra.mxu0 %v1522
      %1588 = vmatprep.subr.bf16.mxu0 %v1525
      %1589 = vmatpush1.bf16.msra.mxu0 %v1524
      %1590 = vmatprep.subr.bf16.mxu0 %v1527
      %1591 = vmatpush1.bf16.msra.mxu0 %v1526
      %1592 = vmatprep.subr.bf16.mxu0 %v1529
      %1593 = vmatpush1.bf16.msra.mxu0 %v1528
      %1594 = vmatprep.subr.bf16.mxu0 %v1531
      %1595 = vmatpush1.bf16.msra.mxu0 %v1530
      %1596 = vmatprep.subr.bf16.mxu0 %v1533
      %1597 = vmatpush1.bf16.msra.mxu0 %v1532
      %1598 = vmatprep.subr.bf16.mxu0 %v1535
      %1599 = vmatpush1.bf16.msra.mxu0 %v1534
      %1600 = vmatprep.subr.bf16.mxu0 %v1537
      %1601 = vmatpush1.bf16.msra.mxu0 %v1536
      %1602 = vmatprep.subr.bf16.mxu0 %v1539
      %1603 = vmatpush1.bf16.msra.mxu0 %v1538
      %1604 = vmatprep.subr.bf16.mxu0 %v1541
      %1605 = vmatpush1.bf16.msra.mxu0 %v1540
      %1606 = vmatprep.mubr.bf16.mxu0 %v1353
      %1607 = vmatmul.mubr.bf16.gmra.mrb[0].mxu0 %v1352
      %v1608 = vpop.f32.mrb[0].mxu0
      %v1609 = vadd.f32 %v1407, %v1608
      %v1610 = vpop.f32.mrb[0].mxu0
      %v1611 = vadd.f32 %v1411, %v1610
      %v1612 = vpop.f32.mrb[0].mxu0
      %v1613 = vadd.f32 %v1407, %v1612
      %v1614 = vpop.f32.mrb[0].mxu0
      %v1615 = vadd.f32 %v1411, %v1614
      %1616 = vmatprep.mubr.bf16.mxu0 %v1355
      %1617 = vmatmul.mubr.bf16.gmra.mrb[0].mxu0 %v1354
      %v1618 = vpop.f32.mrb[0].mxu0
      %v1619 = vadd.f32 %v1407, %v1618
      %v1620 = vpop.f32.mrb[0].mxu0
      %v1621 = vadd.f32 %v1411, %v1620
      %v1622 = vpop.f32.mrb[0].mxu0
      %v1623 = vadd.f32 %v1407, %v1622
      %v1624 = vpop.f32.mrb[0].mxu0
      %v1625 = vadd.f32 %v1411, %v1624
      %1626 = vmatprep.mubr.bf16.mxu0 %v1357
      %1627 = vmatmul.mubr.bf16.gmra.mrb[0].mxu0 %v1356
      %v1628 = vpop.f32.mrb[0].mxu0
      %v1629 = vadd.f32 %v1407, %v1628
      %v1630 = vpop.f32.mrb[0].mxu0
      %v1631 = vadd.f32 %v1411, %v1630
      %v1632 = vpop.f32.mrb[0].mxu0
      %v1633 = vadd.f32 %v1407, %v1632
      %v1634 = vpop.f32.mrb[0].mxu0
      %v1635 = vadd.f32 %v1411, %v1634
      %1636 = vmatprep.mubr.bf16.mxu0 %v1359
      %1637 = vmatmul.mubr.bf16.gmra.mrb[0].mxu0 %v1358
      %v1638 = vpop.f32.mrb[0].mxu0
      %v1639 = vadd.f32 %v1407, %v1638
      %v1640 = vpop.f32.mrb[0].mxu0
      %v1641 = vadd.f32 %v1411, %v1640
      %v1642 = vpop.f32.mrb[0].mxu0
      %v1643 = vadd.f32 %v1407, %v1642
      %v1644 = vpop.f32.mrb[0].mxu0
      %v1645 = vadd.f32 %v1411, %v1644
      %1646 = vmatprep.mubr.bf16.mxu0 %v1361
      %1647 = vmatmul.mubr.bf16.gmra.mrb[0].mxu0 %v1360
      %v1648 = vpop.f32.mrb[0].mxu0
      %v1649 = vadd.f32 %v1407, %v1648
      %v1650 = vpop.f32.mrb[0].mxu0
      %v1651 = vadd.f32 %v1411, %v1650
      %v1652 = vpop.f32.mrb[0].mxu0
      %v1653 = vadd.f32 %v1407, %v1652
      %v1654 = vpop.f32.mrb[0].mxu0
      %v1655 = vadd.f32 %v1411, %v1654
      %1656 = vmatprep.mubr.bf16.mxu0 %v1363
      %1657 = vmatmul.mubr.bf16.gmra.mrb[0].mxu0 %v1362
      %v1658 = vpop.f32.mrb[0].mxu0
      %v1659 = vadd.f32 %v1407, %v1658
      %v1660 = vpop.f32.mrb[0].mxu0
      %v1661 = vadd.f32 %v1411, %v1660
      %v1662 = vpop.f32.mrb[0].mxu0
      %v1663 = vadd.f32 %v1407, %v1662
      %v1664 = vpop.f32.mrb[0].mxu0
      %v1665 = vadd.f32 %v1411, %v1664
      %1666 = vmatprep.mubr.bf16.mxu0 %v1365
      %1667 = vmatmul.mubr.bf16.gmra.mrb[0].mxu0 %v1364
      %v1668 = vpop.f32.mrb[0].mxu0
      %v1669 = vadd.f32 %v1407, %v1668
      %v1670 = vpop.f32.mrb[0].mxu0
      %v1671 = vadd.f32 %v1411, %v1670
      %v1672 = vpop.f32.mrb[0].mxu0
      %v1673 = vadd.f32 %v1407, %v1672
      %v1674 = vpop.f32.mrb[0].mxu0
      %v1675 = vadd.f32 %v1411, %v1674
      %1676 = vmatprep.mubr.bf16.mxu0 %v1367
      %1677 = vmatmul.mubr.bf16.gmra.mrb[0].mxu0 %v1366
      %v1678 = vpop.f32.mrb[0].mxu0
      %v1679 = vadd.f32 %v1407, %v1678
      %v1680 = vpop.f32.mrb[0].mxu0
      %v1681 = vadd.f32 %v1411, %v1680
      %v1682 = vpop.f32.mrb[0].mxu0
      %v1683 = vadd.f32 %v1407, %v1682
      %v1684 = vpop.f32.mrb[0].mxu0
      %v1685 = vadd.f32 %v1411, %v1684
      %1686 = vdwg.mxu0
      %v1687 = vmax.f32 %v1609, 0.0
      %v1688 = vmax.f32 %v1611, 0.0
      %v1689 = vmax.f32 %v1613, 0.0
      %v1690 = vmax.f32 %v1615, 0.0
      %v1691 = vmax.f32 %v1619, 0.0
      %v1692 = vmax.f32 %v1621, 0.0
      %v1693 = vmax.f32 %v1623, 0.0
      %v1694 = vmax.f32 %v1625, 0.0
      %v1695 = vmax.f32 %v1629, 0.0
      %v1696 = vmax.f32 %v1631, 0.0
      %v1697 = vmax.f32 %v1633, 0.0
      %v1698 = vmax.f32 %v1635, 0.0
      %v1699 = vmax.f32 %v1639, 0.0
      %v1700 = vmax.f32 %v1641, 0.0
      %v1701 = vmax.f32 %v1643, 0.0
      %v1702 = vmax.f32 %v1645, 0.0
      %v1703 = vmax.f32 %v1649, 0.0
      %v1704 = vmax.f32 %v1651, 0.0
      %v1705 = vmax.f32 %v1653, 0.0
      %v1706 = vmax.f32 %v1655, 0.0
      %v1707 = vmax.f32 %v1659, 0.0
      %v1708 = vmax.f32 %v1661, 0.0
      %v1709 = vmax.f32 %v1663, 0.0
      %v1710 = vmax.f32 %v1665, 0.0
      %v1711 = vmax.f32 %v1669, 0.0
      %v1712 = vmax.f32 %v1671, 0.0
      %v1713 = vmax.f32 %v1673, 0.0
      %v1714 = vmax.f32 %v1675, 0.0
      %v1715 = vmax.f32 %v1679, 0.0
      %v1716 = vmax.f32 %v1681, 0.0
      %v1717 = vmax.f32 %v1683, 0.0
      %v1718 = vmax.f32 %v1685, 0.0
      %v1719 = vpack.c.bf16 %v1689, %v1687
      %v1720 = vpack.c.bf16 %v1690, %v1688
      %v1721 = vpack.c.bf16 %v1693, %v1691
      %v1722 = vpack.c.bf16 %v1694, %v1692
      %v1723 = vpack.c.bf16 %v1697, %v1695
      %v1724 = vpack.c.bf16 %v1698, %v1696
      %v1725 = vpack.c.bf16 %v1701, %v1699
      %v1726 = vpack.c.bf16 %v1702, %v1700
      %v1727 = vpack.c.bf16 %v1705, %v1703
      %v1728 = vpack.c.bf16 %v1706, %v1704
      %v1729 = vpack.c.bf16 %v1709, %v1707
      %v1730 = vpack.c.bf16 %v1710, %v1708
      %v1731 = vpack.c.bf16 %v1713, %v1711
      %v1732 = vpack.c.bf16 %v1714, %v1712
      %v1733 = vpack.c.bf16 %v1717, %v1715
      %v1734 = vpack.c.bf16 %v1718, %v1716
      %s1735 = scalar_lea.vmem %s1, 768
      %v1736 = vld [vmem:[%s1735] sm:$0xff]
      %v1737 = vld [vmem:[%s1735 + $0x8] sm:$0xff]
      %v1738 = vld [vmem:[%s1735 + $0x10] sm:$0xff]
      %v1739 = vld [vmem:[%s1735 + $0x18] sm:$0xff]
      %v1740 = vld [vmem:[%s1735 + $0x20] sm:$0xff]
      %v1741 = vld [vmem:[%s1735 + $0x28] sm:$0xff]
      %v1742 = vld [vmem:[%s1735 + $0x30] sm:$0xff]
      %v1743 = vld [vmem:[%s1735 + $0x38] sm:$0xff]
      %v1744 = vld [vmem:[%s1735 + $0x40] sm:$0xff]
      %v1745 = vld [vmem:[%s1735 + $0x48] sm:$0xff]
      %v1746 = vld [vmem:[%s1735 + $0x50] sm:$0xff]
      %v1747 = vld [vmem:[%s1735 + $0x58] sm:$0xff]
      %v1748 = vld [vmem:[%s1735 + $0x60] sm:$0xff]
      %v1749 = vld [vmem:[%s1735 + $0x68] sm:$0xff]
      %v1750 = vld [vmem:[%s1735 + $0x70] sm:$0xff]
      %v1751 = vld [vmem:[%s1735 + $0x78] sm:$0xff]
      %v1752 = vld [vmem:[%s1735 + $0x80] sm:$0xff]
      %v1753 = vld [vmem:[%s1735 + $0x88] sm:$0xff]
      %v1754 = vld [vmem:[%s1735 + $0x90] sm:$0xff]
      %v1755 = vld [vmem:[%s1735 + $0x98] sm:$0xff]
      %v1756 = vld [vmem:[%s1735 + $0xa0] sm:$0xff]
      %v1757 = vld [vmem:[%s1735 + $0xa8] sm:$0xff]
      %v1758 = vld [vmem:[%s1735 + $0xb0] sm:$0xff]
      %v1759 = vld [vmem:[%s1735 + $0xb8] sm:$0xff]
      %v1760 = vld [vmem:[%s1735 + $0xc0] sm:$0xff]
      %v1761 = vld [vmem:[%s1735 + $0xc8] sm:$0xff]
      %v1762 = vld [vmem:[%s1735 + $0xd0] sm:$0xff]
      %v1763 = vld [vmem:[%s1735 + $0xd8] sm:$0xff]
      %v1764 = vld [vmem:[%s1735 + $0xe0] sm:$0xff]
      %v1765 = vld [vmem:[%s1735 + $0xe8] sm:$0xff]
      %v1766 = vld [vmem:[%s1735 + $0xf0] sm:$0xff]
      %v1767 = vld [vmem:[%s1735 + $0xf8] sm:$0xff]
      %s1768 = scalar_lea.vmem %s6, 4
      %v1769 = vld [vmem:[%s1768] ss:$8 sm:$0x3]
      %v1771 = vlaneseq
      %v1772 = vshrl.u32 %v1771, 7
      %v1773 = vsub.s32 0, %v1772
      %v1774 = vrot.slane %v1769, %v1773
      %v1775 = vlaneseq
      %v1776 = vshrl.u32 %v1775, 7
      %v1777 = vsub.s32 1, %v1776
      %v1778 = vrot.slane %v1769, %v1777
      %v1813 = vunpack.c.l.b16 %v1736
      %v1814 = vunpack.c.h.b16 %v1736
      %v1815 = vunpack.c.l.b16 %v1737
      %v1816 = vunpack.c.h.b16 %v1737
      %v1817 = vunpack.c.l.b16 %v1738
      %v1818 = vunpack.c.h.b16 %v1738
      %v1819 = vunpack.c.l.b16 %v1739
      %v1820 = vunpack.c.h.b16 %v1739
      %v1821 = vunpack.c.l.b16 %v1740
      %v1822 = vunpack.c.h.b16 %v1740
      %v1823 = vunpack.c.l.b16 %v1741
      %v1824 = vunpack.c.h.b16 %v1741
      %v1825 = vunpack.c.l.b16 %v1742
      %v1826 = vunpack.c.h.b16 %v1742
      %v1827 = vunpack.c.l.b16 %v1743
      %v1828 = vunpack.c.h.b16 %v1743
      %v1829 = vunpack.c.l.b16 %v1744
      %v1830 = vunpack.c.h.b16 %v1744
      %v1831 = vunpack.c.l.b16 %v1745
      %v1832 = vunpack.c.h.b16 %v1745
      %v1833 = vunpack.c.l.b16 %v1746
      %v1834 = vunpack.c.h.b16 %v1746
      %v1835 = vunpack.c.l.b16 %v1747
      %v1836 = vunpack.c.h.b16 %v1747
      %v1837 = vunpack.c.l.b16 %v1748
      %v1838 = vunpack.c.h.b16 %v1748
      %v1839 = vunpack.c.l.b16 %v1749
      %v1840 = vunpack.c.h.b16 %v1749
      %v1841 = vunpack.c.l.b16 %v1750
      %v1842 = vunpack.c.h.b16 %v1750
      %v1843 = vunpack.c.l.b16 %v1751
      %v1844 = vunpack.c.h.b16 %v1751
      %v1845 = vunpack.c.l.b16 %v1752
      %v1846 = vunpack.c.h.b16 %v1752
      %v1847 = vunpack.c.l.b16 %v1753
      %v1848 = vunpack.c.h.b16 %v1753
      %v1849 = vunpack.c.l.b16 %v1754
      %v1850 = vunpack.c.h.b16 %v1754
      %v1851 = vunpack.c.l.b16 %v1755
      %v1852 = vunpack.c.h.b16 %v1755
      %v1853 = vunpack.c.l.b16 %v1756
      %v1854 = vunpack.c.h.b16 %v1756
      %v1855 = vunpack.c.l.b16 %v1757
      %v1856 = vunpack.c.h.b16 %v1757
      %v1857 = vunpack.c.l.b16 %v1758
      %v1858 = vunpack.c.h.b16 %v1758
      %v1859 = vunpack.c.l.b16 %v1759
      %v1860 = vunpack.c.h.b16 %v1759
      %v1861 = vunpack.c.l.b16 %v1760
      %v1862 = vunpack.c.h.b16 %v1760
      %v1863 = vunpack.c.l.b16 %v1761
      %v1864 = vunpack.c.h.b16 %v1761
      %v1865 = vunpack.c.l.b16 %v1762
      %v1866 = vunpack.c.h.b16 %v1762
      %v1867 = vunpack.c.l.b16 %v1763
      %v1868 = vunpack.c.h.b16 %v1763
      %v1869 = vunpack.c.l.b16 %v1764
      %v1870 = vunpack.c.h.b16 %v1764
      %v1871 = vunpack.c.l.b16 %v1765
      %v1872 = vunpack.c.h.b16 %v1765
      %v1873 = vunpack.c.l.b16 %v1766
      %v1874 = vunpack.c.h.b16 %v1766
      %v1875 = vunpack.c.l.b16 %v1767
      %v1876 = vunpack.c.h.b16 %v1767
      %v1877 = vpack.c.b16 %v1815, %v1813
      %v1878 = vpack.c.b16 %v1816, %v1814
      %v1879 = vpack.c.b16 %v1819, %v1817
      %v1880 = vpack.c.b16 %v1820, %v1818
      %v1881 = vpack.c.b16 %v1823, %v1821
      %v1882 = vpack.c.b16 %v1824, %v1822
      %v1883 = vpack.c.b16 %v1827, %v1825
      %v1884 = vpack.c.b16 %v1828, %v1826
      %v1885 = vpack.c.b16 %v1831, %v1829
      %v1886 = vpack.c.b16 %v1832, %v1830
      %v1887 = vpack.c.b16 %v1835, %v1833
      %v1888 = vpack.c.b16 %v1836, %v1834
      %v1889 = vpack.c.b16 %v1839, %v1837
      %v1890 = vpack.c.b16 %v1840, %v1838
      %v1891 = vpack.c.b16 %v1843, %v1841
      %v1892 = vpack.c.b16 %v1844, %v1842
      %v1893 = vpack.c.b16 %v1847, %v1845
      %v1894 = vpack.c.b16 %v1848, %v1846
      %v1895 = vpack.c.b16 %v1851, %v1849
      %v1896 = vpack.c.b16 %v1852, %v1850
      %v1897 = vpack.c.b16 %v1855, %v1853
      %v1898 = vpack.c.b16 %v1856, %v1854
      %v1899 = vpack.c.b16 %v1859, %v1857
      %v1900 = vpack.c.b16 %v1860, %v1858
      %v1901 = vpack.c.b16 %v1863, %v1861
      %v1902 = vpack.c.b16 %v1864, %v1862
      %v1903 = vpack.c.b16 %v1867, %v1865
      %v1904 = vpack.c.b16 %v1868, %v1866
      %v1905 = vpack.c.b16 %v1871, %v1869
      %v1906 = vpack.c.b16 %v1872, %v1870
      %v1907 = vpack.c.b16 %v1875, %v1873
      %v1908 = vpack.c.b16 %v1876, %v1874
      %1941 = vmatprep.subr.bf16.mxu0 %v1878
      %1942 = vmatpush1.bf16.msra.mxu0 %v1877
      %1943 = vmatprep.subr.bf16.mxu0 %v1880
      %1944 = vmatpush1.bf16.msra.mxu0 %v1879
      %1945 = vmatprep.subr.bf16.mxu0 %v1882
      %1946 = vmatpush1.bf16.msra.mxu0 %v1881
      %1947 = vmatprep.subr.bf16.mxu0 %v1884
      %1948 = vmatpush1.bf16.msra.mxu0 %v1883
      %1949 = vmatprep.subr.bf16.mxu0 %v1886
      %1950 = vmatpush1.bf16.msra.mxu0 %v1885
      %1951 = vmatprep.subr.bf16.mxu0 %v1888
      %1952 = vmatpush1.bf16.msra.mxu0 %v1887
      %1953 = vmatprep.subr.bf16.mxu0 %v1890
      %1954 = vmatpush1.bf16.msra.mxu0 %v1889
      %1955 = vmatprep.subr.bf16.mxu0 %v1892
      %1956 = vmatpush1.bf16.msra.mxu0 %v1891
      %1957 = vmatprep.subr.bf16.mxu0 %v1894
      %1958 = vmatpush1.bf16.msra.mxu0 %v1893
      %1959 = vmatprep.subr.bf16.mxu0 %v1896
      %1960 = vmatpush1.bf16.msra.mxu0 %v1895
      %1961 = vmatprep.subr.bf16.mxu0 %v1898
      %1962 = vmatpush1.bf16.msra.mxu0 %v1897
      %1963 = vmatprep.subr.bf16.mxu0 %v1900
      %1964 = vmatpush1.bf16.msra.mxu0 %v1899
      %1965 = vmatprep.subr.bf16.mxu0 %v1902
      %1966 = vmatpush1.bf16.msra.mxu0 %v1901
      %1967 = vmatprep.subr.bf16.mxu0 %v1904
      %1968 = vmatpush1.bf16.msra.mxu0 %v1903
      %1969 = vmatprep.subr.bf16.mxu0 %v1906
      %1970 = vmatpush1.bf16.msra.mxu0 %v1905
      %1971 = vmatprep.subr.bf16.mxu0 %v1908
      %1972 = vmatpush1.bf16.msra.mxu0 %v1907
      %1973 = vmatprep.mubr.bf16.mxu0 %v1720
      %1974 = vmatmul.mubr.bf16.gmra.mrb[0].mxu0 %v1719
      %v1975 = vpop.f32.mrb[0].mxu0
      %v1976 = vadd.f32 %v1774, %v1975
      %v1977 = vpop.f32.mrb[0].mxu0
      %v1978 = vadd.f32 %v1778, %v1977
      %v1979 = vpop.f32.mrb[0].mxu0
      %v1980 = vadd.f32 %v1774, %v1979
      %v1981 = vpop.f32.mrb[0].mxu0
      %v1982 = vadd.f32 %v1778, %v1981
      %1983 = vmatprep.mubr.bf16.mxu0 %v1722
      %1984 = vmatmul.mubr.bf16.gmra.mrb[0].mxu0 %v1721
      %v1985 = vpop.f32.mrb[0].mxu0
      %v1986 = vadd.f32 %v1774, %v1985
      %v1987 = vpop.f32.mrb[0].mxu0
      %v1988 = vadd.f32 %v1778, %v1987
      %v1989 = vpop.f32.mrb[0].mxu0
      %v1990 = vadd.f32 %v1774, %v1989
      %v1991 = vpop.f32.mrb[0].mxu0
      %v1992 = vadd.f32 %v1778, %v1991
      %1993 = vmatprep.mubr.bf16.mxu0 %v1724
      %1994 = vmatmul.mubr.bf16.gmra.mrb[0].mxu0 %v1723
      %v1995 = vpop.f32.mrb[0].mxu0
      %v1996 = vadd.f32 %v1774, %v1995
      %v1997 = vpop.f32.mrb[0].mxu0
      %v1998 = vadd.f32 %v1778, %v1997
      %v1999 = vpop.f32.mrb[0].mxu0
      %v2000 = vadd.f32 %v1774, %v1999
      %v2001 = vpop.f32.mrb[0].mxu0
      %v2002 = vadd.f32 %v1778, %v2001
      %2003 = vmatprep.mubr.bf16.mxu0 %v1726
      %2004 = vmatmul.mubr.bf16.gmra.mrb[0].mxu0 %v1725
      %v2005 = vpop.f32.mrb[0].mxu0
      %v2006 = vadd.f32 %v1774, %v2005
      %v2007 = vpop.f32.mrb[0].mxu0
      %v2008 = vadd.f32 %v1778, %v2007
      %v2009 = vpop.f32.mrb[0].mxu0
      %v2010 = vadd.f32 %v1774, %v2009
      %v2011 = vpop.f32.mrb[0].mxu0
      %v2012 = vadd.f32 %v1778, %v2011
      %2013 = vmatprep.mubr.bf16.mxu0 %v1728
      %2014 = vmatmul.mubr.bf16.gmra.mrb[0].mxu0 %v1727
      %v2015 = vpop.f32.mrb[0].mxu0
      %v2016 = vadd.f32 %v1774, %v2015
      %v2017 = vpop.f32.mrb[0].mxu0
      %v2018 = vadd.f32 %v1778, %v2017
      %v2019 = vpop.f32.mrb[0].mxu0
      %v2020 = vadd.f32 %v1774, %v2019
      %v2021 = vpop.f32.mrb[0].mxu0
      %v2022 = vadd.f32 %v1778, %v2021
      %2023 = vmatprep.mubr.bf16.mxu0 %v1730
      %2024 = vmatmul.mubr.bf16.gmra.mrb[0].mxu0 %v1729
      %v2025 = vpop.f32.mrb[0].mxu0
      %v2026 = vadd.f32 %v1774, %v2025
      %v2027 = vpop.f32.mrb[0].mxu0
      %v2028 = vadd.f32 %v1778, %v2027
      %v2029 = vpop.f32.mrb[0].mxu0
      %v2030 = vadd.f32 %v1774, %v2029
      %v2031 = vpop.f32.mrb[0].mxu0
      %v2032 = vadd.f32 %v1778, %v2031
      %2033 = vmatprep.mubr.bf16.mxu0 %v1732
      %2034 = vmatmul.mubr.bf16.gmra.mrb[0].mxu0 %v1731
      %v2035 = vpop.f32.mrb[0].mxu0
      %v2036 = vadd.f32 %v1774, %v2035
      %v2037 = vpop.f32.mrb[0].mxu0
      %v2038 = vadd.f32 %v1778, %v2037
      %v2039 = vpop.f32.mrb[0].mxu0
      %v2040 = vadd.f32 %v1774, %v2039
      %v2041 = vpop.f32.mrb[0].mxu0
      %v2042 = vadd.f32 %v1778, %v2041
      %2043 = vmatprep.mubr.bf16.mxu0 %v1734
      %2044 = vmatmul.mubr.bf16.gmra.mrb[0].mxu0 %v1733
      %v2045 = vpop.f32.mrb[0].mxu0
      %v2046 = vadd.f32 %v1774, %v2045
      %v2047 = vpop.f32.mrb[0].mxu0
      %v2048 = vadd.f32 %v1778, %v2047
      %v2049 = vpop.f32.mrb[0].mxu0
      %v2050 = vadd.f32 %v1774, %v2049
      %v2051 = vpop.f32.mrb[0].mxu0
      %v2052 = vadd.f32 %v1778, %v2051
      %2053 = vdwg.mxu0
      %v2054 = vmax.f32 %v1976, 0.0
      %v2055 = vmax.f32 %v1978, 0.0
      %v2056 = vmax.f32 %v1980, 0.0
      %v2057 = vmax.f32 %v1982, 0.0
      %v2058 = vmax.f32 %v1986, 0.0
      %v2059 = vmax.f32 %v1988, 0.0
      %v2060 = vmax.f32 %v1990, 0.0
      %v2061 = vmax.f32 %v1992, 0.0
      %v2062 = vmax.f32 %v1996, 0.0
      %v2063 = vmax.f32 %v1998, 0.0
      %v2064 = vmax.f32 %v2000, 0.0
      %v2065 = vmax.f32 %v2002, 0.0
      %v2066 = vmax.f32 %v2006, 0.0
      %v2067 = vmax.f32 %v2008, 0.0
      %v2068 = vmax.f32 %v2010, 0.0
      %v2069 = vmax.f32 %v2012, 0.0
      %v2070 = vmax.f32 %v2016, 0.0
      %v2071 = vmax.f32 %v2018, 0.0
      %v2072 = vmax.f32 %v2020, 0.0
      %v2073 = vmax.f32 %v2022, 0.0
      %v2074 = vmax.f32 %v2026, 0.0
      %v2075 = vmax.f32 %v2028, 0.0
      %v2076 = vmax.f32 %v2030, 0.0
      %v2077 = vmax.f32 %v2032, 0.0
      %v2078 = vmax.f32 %v2036, 0.0
      %v2079 = vmax.f32 %v2038, 0.0
      %v2080 = vmax.f32 %v2040, 0.0
      %v2081 = vmax.f32 %v2042, 0.0
      %v2082 = vmax.f32 %v2046, 0.0
      %v2083 = vmax.f32 %v2048, 0.0
      %v2084 = vmax.f32 %v2050, 0.0
      %v2085 = vmax.f32 %v2052, 0.0
      %v2086 = vpack.c.bf16 %v2056, %v2054
      %v2087 = vpack.c.bf16 %v2057, %v2055
      %v2088 = vpack.c.bf16 %v2060, %v2058
      %v2089 = vpack.c.bf16 %v2061, %v2059
      %v2090 = vpack.c.bf16 %v2064, %v2062
      %v2091 = vpack.c.bf16 %v2065, %v2063
      %v2092 = vpack.c.bf16 %v2068, %v2066
      %v2093 = vpack.c.bf16 %v2069, %v2067
      %v2094 = vpack.c.bf16 %v2072, %v2070
      %v2095 = vpack.c.bf16 %v2073, %v2071
      %v2096 = vpack.c.bf16 %v2076, %v2074
      %v2097 = vpack.c.bf16 %v2077, %v2075
      %v2098 = vpack.c.bf16 %v2080, %v2078
      %v2099 = vpack.c.bf16 %v2081, %v2079
      %v2100 = vpack.c.bf16 %v2084, %v2082
      %v2101 = vpack.c.bf16 %v2085, %v2083
      %s2102 = scalar_lea.vmem %s1, 1024
      %v2103 = vld [vmem:[%s2102] sm:$0xff]
      %v2104 = vld [vmem:[%s2102 + $0x8] sm:$0xff]
      %v2105 = vld [vmem:[%s2102 + $0x10] sm:$0xff]
      %v2106 = vld [vmem:[%s2102 + $0x18] sm:$0xff]
      %v2107 = vld [vmem:[%s2102 + $0x20] sm:$0xff]
      %v2108 = vld [vmem:[%s2102 + $0x28] sm:$0xff]
      %v2109 = vld [vmem:[%s2102 + $0x30] sm:$0xff]
      %v2110 = vld [vmem:[%s2102 + $0x38] sm:$0xff]
      %v2111 = vld [vmem:[%s2102 + $0x40] sm:$0xff]
      %v2112 = vld [vmem:[%s2102 + $0x48] sm:$0xff]
      %v2113 = vld [vmem:[%s2102 + $0x50] sm:$0xff]
      %v2114 = vld [vmem:[%s2102 + $0x58] sm:$0xff]
      %v2115 = vld [vmem:[%s2102 + $0x60] sm:$0xff]
      %v2116 = vld [vmem:[%s2102 + $0x68] sm:$0xff]
      %v2117 = vld [vmem:[%s2102 + $0x70] sm:$0xff]
      %v2118 = vld [vmem:[%s2102 + $0x78] sm:$0xff]
      %v2119 = vld [vmem:[%s2102 + $0x80] sm:$0xff]
      %v2120 = vld [vmem:[%s2102 + $0x88] sm:$0xff]
      %v2121 = vld [vmem:[%s2102 + $0x90] sm:$0xff]
      %v2122 = vld [vmem:[%s2102 + $0x98] sm:$0xff]
      %v2123 = vld [vmem:[%s2102 + $0xa0] sm:$0xff]
      %v2124 = vld [vmem:[%s2102 + $0xa8] sm:$0xff]
      %v2125 = vld [vmem:[%s2102 + $0xb0] sm:$0xff]
      %v2126 = vld [vmem:[%s2102 + $0xb8] sm:$0xff]
      %v2127 = vld [vmem:[%s2102 + $0xc0] sm:$0xff]
      %v2128 = vld [vmem:[%s2102 + $0xc8] sm:$0xff]
      %v2129 = vld [vmem:[%s2102 + $0xd0] sm:$0xff]
      %v2130 = vld [vmem:[%s2102 + $0xd8] sm:$0xff]
      %v2131 = vld [vmem:[%s2102 + $0xe0] sm:$0xff]
      %v2132 = vld [vmem:[%s2102 + $0xe8] sm:$0xff]
      %v2133 = vld [vmem:[%s2102 + $0xf0] sm:$0xff]
      %v2134 = vld [vmem:[%s2102 + $0xf8] sm:$0xff]
      %s2135 = scalar_lea.vmem %s2, 128
      %v2136 = vld [vmem:[%s2135] sm:$0xff]
      %v2137 = vld [vmem:[%s2135 + $0x8] sm:$0xff]
      %v2138 = vld [vmem:[%s2135 + $0x10] sm:$0xff]
      %v2139 = vld [vmem:[%s2135 + $0x18] sm:$0xff]
      %v2140 = vld [vmem:[%s2135 + $0x20] sm:$0xff]
      %v2141 = vld [vmem:[%s2135 + $0x28] sm:$0xff]
      %v2142 = vld [vmem:[%s2135 + $0x30] sm:$0xff]
      %v2143 = vld [vmem:[%s2135 + $0x38] sm:$0xff]
      %v2144 = vld [vmem:[%s2135 + $0x40] sm:$0xff]
      %v2145 = vld [vmem:[%s2135 + $0x48] sm:$0xff]
      %v2146 = vld [vmem:[%s2135 + $0x50] sm:$0xff]
      %v2147 = vld [vmem:[%s2135 + $0x58] sm:$0xff]
      %v2148 = vld [vmem:[%s2135 + $0x60] sm:$0xff]
      %v2149 = vld [vmem:[%s2135 + $0x68] sm:$0xff]
      %v2150 = vld [vmem:[%s2135 + $0x70] sm:$0xff]
      %v2151 = vld [vmem:[%s2135 + $0x78] sm:$0xff]
      %v2168 = vunpack.c.l.b16 %v2136
      %v2169 = vunpack.c.h.b16 %v2136
      %v2170 = vunpack.c.l.b16 %v2137
      %v2171 = vunpack.c.h.b16 %v2137
      %v2172 = vunpack.c.l.b16 %v2138
      %v2173 = vunpack.c.h.b16 %v2138
      %v2174 = vunpack.c.l.b16 %v2139
      %v2175 = vunpack.c.h.b16 %v2139
      %v2176 = vunpack.c.l.b16 %v2140
      %v2177 = vunpack.c.h.b16 %v2140
      %v2178 = vunpack.c.l.b16 %v2141
      %v2179 = vunpack.c.h.b16 %v2141
      %v2180 = vunpack.c.l.b16 %v2142
      %v2181 = vunpack.c.h.b16 %v2142
      %v2182 = vunpack.c.l.b16 %v2143
      %v2183 = vunpack.c.h.b16 %v2143
      %v2184 = vunpack.c.l.b16 %v2144
      %v2185 = vunpack.c.h.b16 %v2144
      %v2186 = vunpack.c.l.b16 %v2145
      %v2187 = vunpack.c.h.b16 %v2145
      %v2188 = vunpack.c.l.b16 %v2146
      %v2189 = vunpack.c.h.b16 %v2146
      %v2190 = vunpack.c.l.b16 %v2147
      %v2191 = vunpack.c.h.b16 %v2147
      %v2192 = vunpack.c.l.b16 %v2148
      %v2193 = vunpack.c.h.b16 %v2148
      %v2194 = vunpack.c.l.b16 %v2149
      %v2195 = vunpack.c.h.b16 %v2149
      %v2196 = vunpack.c.l.b16 %v2150
      %v2197 = vunpack.c.h.b16 %v2150
      %v2198 = vunpack.c.l.b16 %v2151
      %v2199 = vunpack.c.h.b16 %v2151
      %v2200 = vpack.c.b16 %v2170, %v2168
      %v2201 = vpack.c.b16 %v2171, %v2169
      %v2202 = vpack.c.b16 %v2174, %v2172
      %v2203 = vpack.c.b16 %v2175, %v2173
      %v2204 = vpack.c.b16 %v2178, %v2176
      %v2205 = vpack.c.b16 %v2179, %v2177
      %v2206 = vpack.c.b16 %v2182, %v2180
      %v2207 = vpack.c.b16 %v2183, %v2181
      %v2208 = vpack.c.b16 %v2186, %v2184
      %v2209 = vpack.c.b16 %v2187, %v2185
      %v2210 = vpack.c.b16 %v2190, %v2188
      %v2211 = vpack.c.b16 %v2191, %v2189
      %v2212 = vpack.c.b16 %v2194, %v2192
      %v2213 = vpack.c.b16 %v2195, %v2193
      %v2214 = vpack.c.b16 %v2198, %v2196
      %v2215 = vpack.c.b16 %v2199, %v2197
      %2232 = vmatprep.subr.bf16.mxu0 %v2201
      %2233 = vmatpush1.bf16.msra.mxu0 %v2200
      %2234 = vmatprep.subr.bf16.mxu0 %v2203
      %2235 = vmatpush1.bf16.msra.mxu0 %v2202
      %2236 = vmatprep.subr.bf16.mxu0 %v2205
      %2237 = vmatpush1.bf16.msra.mxu0 %v2204
      %2238 = vmatprep.subr.bf16.mxu0 %v2207
      %2239 = vmatpush1.bf16.msra.mxu0 %v2206
      %2240 = vmatprep.subr.bf16.mxu0 %v2209
      %2241 = vmatpush1.bf16.msra.mxu0 %v2208
      %2242 = vmatprep.subr.bf16.mxu0 %v2211
      %2243 = vmatpush1.bf16.msra.mxu0 %v2210
      %2244 = vmatprep.subr.bf16.mxu0 %v2213
      %2245 = vmatpush1.bf16.msra.mxu0 %v2212
      %2246 = vmatprep.subr.bf16.mxu0 %v2215
      %2247 = vmatpush1.bf16.msra.mxu0 %v2214
      %2248 = vmatprep.subr.bf16.mxu0 0
      %2249 = vmatpush1.bf16.msra.mxu0 0
      %2250 = vmatprep.subr.bf16.mxu0 0
      %2251 = vmatpush1.bf16.msra.mxu0 0
      %2252 = vmatprep.subr.bf16.mxu0 0
      %2253 = vmatpush1.bf16.msra.mxu0 0
      %2254 = vmatprep.subr.bf16.mxu0 0
      %2255 = vmatpush1.bf16.msra.mxu0 0
      %2256 = vmatprep.subr.bf16.mxu0 0
      %2257 = vmatpush1.bf16.msra.mxu0 0
      %2258 = vmatprep.subr.bf16.mxu0 0
      %2259 = vmatpush1.bf16.msra.mxu0 0
      %2260 = vmatprep.subr.bf16.mxu0 0
      %2261 = vmatpush1.bf16.msra.mxu0 0
      %2262 = vmatprep.subr.bf16.mxu0 0
      %2263 = vmatpush1.bf16.msra.mxu0 0
      %2264 = vmatprep.mubr.bf16.mxu0 0
      %2265 = vmatmul.mubr.bf16.gmra.mrb[0].mxu0 %v378
      %v2266 = vpop.f32.mrb[0].mxu0
      %v2267 = vadd.f32 0.0, %v2266
      %v2268 = vpop.f32.mrb[0].mxu0
      %v2269 = vadd.f32 0.0, %v2268
      %v2270 = vpop.f32.mrb[0].mxu0
      %v2271 = vadd.f32 0.0, %v2270
      %v2272 = vpop.f32.mrb[0].mxu0
      %v2273 = vadd.f32 0.0, %v2272
      %2274 = vmatprep.mubr.bf16.mxu0 0
      %2275 = vmatmul.mubr.bf16.gmra.mrb[0].mxu0 %v379
      %v2276 = vpop.f32.mrb[0].mxu0
      %v2277 = vadd.f32 0.0, %v2276
      %v2278 = vpop.f32.mrb[0].mxu0
      %v2279 = vadd.f32 0.0, %v2278
      %v2280 = vpop.f32.mrb[0].mxu0
      %v2281 = vadd.f32 0.0, %v2280
      %v2282 = vpop.f32.mrb[0].mxu0
      %v2283 = vadd.f32 0.0, %v2282
      %2284 = vmatprep.mubr.bf16.mxu0 0
      %2285 = vmatmul.mubr.bf16.gmra.mrb[0].mxu0 %v380
      %v2286 = vpop.f32.mrb[0].mxu0
      %v2287 = vadd.f32 0.0, %v2286
      %v2288 = vpop.f32.mrb[0].mxu0
      %v2289 = vadd.f32 0.0, %v2288
      %v2290 = vpop.f32.mrb[0].mxu0
      %v2291 = vadd.f32 0.0, %v2290
      %v2292 = vpop.f32.mrb[0].mxu0
      %v2293 = vadd.f32 0.0, %v2292
      %2294 = vmatprep.mubr.bf16.mxu0 0
      %2295 = vmatmul.mubr.bf16.gmra.mrb[0].mxu0 %v381
      %v2296 = vpop.f32.mrb[0].mxu0
      %v2297 = vadd.f32 0.0, %v2296
      %v2298 = vpop.f32.mrb[0].mxu0
      %v2299 = vadd.f32 0.0, %v2298
      %v2300 = vpop.f32.mrb[0].mxu0
      %v2301 = vadd.f32 0.0, %v2300
      %v2302 = vpop.f32.mrb[0].mxu0
      %v2303 = vadd.f32 0.0, %v2302
      %2304 = vmatprep.mubr.bf16.mxu0 0
      %2305 = vmatmul.mubr.bf16.gmra.mrb[0].mxu0 %v382
      %v2306 = vpop.f32.mrb[0].mxu0
      %v2307 = vadd.f32 0.0, %v2306
      %v2308 = vpop.f32.mrb[0].mxu0
      %v2309 = vadd.f32 0.0, %v2308
      %v2310 = vpop.f32.mrb[0].mxu0
      %v2311 = vadd.f32 0.0, %v2310
      %v2312 = vpop.f32.mrb[0].mxu0
      %v2313 = vadd.f32 0.0, %v2312
      %2314 = vmatprep.mubr.bf16.mxu0 0
      %2315 = vmatmul.mubr.bf16.gmra.mrb[0].mxu0 %v383
      %v2316 = vpop.f32.mrb[0].mxu0
      %v2317 = vadd.f32 0.0, %v2316
      %v2318 = vpop.f32.mrb[0].mxu0
      %v2319 = vadd.f32 0.0, %v2318
      %v2320 = vpop.f32.mrb[0].mxu0
      %v2321 = vadd.f32 0.0, %v2320
      %v2322 = vpop.f32.mrb[0].mxu0
      %v2323 = vadd.f32 0.0, %v2322
      %2324 = vmatprep.mubr.bf16.mxu0 0
      %2325 = vmatmul.mubr.bf16.gmra.mrb[0].mxu0 %v384
      %v2326 = vpop.f32.mrb[0].mxu0
      %v2327 = vadd.f32 0.0, %v2326
      %v2328 = vpop.f32.mrb[0].mxu0
      %v2329 = vadd.f32 0.0, %v2328
      %v2330 = vpop.f32.mrb[0].mxu0
      %v2331 = vadd.f32 0.0, %v2330
      %v2332 = vpop.f32.mrb[0].mxu0
      %v2333 = vadd.f32 0.0, %v2332
      %2334 = vmatprep.mubr.bf16.mxu0 0
      %2335 = vmatmul.mubr.bf16.gmra.mrb[0].mxu0 %v385
      %v2336 = vpop.f32.mrb[0].mxu0
      %v2337 = vadd.f32 0.0, %v2336
      %v2338 = vpop.f32.mrb[0].mxu0
      %v2339 = vadd.f32 0.0, %v2338
      %v2340 = vpop.f32.mrb[0].mxu0
      %v2341 = vadd.f32 0.0, %v2340
      %v2342 = vpop.f32.mrb[0].mxu0
      %v2343 = vadd.f32 0.0, %v2342
      %2344 = vdwg.mxu0
      %v2377 = vunpack.c.l.b16 %v2103
      %v2378 = vunpack.c.h.b16 %v2103
      %v2379 = vunpack.c.l.b16 %v2104
      %v2380 = vunpack.c.h.b16 %v2104
      %v2381 = vunpack.c.l.b16 %v2105
      %v2382 = vunpack.c.h.b16 %v2105
      %v2383 = vunpack.c.l.b16 %v2106
      %v2384 = vunpack.c.h.b16 %v2106
      %v2385 = vunpack.c.l.b16 %v2107
      %v2386 = vunpack.c.h.b16 %v2107
      %v2387 = vunpack.c.l.b16 %v2108
      %v2388 = vunpack.c.h.b16 %v2108
      %v2389 = vunpack.c.l.b16 %v2109
      %v2390 = vunpack.c.h.b16 %v2109
      %v2391 = vunpack.c.l.b16 %v2110
      %v2392 = vunpack.c.h.b16 %v2110
      %v2393 = vunpack.c.l.b16 %v2111
      %v2394 = vunpack.c.h.b16 %v2111
      %v2395 = vunpack.c.l.b16 %v2112
      %v2396 = vunpack.c.h.b16 %v2112
      %v2397 = vunpack.c.l.b16 %v2113
      %v2398 = vunpack.c.h.b16 %v2113
      %v2399 = vunpack.c.l.b16 %v2114
      %v2400 = vunpack.c.h.b16 %v2114
      %v2401 = vunpack.c.l.b16 %v2115
      %v2402 = vunpack.c.h.b16 %v2115
      %v2403 = vunpack.c.l.b16 %v2116
      %v2404 = vunpack.c.h.b16 %v2116
      %v2405 = vunpack.c.l.b16 %v2117
      %v2406 = vunpack.c.h.b16 %v2117
      %v2407 = vunpack.c.l.b16 %v2118
      %v2408 = vunpack.c.h.b16 %v2118
      %v2409 = vunpack.c.l.b16 %v2119
      %v2410 = vunpack.c.h.b16 %v2119
      %v2411 = vunpack.c.l.b16 %v2120
      %v2412 = vunpack.c.h.b16 %v2120
      %v2413 = vunpack.c.l.b16 %v2121
      %v2414 = vunpack.c.h.b16 %v2121
      %v2415 = vunpack.c.l.b16 %v2122
      %v2416 = vunpack.c.h.b16 %v2122
      %v2417 = vunpack.c.l.b16 %v2123
      %v2418 = vunpack.c.h.b16 %v2123
      %v2419 = vunpack.c.l.b16 %v2124
      %v2420 = vunpack.c.h.b16 %v2124
      %v2421 = vunpack.c.l.b16 %v2125
      %v2422 = vunpack.c.h.b16 %v2125
      %v2423 = vunpack.c.l.b16 %v2126
      %v2424 = vunpack.c.h.b16 %v2126
      %v2425 = vunpack.c.l.b16 %v2127
      %v2426 = vunpack.c.h.b16 %v2127
      %v2427 = vunpack.c.l.b16 %v2128
      %v2428 = vunpack.c.h.b16 %v2128
      %v2429 = vunpack.c.l.b16 %v2129
      %v2430 = vunpack.c.h.b16 %v2129
      %v2431 = vunpack.c.l.b16 %v2130
      %v2432 = vunpack.c.h.b16 %v2130
      %v2433 = vunpack.c.l.b16 %v2131
      %v2434 = vunpack.c.h.b16 %v2131
      %v2435 = vunpack.c.l.b16 %v2132
      %v2436 = vunpack.c.h.b16 %v2132
      %v2437 = vunpack.c.l.b16 %v2133
      %v2438 = vunpack.c.h.b16 %v2133
      %v2439 = vunpack.c.l.b16 %v2134
      %v2440 = vunpack.c.h.b16 %v2134
      %v2441 = vpack.c.b16 %v2379, %v2377
      %v2442 = vpack.c.b16 %v2380, %v2378
      %v2443 = vpack.c.b16 %v2383, %v2381
      %v2444 = vpack.c.b16 %v2384, %v2382
      %v2445 = vpack.c.b16 %v2387, %v2385
      %v2446 = vpack.c.b16 %v2388, %v2386
      %v2447 = vpack.c.b16 %v2391, %v2389
      %v2448 = vpack.c.b16 %v2392, %v2390
      %v2449 = vpack.c.b16 %v2395, %v2393
      %v2450 = vpack.c.b16 %v2396, %v2394
      %v2451 = vpack.c.b16 %v2399, %v2397
      %v2452 = vpack.c.b16 %v2400, %v2398
      %v2453 = vpack.c.b16 %v2403, %v2401
      %v2454 = vpack.c.b16 %v2404, %v2402
      %v2455 = vpack.c.b16 %v2407, %v2405
      %v2456 = vpack.c.b16 %v2408, %v2406
      %v2457 = vpack.c.b16 %v2411, %v2409
      %v2458 = vpack.c.b16 %v2412, %v2410
      %v2459 = vpack.c.b16 %v2415, %v2413
      %v2460 = vpack.c.b16 %v2416, %v2414
      %v2461 = vpack.c.b16 %v2419, %v2417
      %v2462 = vpack.c.b16 %v2420, %v2418
      %v2463 = vpack.c.b16 %v2423, %v2421
      %v2464 = vpack.c.b16 %v2424, %v2422
      %v2465 = vpack.c.b16 %v2427, %v2425
      %v2466 = vpack.c.b16 %v2428, %v2426
      %v2467 = vpack.c.b16 %v2431, %v2429
      %v2468 = vpack.c.b16 %v2432, %v2430
      %v2469 = vpack.c.b16 %v2435, %v2433
      %v2470 = vpack.c.b16 %v2436, %v2434
      %v2471 = vpack.c.b16 %v2439, %v2437
      %v2472 = vpack.c.b16 %v2440, %v2438
      %2505 = vmatprep.subr.bf16.mxu0 %v2442
      %2506 = vmatpush1.bf16.msra.mxu0 %v2441
      %2507 = vmatprep.subr.bf16.mxu0 %v2444
      %2508 = vmatpush1.bf16.msra.mxu0 %v2443
      %2509 = vmatprep.subr.bf16.mxu0 %v2446
      %2510 = vmatpush1.bf16.msra.mxu0 %v2445
      %2511 = vmatprep.subr.bf16.mxu0 %v2448
      %2512 = vmatpush1.bf16.msra.mxu0 %v2447
      %2513 = vmatprep.subr.bf16.mxu0 %v2450
      %2514 = vmatpush1.bf16.msra.mxu0 %v2449
      %2515 = vmatprep.subr.bf16.mxu0 %v2452
      %2516 = vmatpush1.bf16.msra.mxu0 %v2451
      %2517 = vmatprep.subr.bf16.mxu0 %v2454
      %2518 = vmatpush1.bf16.msra.mxu0 %v2453
      %2519 = vmatprep.subr.bf16.mxu0 %v2456
      %2520 = vmatpush1.bf16.msra.mxu0 %v2455
      %2521 = vmatprep.subr.bf16.mxu0 %v2458
      %2522 = vmatpush1.bf16.msra.mxu0 %v2457
      %2523 = vmatprep.subr.bf16.mxu0 %v2460
      %2524 = vmatpush1.bf16.msra.mxu0 %v2459
      %2525 = vmatprep.subr.bf16.mxu0 %v2462
      %2526 = vmatpush1.bf16.msra.mxu0 %v2461
      %2527 = vmatprep.subr.bf16.mxu0 %v2464
      %2528 = vmatpush1.bf16.msra.mxu0 %v2463
      %2529 = vmatprep.subr.bf16.mxu0 %v2466
      %2530 = vmatpush1.bf16.msra.mxu0 %v2465
      %2531 = vmatprep.subr.bf16.mxu0 %v2468
      %2532 = vmatpush1.bf16.msra.mxu0 %v2467
      %2533 = vmatprep.subr.bf16.mxu0 %v2470
      %2534 = vmatpush1.bf16.msra.mxu0 %v2469
      %2535 = vmatprep.subr.bf16.mxu0 %v2472
      %2536 = vmatpush1.bf16.msra.mxu0 %v2471
      %2537 = vmatprep.mubr.bf16.mxu0 %v2087
      %2538 = vmatmul.mubr.bf16.gmra.mrb[0].mxu0 %v2086
      %v2539 = vpop.f32.mrb[0].mxu0
      %v2540 = vadd.f32 %v2267, %v2539
      %v2541 = vpop.f32.mrb[0].mxu0
      %v2542 = vadd.f32 %v2269, %v2541
      %v2543 = vpop.f32.mrb[0].mxu0
      %v2544 = vadd.f32 %v2271, %v2543
      %v2545 = vpop.f32.mrb[0].mxu0
      %v2546 = vadd.f32 %v2273, %v2545
      %2547 = vmatprep.mubr.bf16.mxu0 %v2089
      %2548 = vmatmul.mubr.bf16.gmra.mrb[0].mxu0 %v2088
      %v2549 = vpop.f32.mrb[0].mxu0
      %v2550 = vadd.f32 %v2277, %v2549
      %v2551 = vpop.f32.mrb[0].mxu0
      %v2552 = vadd.f32 %v2279, %v2551
      %v2553 = vpop.f32.mrb[0].mxu0
      %v2554 = vadd.f32 %v2281, %v2553
      %v2555 = vpop.f32.mrb[0].mxu0
      %v2556 = vadd.f32 %v2283, %v2555
      %2557 = vmatprep.mubr.bf16.mxu0 %v2091
      %2558 = vmatmul.mubr.bf16.gmra.mrb[0].mxu0 %v2090
      %v2559 = vpop.f32.mrb[0].mxu0
      %v2560 = vadd.f32 %v2287, %v2559
      %v2561 = vpop.f32.mrb[0].mxu0
      %v2562 = vadd.f32 %v2289, %v2561
      %v2563 = vpop.f32.mrb[0].mxu0
      %v2564 = vadd.f32 %v2291, %v2563
      %v2565 = vpop.f32.mrb[0].mxu0
      %v2566 = vadd.f32 %v2293, %v2565
      %2567 = vmatprep.mubr.bf16.mxu0 %v2093
      %2568 = vmatmul.mubr.bf16.gmra.mrb[0].mxu0 %v2092
      %v2569 = vpop.f32.mrb[0].mxu0
      %v2570 = vadd.f32 %v2297, %v2569
      %v2571 = vpop.f32.mrb[0].mxu0
      %v2572 = vadd.f32 %v2299, %v2571
      %v2573 = vpop.f32.mrb[0].mxu0
      %v2574 = vadd.f32 %v2301, %v2573
      %v2575 = vpop.f32.mrb[0].mxu0
      %v2576 = vadd.f32 %v2303, %v2575
      %2577 = vmatprep.mubr.bf16.mxu0 %v2095
      %2578 = vmatmul.mubr.bf16.gmra.mrb[0].mxu0 %v2094
      %v2579 = vpop.f32.mrb[0].mxu0
      %v2580 = vadd.f32 %v2307, %v2579
      %v2581 = vpop.f32.mrb[0].mxu0
      %v2582 = vadd.f32 %v2309, %v2581
      %v2583 = vpop.f32.mrb[0].mxu0
      %v2584 = vadd.f32 %v2311, %v2583
      %v2585 = vpop.f32.mrb[0].mxu0
      %v2586 = vadd.f32 %v2313, %v2585
      %2587 = vmatprep.mubr.bf16.mxu0 %v2097
      %2588 = vmatmul.mubr.bf16.gmra.mrb[0].mxu0 %v2096
      %v2589 = vpop.f32.mrb[0].mxu0
      %v2590 = vadd.f32 %v2317, %v2589
      %v2591 = vpop.f32.mrb[0].mxu0
      %v2592 = vadd.f32 %v2319, %v2591
      %v2593 = vpop.f32.mrb[0].mxu0
      %v2594 = vadd.f32 %v2321, %v2593
      %v2595 = vpop.f32.mrb[0].mxu0
      %v2596 = vadd.f32 %v2323, %v2595
      %2597 = vmatprep.mubr.bf16.mxu0 %v2099
      %2598 = vmatmul.mubr.bf16.gmra.mrb[0].mxu0 %v2098
      %v2599 = vpop.f32.mrb[0].mxu0
      %v2600 = vadd.f32 %v2327, %v2599
      %v2601 = vpop.f32.mrb[0].mxu0
      %v2602 = vadd.f32 %v2329, %v2601
      %v2603 = vpop.f32.mrb[0].mxu0
      %v2604 = vadd.f32 %v2331, %v2603
      %v2605 = vpop.f32.mrb[0].mxu0
      %v2606 = vadd.f32 %v2333, %v2605
      %2607 = vmatprep.mubr.bf16.mxu0 %v2101
      %2608 = vmatmul.mubr.bf16.gmra.mrb[0].mxu0 %v2100
      %v2609 = vpop.f32.mrb[0].mxu0
      %v2610 = vadd.f32 %v2337, %v2609
      %v2611 = vpop.f32.mrb[0].mxu0
      %v2612 = vadd.f32 %v2339, %v2611
      %v2613 = vpop.f32.mrb[0].mxu0
      %v2614 = vadd.f32 %v2341, %v2613
      %v2615 = vpop.f32.mrb[0].mxu0
      %v2616 = vadd.f32 %v2343, %v2615
      %2617 = vdwg.mxu0
      %s2618 = scalar_lea.vmem %s6, 5
      %v2619 = vld [vmem:[%s2618] ss:$8 sm:$0x3]
      %v2621 = vlaneseq
      %v2622 = vshrl.u32 %v2621, 7
      %v2623 = vsub.s32 0, %v2622
      %v2624 = vrot.slane %v2619, %v2623
      %v2625 = vlaneseq
      %v2626 = vshrl.u32 %v2625, 7
      %v2627 = vsub.s32 1, %v2626
      %v2628 = vrot.slane %v2619, %v2627
      %v2631 = vadd.f32 %v2540, %v2624
      %v2632 = vadd.f32 %v2542, %v2628
      %v2633 = vadd.f32 %v2544, %v2624
      %v2634 = vadd.f32 %v2546, %v2628
      %v2635 = vadd.f32 %v2550, %v2624
      %v2636 = vadd.f32 %v2552, %v2628
      %v2637 = vadd.f32 %v2554, %v2624
      %v2638 = vadd.f32 %v2556, %v2628
      %v2639 = vadd.f32 %v2560, %v2624
      %v2640 = vadd.f32 %v2562, %v2628
      %v2641 = vadd.f32 %v2564, %v2624
      %v2642 = vadd.f32 %v2566, %v2628
      %v2643 = vadd.f32 %v2570, %v2624
      %v2644 = vadd.f32 %v2572, %v2628
      %v2645 = vadd.f32 %v2574, %v2624
      %v2646 = vadd.f32 %v2576, %v2628
      %v2647 = vadd.f32 %v2580, %v2624
      %v2648 = vadd.f32 %v2582, %v2628
      %v2649 = vadd.f32 %v2584, %v2624
      %v2650 = vadd.f32 %v2586, %v2628
      %v2651 = vadd.f32 %v2590, %v2624
      %v2652 = vadd.f32 %v2592, %v2628
      %v2653 = vadd.f32 %v2594, %v2624
      %v2654 = vadd.f32 %v2596, %v2628
      %v2655 = vadd.f32 %v2600, %v2624
      %v2656 = vadd.f32 %v2602, %v2628
      %v2657 = vadd.f32 %v2604, %v2624
      %v2658 = vadd.f32 %v2606, %v2628
      %v2659 = vadd.f32 %v2610, %v2624
      %v2660 = vadd.f32 %v2612, %v2628
      %v2661 = vadd.f32 %v2614, %v2624
      %v2662 = vadd.f32 %v2616, %v2628
      %v2663 = vmax.f32 %v2631, 0.0
      %v2664 = vmax.f32 %v2632, 0.0
      %v2665 = vmax.f32 %v2633, 0.0
      %v2666 = vmax.f32 %v2634, 0.0
      %v2667 = vmax.f32 %v2635, 0.0
      %v2668 = vmax.f32 %v2636, 0.0
      %v2669 = vmax.f32 %v2637, 0.0
      %v2670 = vmax.f32 %v2638, 0.0
      %v2671 = vmax.f32 %v2639, 0.0
      %v2672 = vmax.f32 %v2640, 0.0
      %v2673 = vmax.f32 %v2641, 0.0
      %v2674 = vmax.f32 %v2642, 0.0
      %v2675 = vmax.f32 %v2643, 0.0
      %v2676 = vmax.f32 %v2644, 0.0
      %v2677 = vmax.f32 %v2645, 0.0
      %v2678 = vmax.f32 %v2646, 0.0
      %v2679 = vmax.f32 %v2647, 0.0
      %v2680 = vmax.f32 %v2648, 0.0
      %v2681 = vmax.f32 %v2649, 0.0
      %v2682 = vmax.f32 %v2650, 0.0
      %v2683 = vmax.f32 %v2651, 0.0
      %v2684 = vmax.f32 %v2652, 0.0
      %v2685 = vmax.f32 %v2653, 0.0
      %v2686 = vmax.f32 %v2654, 0.0
      %v2687 = vmax.f32 %v2655, 0.0
      %v2688 = vmax.f32 %v2656, 0.0
      %v2689 = vmax.f32 %v2657, 0.0
      %v2690 = vmax.f32 %v2658, 0.0
      %v2691 = vmax.f32 %v2659, 0.0
      %v2692 = vmax.f32 %v2660, 0.0
      %v2693 = vmax.f32 %v2661, 0.0
      %v2694 = vmax.f32 %v2662, 0.0
      %v2695 = vpack.c.bf16 %v2665, %v2663
      %v2696 = vpack.c.bf16 %v2666, %v2664
      %v2697 = vpack.c.bf16 %v2669, %v2667
      %v2698 = vpack.c.bf16 %v2670, %v2668
      %v2699 = vpack.c.bf16 %v2673, %v2671
      %v2700 = vpack.c.bf16 %v2674, %v2672
      %v2701 = vpack.c.bf16 %v2677, %v2675
      %v2702 = vpack.c.bf16 %v2678, %v2676
      %v2703 = vpack.c.bf16 %v2681, %v2679
      %v2704 = vpack.c.bf16 %v2682, %v2680
      %v2705 = vpack.c.bf16 %v2685, %v2683
      %v2706 = vpack.c.bf16 %v2686, %v2684
      %v2707 = vpack.c.bf16 %v2689, %v2687
      %v2708 = vpack.c.bf16 %v2690, %v2688
      %v2709 = vpack.c.bf16 %v2693, %v2691
      %v2710 = vpack.c.bf16 %v2694, %v2692
      %s2711 = scalar_lea.vmem %s1, 1280
      %v2712 = vld [vmem:[%s2711] sm:$0xff]
      %v2713 = vld [vmem:[%s2711 + $0x8] sm:$0xff]
      %v2714 = vld [vmem:[%s2711 + $0x10] sm:$0xff]
      %v2715 = vld [vmem:[%s2711 + $0x18] sm:$0xff]
      %v2716 = vld [vmem:[%s2711 + $0x20] sm:$0xff]
      %v2717 = vld [vmem:[%s2711 + $0x28] sm:$0xff]
      %v2718 = vld [vmem:[%s2711 + $0x30] sm:$0xff]
      %v2719 = vld [vmem:[%s2711 + $0x38] sm:$0xff]
      %v2720 = vld [vmem:[%s2711 + $0x40] sm:$0xff]
      %v2721 = vld [vmem:[%s2711 + $0x48] sm:$0xff]
      %v2722 = vld [vmem:[%s2711 + $0x50] sm:$0xff]
      %v2723 = vld [vmem:[%s2711 + $0x58] sm:$0xff]
      %v2724 = vld [vmem:[%s2711 + $0x60] sm:$0xff]
      %v2725 = vld [vmem:[%s2711 + $0x68] sm:$0xff]
      %v2726 = vld [vmem:[%s2711 + $0x70] sm:$0xff]
      %v2727 = vld [vmem:[%s2711 + $0x78] sm:$0xff]
      %v2728 = vld [vmem:[%s2711 + $0x80] sm:$0xff]
      %v2729 = vld [vmem:[%s2711 + $0x88] sm:$0xff]
      %v2730 = vld [vmem:[%s2711 + $0x90] sm:$0xff]
      %v2731 = vld [vmem:[%s2711 + $0x98] sm:$0xff]
      %v2732 = vld [vmem:[%s2711 + $0xa0] sm:$0xff]
      %v2733 = vld [vmem:[%s2711 + $0xa8] sm:$0xff]
      %v2734 = vld [vmem:[%s2711 + $0xb0] sm:$0xff]
      %v2735 = vld [vmem:[%s2711 + $0xb8] sm:$0xff]
      %v2736 = vld [vmem:[%s2711 + $0xc0] sm:$0xff]
      %v2737 = vld [vmem:[%s2711 + $0xc8] sm:$0xff]
      %v2738 = vld [vmem:[%s2711 + $0xd0] sm:$0xff]
      %v2739 = vld [vmem:[%s2711 + $0xd8] sm:$0xff]
      %v2740 = vld [vmem:[%s2711 + $0xe0] sm:$0xff]
      %v2741 = vld [vmem:[%s2711 + $0xe8] sm:$0xff]
      %v2742 = vld [vmem:[%s2711 + $0xf0] sm:$0xff]
      %v2743 = vld [vmem:[%s2711 + $0xf8] sm:$0xff]
      %s2744 = scalar_lea.vmem %s6, 6
      %v2745 = vld [vmem:[%s2744] ss:$8 sm:$0x3]
      %v2747 = vlaneseq
      %v2748 = vshrl.u32 %v2747, 7
      %v2749 = vsub.s32 0, %v2748
      %v2750 = vrot.slane %v2745, %v2749
      %v2751 = vlaneseq
      %v2752 = vshrl.u32 %v2751, 7
      %v2753 = vsub.s32 1, %v2752
      %v2754 = vrot.slane %v2745, %v2753
      %v2789 = vunpack.c.l.b16 %v2712
      %v2790 = vunpack.c.h.b16 %v2712
      %v2791 = vunpack.c.l.b16 %v2713
      %v2792 = vunpack.c.h.b16 %v2713
      %v2793 = vunpack.c.l.b16 %v2714
      %v2794 = vunpack.c.h.b16 %v2714
      %v2795 = vunpack.c.l.b16 %v2715
      %v2796 = vunpack.c.h.b16 %v2715
      %v2797 = vunpack.c.l.b16 %v2716
      %v2798 = vunpack.c.h.b16 %v2716
      %v2799 = vunpack.c.l.b16 %v2717
      %v2800 = vunpack.c.h.b16 %v2717
      %v2801 = vunpack.c.l.b16 %v2718
      %v2802 = vunpack.c.h.b16 %v2718
      %v2803 = vunpack.c.l.b16 %v2719
      %v2804 = vunpack.c.h.b16 %v2719
      %v2805 = vunpack.c.l.b16 %v2720
      %v2806 = vunpack.c.h.b16 %v2720
      %v2807 = vunpack.c.l.b16 %v2721
      %v2808 = vunpack.c.h.b16 %v2721
      %v2809 = vunpack.c.l.b16 %v2722
      %v2810 = vunpack.c.h.b16 %v2722
      %v2811 = vunpack.c.l.b16 %v2723
      %v2812 = vunpack.c.h.b16 %v2723
      %v2813 = vunpack.c.l.b16 %v2724
      %v2814 = vunpack.c.h.b16 %v2724
      %v2815 = vunpack.c.l.b16 %v2725
      %v2816 = vunpack.c.h.b16 %v2725
      %v2817 = vunpack.c.l.b16 %v2726
      %v2818 = vunpack.c.h.b16 %v2726
      %v2819 = vunpack.c.l.b16 %v2727
      %v2820 = vunpack.c.h.b16 %v2727
      %v2821 = vunpack.c.l.b16 %v2728
      %v2822 = vunpack.c.h.b16 %v2728
      %v2823 = vunpack.c.l.b16 %v2729
      %v2824 = vunpack.c.h.b16 %v2729
      %v2825 = vunpack.c.l.b16 %v2730
      %v2826 = vunpack.c.h.b16 %v2730
      %v2827 = vunpack.c.l.b16 %v2731
      %v2828 = vunpack.c.h.b16 %v2731
      %v2829 = vunpack.c.l.b16 %v2732
      %v2830 = vunpack.c.h.b16 %v2732
      %v2831 = vunpack.c.l.b16 %v2733
      %v2832 = vunpack.c.h.b16 %v2733
      %v2833 = vunpack.c.l.b16 %v2734
      %v2834 = vunpack.c.h.b16 %v2734
      %v2835 = vunpack.c.l.b16 %v2735
      %v2836 = vunpack.c.h.b16 %v2735
      %v2837 = vunpack.c.l.b16 %v2736
      %v2838 = vunpack.c.h.b16 %v2736
      %v2839 = vunpack.c.l.b16 %v2737
      %v2840 = vunpack.c.h.b16 %v2737
      %v2841 = vunpack.c.l.b16 %v2738
      %v2842 = vunpack.c.h.b16 %v2738
      %v2843 = vunpack.c.l.b16 %v2739
      %v2844 = vunpack.c.h.b16 %v2739
      %v2845 = vunpack.c.l.b16 %v2740
      %v2846 = vunpack.c.h.b16 %v2740
      %v2847 = vunpack.c.l.b16 %v2741
      %v2848 = vunpack.c.h.b16 %v2741
      %v2849 = vunpack.c.l.b16 %v2742
      %v2850 = vunpack.c.h.b16 %v2742
      %v2851 = vunpack.c.l.b16 %v2743
      %v2852 = vunpack.c.h.b16 %v2743
      %v2853 = vpack.c.b16 %v2791, %v2789
      %v2854 = vpack.c.b16 %v2792, %v2790
      %v2855 = vpack.c.b16 %v2795, %v2793
      %v2856 = vpack.c.b16 %v2796, %v2794
      %v2857 = vpack.c.b16 %v2799, %v2797
      %v2858 = vpack.c.b16 %v2800, %v2798
      %v2859 = vpack.c.b16 %v2803, %v2801
      %v2860 = vpack.c.b16 %v2804, %v2802
      %v2861 = vpack.c.b16 %v2807, %v2805
      %v2862 = vpack.c.b16 %v2808, %v2806
      %v2863 = vpack.c.b16 %v2811, %v2809
      %v2864 = vpack.c.b16 %v2812, %v2810
      %v2865 = vpack.c.b16 %v2815, %v2813
      %v2866 = vpack.c.b16 %v2816, %v2814
      %v2867 = vpack.c.b16 %v2819, %v2817
      %v2868 = vpack.c.b16 %v2820, %v2818
      %v2869 = vpack.c.b16 %v2823, %v2821
      %v2870 = vpack.c.b16 %v2824, %v2822
      %v2871 = vpack.c.b16 %v2827, %v2825
      %v2872 = vpack.c.b16 %v2828, %v2826
      %v2873 = vpack.c.b16 %v2831, %v2829
      %v2874 = vpack.c.b16 %v2832, %v2830
      %v2875 = vpack.c.b16 %v2835, %v2833
      %v2876 = vpack.c.b16 %v2836, %v2834
      %v2877 = vpack.c.b16 %v2839, %v2837
      %v2878 = vpack.c.b16 %v2840, %v2838
      %v2879 = vpack.c.b16 %v2843, %v2841
      %v2880 = vpack.c.b16 %v2844, %v2842
      %v2881 = vpack.c.b16 %v2847, %v2845
      %v2882 = vpack.c.b16 %v2848, %v2846
      %v2883 = vpack.c.b16 %v2851, %v2849
      %v2884 = vpack.c.b16 %v2852, %v2850
      %2917 = vmatprep.subr.bf16.mxu0 %v2854
      %2918 = vmatpush1.bf16.msra.mxu0 %v2853
      %2919 = vmatprep.subr.bf16.mxu0 %v2856
      %2920 = vmatpush1.bf16.msra.mxu0 %v2855
      %2921 = vmatprep.subr.bf16.mxu0 %v2858
      %2922 = vmatpush1.bf16.msra.mxu0 %v2857
      %2923 = vmatprep.subr.bf16.mxu0 %v2860
      %2924 = vmatpush1.bf16.msra.mxu0 %v2859
      %2925 = vmatprep.subr.bf16.mxu0 %v2862
      %2926 = vmatpush1.bf16.msra.mxu0 %v2861
      %2927 = vmatprep.subr.bf16.mxu0 %v2864
      %2928 = vmatpush1.bf16.msra.mxu0 %v2863
      %2929 = vmatprep.subr.bf16.mxu0 %v2866
      %2930 = vmatpush1.bf16.msra.mxu0 %v2865
      %2931 = vmatprep.subr.bf16.mxu0 %v2868
      %2932 = vmatpush1.bf16.msra.mxu0 %v2867
      %2933 = vmatprep.subr.bf16.mxu0 %v2870
      %2934 = vmatpush1.bf16.msra.mxu0 %v2869
      %2935 = vmatprep.subr.bf16.mxu0 %v2872
      %2936 = vmatpush1.bf16.msra.mxu0 %v2871
      %2937 = vmatprep.subr.bf16.mxu0 %v2874
      %2938 = vmatpush1.bf16.msra.mxu0 %v2873
      %2939 = vmatprep.subr.bf16.mxu0 %v2876
      %2940 = vmatpush1.bf16.msra.mxu0 %v2875
      %2941 = vmatprep.subr.bf16.mxu0 %v2878
      %2942 = vmatpush1.bf16.msra.mxu0 %v2877
      %2943 = vmatprep.subr.bf16.mxu0 %v2880
      %2944 = vmatpush1.bf16.msra.mxu0 %v2879
      %2945 = vmatprep.subr.bf16.mxu0 %v2882
      %2946 = vmatpush1.bf16.msra.mxu0 %v2881
      %2947 = vmatprep.subr.bf16.mxu0 %v2884
      %2948 = vmatpush1.bf16.msra.mxu0 %v2883
      %2949 = vmatprep.mubr.bf16.mxu0 %v2696
      %2950 = vmatmul.mubr.bf16.gmra.mrb[0].mxu0 %v2695
      %v2951 = vpop.f32.mrb[0].mxu0
      %v2952 = vadd.f32 %v2750, %v2951
      %v2953 = vpop.f32.mrb[0].mxu0
      %v2954 = vadd.f32 %v2754, %v2953
      %v2955 = vpop.f32.mrb[0].mxu0
      %v2956 = vadd.f32 %v2750, %v2955
      %v2957 = vpop.f32.mrb[0].mxu0
      %v2958 = vadd.f32 %v2754, %v2957
      %2959 = vmatprep.mubr.bf16.mxu0 %v2698
      %2960 = vmatmul.mubr.bf16.gmra.mrb[0].mxu0 %v2697
      %v2961 = vpop.f32.mrb[0].mxu0
      %v2962 = vadd.f32 %v2750, %v2961
      %v2963 = vpop.f32.mrb[0].mxu0
      %v2964 = vadd.f32 %v2754, %v2963
      %v2965 = vpop.f32.mrb[0].mxu0
      %v2966 = vadd.f32 %v2750, %v2965
      %v2967 = vpop.f32.mrb[0].mxu0
      %v2968 = vadd.f32 %v2754, %v2967
      %2969 = vmatprep.mubr.bf16.mxu0 %v2700
      %2970 = vmatmul.mubr.bf16.gmra.mrb[0].mxu0 %v2699
      %v2971 = vpop.f32.mrb[0].mxu0
      %v2972 = vadd.f32 %v2750, %v2971
      %v2973 = vpop.f32.mrb[0].mxu0
      %v2974 = vadd.f32 %v2754, %v2973
      %v2975 = vpop.f32.mrb[0].mxu0
      %v2976 = vadd.f32 %v2750, %v2975
      %v2977 = vpop.f32.mrb[0].mxu0
      %v2978 = vadd.f32 %v2754, %v2977
      %2979 = vmatprep.mubr.bf16.mxu0 %v2702
      %2980 = vmatmul.mubr.bf16.gmra.mrb[0].mxu0 %v2701
      %v2981 = vpop.f32.mrb[0].mxu0
      %v2982 = vadd.f32 %v2750, %v2981
      %v2983 = vpop.f32.mrb[0].mxu0
      %v2984 = vadd.f32 %v2754, %v2983
      %v2985 = vpop.f32.mrb[0].mxu0
      %v2986 = vadd.f32 %v2750, %v2985
      %v2987 = vpop.f32.mrb[0].mxu0
      %v2988 = vadd.f32 %v2754, %v2987
      %2989 = vmatprep.mubr.bf16.mxu0 %v2704
      %2990 = vmatmul.mubr.bf16.gmra.mrb[0].mxu0 %v2703
      %v2991 = vpop.f32.mrb[0].mxu0
      %v2992 = vadd.f32 %v2750, %v2991
      %v2993 = vpop.f32.mrb[0].mxu0
      %v2994 = vadd.f32 %v2754, %v2993
      %v2995 = vpop.f32.mrb[0].mxu0
      %v2996 = vadd.f32 %v2750, %v2995
      %v2997 = vpop.f32.mrb[0].mxu0
      %v2998 = vadd.f32 %v2754, %v2997
      %2999 = vmatprep.mubr.bf16.mxu0 %v2706
      %3000 = vmatmul.mubr.bf16.gmra.mrb[0].mxu0 %v2705
      %v3001 = vpop.f32.mrb[0].mxu0
      %v3002 = vadd.f32 %v2750, %v3001
      %v3003 = vpop.f32.mrb[0].mxu0
      %v3004 = vadd.f32 %v2754, %v3003
      %v3005 = vpop.f32.mrb[0].mxu0
      %v3006 = vadd.f32 %v2750, %v3005
      %v3007 = vpop.f32.mrb[0].mxu0
      %v3008 = vadd.f32 %v2754, %v3007
      %3009 = vmatprep.mubr.bf16.mxu0 %v2708
      %3010 = vmatmul.mubr.bf16.gmra.mrb[0].mxu0 %v2707
      %v3011 = vpop.f32.mrb[0].mxu0
      %v3012 = vadd.f32 %v2750, %v3011
      %v3013 = vpop.f32.mrb[0].mxu0
      %v3014 = vadd.f32 %v2754, %v3013
      %v3015 = vpop.f32.mrb[0].mxu0
      %v3016 = vadd.f32 %v2750, %v3015
      %v3017 = vpop.f32.mrb[0].mxu0
      %v3018 = vadd.f32 %v2754, %v3017
      %3019 = vmatprep.mubr.bf16.mxu0 %v2710
      %3020 = vmatmul.mubr.bf16.gmra.mrb[0].mxu0 %v2709
      %v3021 = vpop.f32.mrb[0].mxu0
      %v3022 = vadd.f32 %v2750, %v3021
      %v3023 = vpop.f32.mrb[0].mxu0
      %v3024 = vadd.f32 %v2754, %v3023
      %v3025 = vpop.f32.mrb[0].mxu0
      %v3026 = vadd.f32 %v2750, %v3025
      %v3027 = vpop.f32.mrb[0].mxu0
      %v3028 = vadd.f32 %v2754, %v3027
      %3029 = vdwg.mxu0
      %v3030 = vmax.f32 %v2952, 0.0
      %v3031 = vmax.f32 %v2954, 0.0
      %v3032 = vmax.f32 %v2956, 0.0
      %v3033 = vmax.f32 %v2958, 0.0
      %v3034 = vmax.f32 %v2962, 0.0
      %v3035 = vmax.f32 %v2964, 0.0
      %v3036 = vmax.f32 %v2966, 0.0
      %v3037 = vmax.f32 %v2968, 0.0
      %v3038 = vmax.f32 %v2972, 0.0
      %v3039 = vmax.f32 %v2974, 0.0
      %v3040 = vmax.f32 %v2976, 0.0
      %v3041 = vmax.f32 %v2978, 0.0
      %v3042 = vmax.f32 %v2982, 0.0
      %v3043 = vmax.f32 %v2984, 0.0
      %v3044 = vmax.f32 %v2986, 0.0
      %v3045 = vmax.f32 %v2988, 0.0
      %v3046 = vmax.f32 %v2992, 0.0
      %v3047 = vmax.f32 %v2994, 0.0
      %v3048 = vmax.f32 %v2996, 0.0
      %v3049 = vmax.f32 %v2998, 0.0
      %v3050 = vmax.f32 %v3002, 0.0
      %v3051 = vmax.f32 %v3004, 0.0
      %v3052 = vmax.f32 %v3006, 0.0
      %v3053 = vmax.f32 %v3008, 0.0
      %v3054 = vmax.f32 %v3012, 0.0
      %v3055 = vmax.f32 %v3014, 0.0
      %v3056 = vmax.f32 %v3016, 0.0
      %v3057 = vmax.f32 %v3018, 0.0
      %v3058 = vmax.f32 %v3022, 0.0
      %v3059 = vmax.f32 %v3024, 0.0
      %v3060 = vmax.f32 %v3026, 0.0
      %v3061 = vmax.f32 %v3028, 0.0
      %v3062 = vpack.c.bf16 %v3032, %v3030
      %v3063 = vpack.c.bf16 %v3033, %v3031
      %v3064 = vpack.c.bf16 %v3036, %v3034
      %v3065 = vpack.c.bf16 %v3037, %v3035
      %v3066 = vpack.c.bf16 %v3040, %v3038
      %v3067 = vpack.c.bf16 %v3041, %v3039
      %v3068 = vpack.c.bf16 %v3044, %v3042
      %v3069 = vpack.c.bf16 %v3045, %v3043
      %v3070 = vpack.c.bf16 %v3048, %v3046
      %v3071 = vpack.c.bf16 %v3049, %v3047
      %v3072 = vpack.c.bf16 %v3052, %v3050
      %v3073 = vpack.c.bf16 %v3053, %v3051
      %v3074 = vpack.c.bf16 %v3056, %v3054
      %v3075 = vpack.c.bf16 %v3057, %v3055
      %v3076 = vpack.c.bf16 %v3060, %v3058
      %v3077 = vpack.c.bf16 %v3061, %v3059
      %s3078 = scalar_lea.vmem %s1, 1536
      %v3079 = vld [vmem:[%s3078] sm:$0xff]
      %v3080 = vld [vmem:[%s3078 + $0x8] sm:$0xff]
      %v3081 = vld [vmem:[%s3078 + $0x10] sm:$0xff]
      %v3082 = vld [vmem:[%s3078 + $0x18] sm:$0xff]
      %v3083 = vld [vmem:[%s3078 + $0x20] sm:$0xff]
      %v3084 = vld [vmem:[%s3078 + $0x28] sm:$0xff]
      %v3085 = vld [vmem:[%s3078 + $0x30] sm:$0xff]
      %v3086 = vld [vmem:[%s3078 + $0x38] sm:$0xff]
      %v3087 = vld [vmem:[%s3078 + $0x40] sm:$0xff]
      %v3088 = vld [vmem:[%s3078 + $0x48] sm:$0xff]
      %v3089 = vld [vmem:[%s3078 + $0x50] sm:$0xff]
      %v3090 = vld [vmem:[%s3078 + $0x58] sm:$0xff]
      %v3091 = vld [vmem:[%s3078 + $0x60] sm:$0xff]
      %v3092 = vld [vmem:[%s3078 + $0x68] sm:$0xff]
      %v3093 = vld [vmem:[%s3078 + $0x70] sm:$0xff]
      %v3094 = vld [vmem:[%s3078 + $0x78] sm:$0xff]
      %v3095 = vld [vmem:[%s3078 + $0x80] sm:$0xff]
      %v3096 = vld [vmem:[%s3078 + $0x88] sm:$0xff]
      %v3097 = vld [vmem:[%s3078 + $0x90] sm:$0xff]
      %v3098 = vld [vmem:[%s3078 + $0x98] sm:$0xff]
      %v3099 = vld [vmem:[%s3078 + $0xa0] sm:$0xff]
      %v3100 = vld [vmem:[%s3078 + $0xa8] sm:$0xff]
      %v3101 = vld [vmem:[%s3078 + $0xb0] sm:$0xff]
      %v3102 = vld [vmem:[%s3078 + $0xb8] sm:$0xff]
      %v3103 = vld [vmem:[%s3078 + $0xc0] sm:$0xff]
      %v3104 = vld [vmem:[%s3078 + $0xc8] sm:$0xff]
      %v3105 = vld [vmem:[%s3078 + $0xd0] sm:$0xff]
      %v3106 = vld [vmem:[%s3078 + $0xd8] sm:$0xff]
      %v3107 = vld [vmem:[%s3078 + $0xe0] sm:$0xff]
      %v3108 = vld [vmem:[%s3078 + $0xe8] sm:$0xff]
      %v3109 = vld [vmem:[%s3078 + $0xf0] sm:$0xff]
      %v3110 = vld [vmem:[%s3078 + $0xf8] sm:$0xff]
      %s3111 = scalar_lea.vmem %s6, 7
      %v3112 = vld [vmem:[%s3111] ss:$8 sm:$0x3]
      %v3114 = vlaneseq
      %v3115 = vshrl.u32 %v3114, 7
      %v3116 = vsub.s32 0, %v3115
      %v3117 = vrot.slane %v3112, %v3116
      %v3118 = vlaneseq
      %v3119 = vshrl.u32 %v3118, 7
      %v3120 = vsub.s32 1, %v3119
      %v3121 = vrot.slane %v3112, %v3120
      %v3156 = vunpack.c.l.b16 %v3079
      %v3157 = vunpack.c.h.b16 %v3079
      %v3158 = vunpack.c.l.b16 %v3080
      %v3159 = vunpack.c.h.b16 %v3080
      %v3160 = vunpack.c.l.b16 %v3081
      %v3161 = vunpack.c.h.b16 %v3081
      %v3162 = vunpack.c.l.b16 %v3082
      %v3163 = vunpack.c.h.b16 %v3082
      %v3164 = vunpack.c.l.b16 %v3083
      %v3165 = vunpack.c.h.b16 %v3083
      %v3166 = vunpack.c.l.b16 %v3084
      %v3167 = vunpack.c.h.b16 %v3084
      %v3168 = vunpack.c.l.b16 %v3085
      %v3169 = vunpack.c.h.b16 %v3085
      %v3170 = vunpack.c.l.b16 %v3086
      %v3171 = vunpack.c.h.b16 %v3086
      %v3172 = vunpack.c.l.b16 %v3087
      %v3173 = vunpack.c.h.b16 %v3087
      %v3174 = vunpack.c.l.b16 %v3088
      %v3175 = vunpack.c.h.b16 %v3088
      %v3176 = vunpack.c.l.b16 %v3089
      %v3177 = vunpack.c.h.b16 %v3089
      %v3178 = vunpack.c.l.b16 %v3090
      %v3179 = vunpack.c.h.b16 %v3090
      %v3180 = vunpack.c.l.b16 %v3091
      %v3181 = vunpack.c.h.b16 %v3091
      %v3182 = vunpack.c.l.b16 %v3092
      %v3183 = vunpack.c.h.b16 %v3092
      %v3184 = vunpack.c.l.b16 %v3093
      %v3185 = vunpack.c.h.b16 %v3093
      %v3186 = vunpack.c.l.b16 %v3094
      %v3187 = vunpack.c.h.b16 %v3094
      %v3188 = vunpack.c.l.b16 %v3095
      %v3189 = vunpack.c.h.b16 %v3095
      %v3190 = vunpack.c.l.b16 %v3096
      %v3191 = vunpack.c.h.b16 %v3096
      %v3192 = vunpack.c.l.b16 %v3097
      %v3193 = vunpack.c.h.b16 %v3097
      %v3194 = vunpack.c.l.b16 %v3098
      %v3195 = vunpack.c.h.b16 %v3098
      %v3196 = vunpack.c.l.b16 %v3099
      %v3197 = vunpack.c.h.b16 %v3099
      %v3198 = vunpack.c.l.b16 %v3100
      %v3199 = vunpack.c.h.b16 %v3100
      %v3200 = vunpack.c.l.b16 %v3101
      %v3201 = vunpack.c.h.b16 %v3101
      %v3202 = vunpack.c.l.b16 %v3102
      %v3203 = vunpack.c.h.b16 %v3102
      %v3204 = vunpack.c.l.b16 %v3103
      %v3205 = vunpack.c.h.b16 %v3103
      %v3206 = vunpack.c.l.b16 %v3104
      %v3207 = vunpack.c.h.b16 %v3104
      %v3208 = vunpack.c.l.b16 %v3105
      %v3209 = vunpack.c.h.b16 %v3105
      %v3210 = vunpack.c.l.b16 %v3106
      %v3211 = vunpack.c.h.b16 %v3106
      %v3212 = vunpack.c.l.b16 %v3107
      %v3213 = vunpack.c.h.b16 %v3107
      %v3214 = vunpack.c.l.b16 %v3108
      %v3215 = vunpack.c.h.b16 %v3108
      %v3216 = vunpack.c.l.b16 %v3109
      %v3217 = vunpack.c.h.b16 %v3109
      %v3218 = vunpack.c.l.b16 %v3110
      %v3219 = vunpack.c.h.b16 %v3110
      %v3220 = vpack.c.b16 %v3158, %v3156
      %v3221 = vpack.c.b16 %v3159, %v3157
      %v3222 = vpack.c.b16 %v3162, %v3160
      %v3223 = vpack.c.b16 %v3163, %v3161
      %v3224 = vpack.c.b16 %v3166, %v3164
      %v3225 = vpack.c.b16 %v3167, %v3165
      %v3226 = vpack.c.b16 %v3170, %v3168
      %v3227 = vpack.c.b16 %v3171, %v3169
      %v3228 = vpack.c.b16 %v3174, %v3172
      %v3229 = vpack.c.b16 %v3175, %v3173
      %v3230 = vpack.c.b16 %v3178, %v3176
      %v3231 = vpack.c.b16 %v3179, %v3177
      %v3232 = vpack.c.b16 %v3182, %v3180
      %v3233 = vpack.c.b16 %v3183, %v3181
      %v3234 = vpack.c.b16 %v3186, %v3184
      %v3235 = vpack.c.b16 %v3187, %v3185
      %v3236 = vpack.c.b16 %v3190, %v3188
      %v3237 = vpack.c.b16 %v3191, %v3189
      %v3238 = vpack.c.b16 %v3194, %v3192
      %v3239 = vpack.c.b16 %v3195, %v3193
      %v3240 = vpack.c.b16 %v3198, %v3196
      %v3241 = vpack.c.b16 %v3199, %v3197
      %v3242 = vpack.c.b16 %v3202, %v3200
      %v3243 = vpack.c.b16 %v3203, %v3201
      %v3244 = vpack.c.b16 %v3206, %v3204
      %v3245 = vpack.c.b16 %v3207, %v3205
      %v3246 = vpack.c.b16 %v3210, %v3208
      %v3247 = vpack.c.b16 %v3211, %v3209
      %v3248 = vpack.c.b16 %v3214, %v3212
      %v3249 = vpack.c.b16 %v3215, %v3213
      %v3250 = vpack.c.b16 %v3218, %v3216
      %v3251 = vpack.c.b16 %v3219, %v3217
      %3284 = vmatprep.subr.bf16.mxu0 %v3221
      %3285 = vmatpush1.bf16.msra.mxu0 %v3220
      %3286 = vmatprep.subr.bf16.mxu0 %v3223
      %3287 = vmatpush1.bf16.msra.mxu0 %v3222
      %3288 = vmatprep.subr.bf16.mxu0 %v3225
      %3289 = vmatpush1.bf16.msra.mxu0 %v3224
      %3290 = vmatprep.subr.bf16.mxu0 %v3227
      %3291 = vmatpush1.bf16.msra.mxu0 %v3226
      %3292 = vmatprep.subr.bf16.mxu0 %v3229
      %3293 = vmatpush1.bf16.msra.mxu0 %v3228
      %3294 = vmatprep.subr.bf16.mxu0 %v3231
      %3295 = vmatpush1.bf16.msra.mxu0 %v3230
      %3296 = vmatprep.subr.bf16.mxu0 %v3233
      %3297 = vmatpush1.bf16.msra.mxu0 %v3232
      %3298 = vmatprep.subr.bf16.mxu0 %v3235
      %3299 = vmatpush1.bf16.msra.mxu0 %v3234
      %3300 = vmatprep.subr.bf16.mxu0 %v3237
      %3301 = vmatpush1.bf16.msra.mxu0 %v3236
      %3302 = vmatprep.subr.bf16.mxu0 %v3239
      %3303 = vmatpush1.bf16.msra.mxu0 %v3238
      %3304 = vmatprep.subr.bf16.mxu0 %v3241
      %3305 = vmatpush1.bf16.msra.mxu0 %v3240
      %3306 = vmatprep.subr.bf16.mxu0 %v3243
      %3307 = vmatpush1.bf16.msra.mxu0 %v3242
      %3308 = vmatprep.subr.bf16.mxu0 %v3245
      %3309 = vmatpush1.bf16.msra.mxu0 %v3244
      %3310 = vmatprep.subr.bf16.mxu0 %v3247
      %3311 = vmatpush1.bf16.msra.mxu0 %v3246
      %3312 = vmatprep.subr.bf16.mxu0 %v3249
      %3313 = vmatpush1.bf16.msra.mxu0 %v3248
      %3314 = vmatprep.subr.bf16.mxu0 %v3251
      %3315 = vmatpush1.bf16.msra.mxu0 %v3250
      %3316 = vmatprep.mubr.bf16.mxu0 %v3063
      %3317 = vmatmul.mubr.bf16.gmra.mrb[0].mxu0 %v3062
      %v3318 = vpop.f32.mrb[0].mxu0
      %v3319 = vadd.f32 %v3117, %v3318
      %v3320 = vpop.f32.mrb[0].mxu0
      %v3321 = vadd.f32 %v3121, %v3320
      %v3322 = vpop.f32.mrb[0].mxu0
      %v3323 = vadd.f32 %v3117, %v3322
      %v3324 = vpop.f32.mrb[0].mxu0
      %v3325 = vadd.f32 %v3121, %v3324
      %3326 = vmatprep.mubr.bf16.mxu0 %v3065
      %3327 = vmatmul.mubr.bf16.gmra.mrb[0].mxu0 %v3064
      %v3328 = vpop.f32.mrb[0].mxu0
      %v3329 = vadd.f32 %v3117, %v3328
      %v3330 = vpop.f32.mrb[0].mxu0
      %v3331 = vadd.f32 %v3121, %v3330
      %v3332 = vpop.f32.mrb[0].mxu0
      %v3333 = vadd.f32 %v3117, %v3332
      %v3334 = vpop.f32.mrb[0].mxu0
      %v3335 = vadd.f32 %v3121, %v3334
      %3336 = vmatprep.mubr.bf16.mxu0 %v3067
      %3337 = vmatmul.mubr.bf16.gmra.mrb[0].mxu0 %v3066
      %v3338 = vpop.f32.mrb[0].mxu0
      %v3339 = vadd.f32 %v3117, %v3338
      %v3340 = vpop.f32.mrb[0].mxu0
      %v3341 = vadd.f32 %v3121, %v3340
      %v3342 = vpop.f32.mrb[0].mxu0
      %v3343 = vadd.f32 %v3117, %v3342
      %v3344 = vpop.f32.mrb[0].mxu0
      %v3345 = vadd.f32 %v3121, %v3344
      %3346 = vmatprep.mubr.bf16.mxu0 %v3069
      %3347 = vmatmul.mubr.bf16.gmra.mrb[0].mxu0 %v3068
      %v3348 = vpop.f32.mrb[0].mxu0
      %v3349 = vadd.f32 %v3117, %v3348
      %v3350 = vpop.f32.mrb[0].mxu0
      %v3351 = vadd.f32 %v3121, %v3350
      %v3352 = vpop.f32.mrb[0].mxu0
      %v3353 = vadd.f32 %v3117, %v3352
      %v3354 = vpop.f32.mrb[0].mxu0
      %v3355 = vadd.f32 %v3121, %v3354
      %3356 = vmatprep.mubr.bf16.mxu0 %v3071
      %3357 = vmatmul.mubr.bf16.gmra.mrb[0].mxu0 %v3070
      %v3358 = vpop.f32.mrb[0].mxu0
      %v3359 = vadd.f32 %v3117, %v3358
      %v3360 = vpop.f32.mrb[0].mxu0
      %v3361 = vadd.f32 %v3121, %v3360
      %v3362 = vpop.f32.mrb[0].mxu0
      %v3363 = vadd.f32 %v3117, %v3362
      %v3364 = vpop.f32.mrb[0].mxu0
      %v3365 = vadd.f32 %v3121, %v3364
      %3366 = vmatprep.mubr.bf16.mxu0 %v3073
      %3367 = vmatmul.mubr.bf16.gmra.mrb[0].mxu0 %v3072
      %v3368 = vpop.f32.mrb[0].mxu0
      %v3369 = vadd.f32 %v3117, %v3368
      %v3370 = vpop.f32.mrb[0].mxu0
      %v3371 = vadd.f32 %v3121, %v3370
      %v3372 = vpop.f32.mrb[0].mxu0
      %v3373 = vadd.f32 %v3117, %v3372
      %v3374 = vpop.f32.mrb[0].mxu0
      %v3375 = vadd.f32 %v3121, %v3374
      %3376 = vmatprep.mubr.bf16.mxu0 %v3075
      %3377 = vmatmul.mubr.bf16.gmra.mrb[0].mxu0 %v3074
      %v3378 = vpop.f32.mrb[0].mxu0
      %v3379 = vadd.f32 %v3117, %v3378
      %v3380 = vpop.f32.mrb[0].mxu0
      %v3381 = vadd.f32 %v3121, %v3380
      %v3382 = vpop.f32.mrb[0].mxu0
      %v3383 = vadd.f32 %v3117, %v3382
      %v3384 = vpop.f32.mrb[0].mxu0
      %v3385 = vadd.f32 %v3121, %v3384
      %3386 = vmatprep.mubr.bf16.mxu0 %v3077
      %3387 = vmatmul.mubr.bf16.gmra.mrb[0].mxu0 %v3076
      %v3388 = vpop.f32.mrb[0].mxu0
      %v3389 = vadd.f32 %v3117, %v3388
      %v3390 = vpop.f32.mrb[0].mxu0
      %v3391 = vadd.f32 %v3121, %v3390
      %v3392 = vpop.f32.mrb[0].mxu0
      %v3393 = vadd.f32 %v3117, %v3392
      %v3394 = vpop.f32.mrb[0].mxu0
      %v3395 = vadd.f32 %v3121, %v3394
      %3396 = vdwg.mxu0
      %v3397 = vmax.f32 %v3319, 0.0
      %v3398 = vmax.f32 %v3321, 0.0
      %v3399 = vmax.f32 %v3323, 0.0
      %v3400 = vmax.f32 %v3325, 0.0
      %v3401 = vmax.f32 %v3329, 0.0
      %v3402 = vmax.f32 %v3331, 0.0
      %v3403 = vmax.f32 %v3333, 0.0
      %v3404 = vmax.f32 %v3335, 0.0
      %v3405 = vmax.f32 %v3339, 0.0
      %v3406 = vmax.f32 %v3341, 0.0
      %v3407 = vmax.f32 %v3343, 0.0
      %v3408 = vmax.f32 %v3345, 0.0
      %v3409 = vmax.f32 %v3349, 0.0
      %v3410 = vmax.f32 %v3351, 0.0
      %v3411 = vmax.f32 %v3353, 0.0
      %v3412 = vmax.f32 %v3355, 0.0
      %v3413 = vmax.f32 %v3359, 0.0
      %v3414 = vmax.f32 %v3361, 0.0
      %v3415 = vmax.f32 %v3363, 0.0
      %v3416 = vmax.f32 %v3365, 0.0
      %v3417 = vmax.f32 %v3369, 0.0
      %v3418 = vmax.f32 %v3371, 0.0
      %v3419 = vmax.f32 %v3373, 0.0
      %v3420 = vmax.f32 %v3375, 0.0
      %v3421 = vmax.f32 %v3379, 0.0
      %v3422 = vmax.f32 %v3381, 0.0
      %v3423 = vmax.f32 %v3383, 0.0
      %v3424 = vmax.f32 %v3385, 0.0
      %v3425 = vmax.f32 %v3389, 0.0
      %v3426 = vmax.f32 %v3391, 0.0
      %v3427 = vmax.f32 %v3393, 0.0
      %v3428 = vmax.f32 %v3395, 0.0
      %v3429 = vpack.c.bf16 %v3399, %v3397
      %v3430 = vpack.c.bf16 %v3400, %v3398
      %v3431 = vpack.c.bf16 %v3403, %v3401
      %v3432 = vpack.c.bf16 %v3404, %v3402
      %v3433 = vpack.c.bf16 %v3407, %v3405
      %v3434 = vpack.c.bf16 %v3408, %v3406
      %v3435 = vpack.c.bf16 %v3411, %v3409
      %v3436 = vpack.c.bf16 %v3412, %v3410
      %v3437 = vpack.c.bf16 %v3415, %v3413
      %v3438 = vpack.c.bf16 %v3416, %v3414
      %v3439 = vpack.c.bf16 %v3419, %v3417
      %v3440 = vpack.c.bf16 %v3420, %v3418
      %v3441 = vpack.c.bf16 %v3423, %v3421
      %v3442 = vpack.c.bf16 %v3424, %v3422
      %v3443 = vpack.c.bf16 %v3427, %v3425
      %v3444 = vpack.c.bf16 %v3428, %v3426
      %v3445 = vld [vmem:[%s3] sm:$0xff]
      %v3446 = vld [vmem:[%s3 + $0x8] sm:$0xf]
      %v3447 = vld [vmem:[%s3 + $0xc] sm:$0xff]
      %v3448 = vld [vmem:[%s3 + $0x14] sm:$0xf]
      %v3449 = vld [vmem:[%s3 + $0x18] sm:$0xff]
      %v3450 = vld [vmem:[%s3 + $0x20] sm:$0xf]
      %v3451 = vld [vmem:[%s3 + $0x24] sm:$0xff]
      %v3452 = vld [vmem:[%s3 + $0x2c] sm:$0xf]
      %v3453 = vld [vmem:[%s3 + $0x30] sm:$0xff]
      %v3454 = vld [vmem:[%s3 + $0x38] sm:$0xf]
      %v3455 = vld [vmem:[%s3 + $0x3c] sm:$0xff]
      %v3456 = vld [vmem:[%s3 + $0x44] sm:$0xf]
      %v3457 = vld [vmem:[%s3 + $0x48] sm:$0xff]
      %v3458 = vld [vmem:[%s3 + $0x50] sm:$0xf]
      %v3459 = vld [vmem:[%s3 + $0x54] sm:$0xff]
      %v3460 = vld [vmem:[%s3 + $0x5c] sm:$0xf]
      %v3461 = vld [vmem:[%s3 + $0x60] sm:$0xff]
      %v3462 = vld [vmem:[%s3 + $0x68] sm:$0xf]
      %v3463 = vld [vmem:[%s3 + $0x6c] sm:$0xff]
      %v3464 = vld [vmem:[%s3 + $0x74] sm:$0xf]
      %v3465 = vld [vmem:[%s3 + $0x78] sm:$0xff]
      %v3466 = vld [vmem:[%s3 + $0x80] sm:$0xf]
      %v3467 = vld [vmem:[%s3 + $0x84] sm:$0xff]
      %v3468 = vld [vmem:[%s3 + $0x8c] sm:$0xf]
      %v3469 = vld [vmem:[%s3 + $0x90] sm:$0xff]
      %v3470 = vld [vmem:[%s3 + $0x98] sm:$0xf]
      %v3471 = vld [vmem:[%s3 + $0x9c] sm:$0xff]
      %v3472 = vld [vmem:[%s3 + $0xa4] sm:$0xf]
      %v3473 = vld [vmem:[%s3 + $0xa8] sm:$0xff]
      %v3474 = vld [vmem:[%s3 + $0xb0] sm:$0xf]
      %v3475 = vld [vmem:[%s3 + $0xb4] sm:$0xff]
      %v3476 = vld [vmem:[%s3 + $0xbc] sm:$0xf]
      %v3477 = vld [vmem:[%s3 + $0xc0] sm:$0xff]
      %v3478 = vld [vmem:[%s3 + $0xc8] sm:$0xf]
      %v3479 = vld [vmem:[%s3 + $0xcc] sm:$0xff]
      %v3480 = vld [vmem:[%s3 + $0xd4] sm:$0xf]
      %v3481 = vld [vmem:[%s3 + $0xd8] sm:$0xff]
      %v3482 = vld [vmem:[%s3 + $0xe0] sm:$0xf]
      %v3483 = vld [vmem:[%s3 + $0xe4] sm:$0xff]
      %v3484 = vld [vmem:[%s3 + $0xec] sm:$0xf]
      %v3485 = vld [vmem:[%s3 + $0xf0] sm:$0xff]
      %v3486 = vld [vmem:[%s3 + $0xf8] sm:$0xf]
      %v3487 = vld [vmem:[%s3 + $0xfc] sm:$0xff]
      %v3488 = vld [vmem:[%s3 + $0x104] sm:$0xf]
      %v3489 = vld [vmem:[%s3 + $0x108] sm:$0xff]
      %v3490 = vld [vmem:[%s3 + $0x110] sm:$0xf]
      %v3491 = vld [vmem:[%s3 + $0x114] sm:$0xff]
      %v3492 = vld [vmem:[%s3 + $0x11c] sm:$0xf]
      %v3493 = vld [vmem:[%s3 + $0x120] sm:$0xff]
      %v3494 = vld [vmem:[%s3 + $0x128] sm:$0xf]
      %v3495 = vld [vmem:[%s3 + $0x12c] sm:$0xff]
      %v3496 = vld [vmem:[%s3 + $0x134] sm:$0xf]
      %v3497 = vld [vmem:[%s3 + $0x138] sm:$0xff]
      %v3498 = vld [vmem:[%s3 + $0x140] sm:$0xf]
      %v3499 = vld [vmem:[%s3 + $0x144] sm:$0xff]
      %v3500 = vld [vmem:[%s3 + $0x14c] sm:$0xf]
      %v3501 = vld [vmem:[%s3 + $0x150] sm:$0xff]
      %v3502 = vld [vmem:[%s3 + $0x158] sm:$0xf]
      %v3503 = vld [vmem:[%s3 + $0x15c] sm:$0xff]
      %v3504 = vld [vmem:[%s3 + $0x164] sm:$0xf]
      %v3505 = vld [vmem:[%s3 + $0x168] sm:$0xff]
      %v3506 = vld [vmem:[%s3 + $0x170] sm:$0xf]
      %v3507 = vld [vmem:[%s3 + $0x174] sm:$0xff]
      %v3508 = vld [vmem:[%s3 + $0x17c] sm:$0xf]
      %v3573 = vunpack.c.l.b16 %v3445
      %v3574 = vunpack.c.h.b16 %v3445
      %v3575 = vunpack.c.l.b16 %v3446
      %v3576 = vunpack.c.l.b16 %v3447
      %v3577 = vunpack.c.h.b16 %v3447
      %v3578 = vunpack.c.l.b16 %v3448
      %v3579 = vunpack.c.l.b16 %v3449
      %v3580 = vunpack.c.h.b16 %v3449
      %v3581 = vunpack.c.l.b16 %v3450
      %v3582 = vunpack.c.l.b16 %v3451
      %v3583 = vunpack.c.h.b16 %v3451
      %v3584 = vunpack.c.l.b16 %v3452
      %v3585 = vunpack.c.l.b16 %v3453
      %v3586 = vunpack.c.h.b16 %v3453
      %v3587 = vunpack.c.l.b16 %v3454
      %v3588 = vunpack.c.l.b16 %v3455
      %v3589 = vunpack.c.h.b16 %v3455
      %v3590 = vunpack.c.l.b16 %v3456
      %v3591 = vunpack.c.l.b16 %v3457
      %v3592 = vunpack.c.h.b16 %v3457
      %v3593 = vunpack.c.l.b16 %v3458
      %v3594 = vunpack.c.l.b16 %v3459
      %v3595 = vunpack.c.h.b16 %v3459
      %v3596 = vunpack.c.l.b16 %v3460
      %v3597 = vunpack.c.l.b16 %v3461
      %v3598 = vunpack.c.h.b16 %v3461
      %v3599 = vunpack.c.l.b16 %v3462
      %v3600 = vunpack.c.l.b16 %v3463
      %v3601 = vunpack.c.h.b16 %v3463
      %v3602 = vunpack.c.l.b16 %v3464
      %v3603 = vunpack.c.l.b16 %v3465
      %v3604 = vunpack.c.h.b16 %v3465
      %v3605 = vunpack.c.l.b16 %v3466
      %v3606 = vunpack.c.l.b16 %v3467
      %v3607 = vunpack.c.h.b16 %v3467
      %v3608 = vunpack.c.l.b16 %v3468
      %v3609 = vunpack.c.l.b16 %v3469
      %v3610 = vunpack.c.h.b16 %v3469
      %v3611 = vunpack.c.l.b16 %v3470
      %v3612 = vunpack.c.l.b16 %v3471
      %v3613 = vunpack.c.h.b16 %v3471
      %v3614 = vunpack.c.l.b16 %v3472
      %v3615 = vunpack.c.l.b16 %v3473
      %v3616 = vunpack.c.h.b16 %v3473
      %v3617 = vunpack.c.l.b16 %v3474
      %v3618 = vunpack.c.l.b16 %v3475
      %v3619 = vunpack.c.h.b16 %v3475
      %v3620 = vunpack.c.l.b16 %v3476
      %v3621 = vunpack.c.l.b16 %v3477
      %v3622 = vunpack.c.h.b16 %v3477
      %v3623 = vunpack.c.l.b16 %v3478
      %v3624 = vunpack.c.l.b16 %v3479
      %v3625 = vunpack.c.h.b16 %v3479
      %v3626 = vunpack.c.l.b16 %v3480
      %v3627 = vunpack.c.l.b16 %v3481
      %v3628 = vunpack.c.h.b16 %v3481
      %v3629 = vunpack.c.l.b16 %v3482
      %v3630 = vunpack.c.l.b16 %v3483
      %v3631 = vunpack.c.h.b16 %v3483
      %v3632 = vunpack.c.l.b16 %v3484
      %v3633 = vunpack.c.l.b16 %v3485
      %v3634 = vunpack.c.h.b16 %v3485
      %v3635 = vunpack.c.l.b16 %v3486
      %v3636 = vunpack.c.l.b16 %v3487
      %v3637 = vunpack.c.h.b16 %v3487
      %v3638 = vunpack.c.l.b16 %v3488
      %v3639 = vunpack.c.l.b16 %v3489
      %v3640 = vunpack.c.h.b16 %v3489
      %v3641 = vunpack.c.l.b16 %v3490
      %v3642 = vunpack.c.l.b16 %v3491
      %v3643 = vunpack.c.h.b16 %v3491
      %v3644 = vunpack.c.l.b16 %v3492
      %v3645 = vunpack.c.l.b16 %v3493
      %v3646 = vunpack.c.h.b16 %v3493
      %v3647 = vunpack.c.l.b16 %v3494
      %v3648 = vunpack.c.l.b16 %v3495
      %v3649 = vunpack.c.h.b16 %v3495
      %v3650 = vunpack.c.l.b16 %v3496
      %v3651 = vunpack.c.l.b16 %v3497
      %v3652 = vunpack.c.h.b16 %v3497
      %v3653 = vunpack.c.l.b16 %v3498
      %v3654 = vunpack.c.l.b16 %v3499
      %v3655 = vunpack.c.h.b16 %v3499
      %v3656 = vunpack.c.l.b16 %v3500
      %v3657 = vunpack.c.l.b16 %v3501
      %v3658 = vunpack.c.h.b16 %v3501
      %v3659 = vunpack.c.l.b16 %v3502
      %v3660 = vunpack.c.l.b16 %v3503
      %v3661 = vunpack.c.h.b16 %v3503
      %v3662 = vunpack.c.l.b16 %v3504
      %v3663 = vunpack.c.l.b16 %v3505
      %v3664 = vunpack.c.h.b16 %v3505
      %v3665 = vunpack.c.l.b16 %v3506
      %v3666 = vunpack.c.l.b16 %v3507
      %v3667 = vunpack.c.h.b16 %v3507
      %v3668 = vunpack.c.l.b16 %v3508
      %v3669 = vpack.c.b16 %v3576, %v3573
      %v3670 = vpack.c.b16 %v3577, %v3574
      %v3671 = vpack.c.b16 %v3578, %v3575
      %v3672 = vpack.c.b16 %v3582, %v3579
      %v3673 = vpack.c.b16 %v3583, %v3580
      %v3674 = vpack.c.b16 %v3584, %v3581
      %v3675 = vpack.c.b16 %v3588, %v3585
      %v3676 = vpack.c.b16 %v3589, %v3586
      %v3677 = vpack.c.b16 %v3590, %v3587
      %v3678 = vpack.c.b16 %v3594, %v3591
      %v3679 = vpack.c.b16 %v3595, %v3592
      %v3680 = vpack.c.b16 %v3596, %v3593
      %v3681 = vpack.c.b16 %v3600, %v3597
      %v3682 = vpack.c.b16 %v3601, %v3598
      %v3683 = vpack.c.b16 %v3602, %v3599
      %v3684 = vpack.c.b16 %v3606, %v3603
      %v3685 = vpack.c.b16 %v3607, %v3604
      %v3686 = vpack.c.b16 %v3608, %v3605
      %v3687 = vpack.c.b16 %v3612, %v3609
      %v3688 = vpack.c.b16 %v3613, %v3610
      %v3689 = vpack.c.b16 %v3614, %v3611
      %v3690 = vpack.c.b16 %v3618, %v3615
      %v3691 = vpack.c.b16 %v3619, %v3616
      %v3692 = vpack.c.b16 %v3620, %v3617
      %v3693 = vpack.c.b16 %v3624, %v3621
      %v3694 = vpack.c.b16 %v3625, %v3622
      %v3695 = vpack.c.b16 %v3626, %v3623
      %v3696 = vpack.c.b16 %v3630, %v3627
      %v3697 = vpack.c.b16 %v3631, %v3628
      %v3698 = vpack.c.b16 %v3632, %v3629
      %v3699 = vpack.c.b16 %v3636, %v3633
      %v3700 = vpack.c.b16 %v3637, %v3634
      %v3701 = vpack.c.b16 %v3638, %v3635
      %v3702 = vpack.c.b16 %v3642, %v3639
      %v3703 = vpack.c.b16 %v3643, %v3640
      %v3704 = vpack.c.b16 %v3644, %v3641
      %v3705 = vpack.c.b16 %v3648, %v3645
      %v3706 = vpack.c.b16 %v3649, %v3646
      %v3707 = vpack.c.b16 %v3650, %v3647
      %v3708 = vpack.c.b16 %v3654, %v3651
      %v3709 = vpack.c.b16 %v3655, %v3652
      %v3710 = vpack.c.b16 %v3656, %v3653
      %v3711 = vpack.c.b16 %v3660, %v3657
      %v3712 = vpack.c.b16 %v3661, %v3658
      %v3713 = vpack.c.b16 %v3662, %v3659
      %v3714 = vpack.c.b16 %v3666, %v3663
      %v3715 = vpack.c.b16 %v3667, %v3664
      %v3716 = vpack.c.b16 %v3668, %v3665
      %3765 = vmatprep.subr.bf16.mxu0 %v3670
      %3766 = vmatpush1.bf16.msra.mxu0 %v3669
      %3767 = vmatprep.subr.bf16.mxu0 %v3673
      %3768 = vmatpush1.bf16.msra.mxu0 %v3672
      %3769 = vmatprep.subr.bf16.mxu0 %v3676
      %3770 = vmatpush1.bf16.msra.mxu0 %v3675
      %3771 = vmatprep.subr.bf16.mxu0 %v3679
      %3772 = vmatpush1.bf16.msra.mxu0 %v3678
      %3773 = vmatprep.subr.bf16.mxu0 %v3682
      %3774 = vmatpush1.bf16.msra.mxu0 %v3681
      %3775 = vmatprep.subr.bf16.mxu0 %v3685
      %3776 = vmatpush1.bf16.msra.mxu0 %v3684
      %3777 = vmatprep.subr.bf16.mxu0 %v3688
      %3778 = vmatpush1.bf16.msra.mxu0 %v3687
      %3779 = vmatprep.subr.bf16.mxu0 %v3691
      %3780 = vmatpush1.bf16.msra.mxu0 %v3690
      %3781 = vmatprep.subr.bf16.mxu0 %v3694
      %3782 = vmatpush1.bf16.msra.mxu0 %v3693
      %3783 = vmatprep.subr.bf16.mxu0 %v3697
      %3784 = vmatpush1.bf16.msra.mxu0 %v3696
      %3785 = vmatprep.subr.bf16.mxu0 %v3700
      %3786 = vmatpush1.bf16.msra.mxu0 %v3699
      %3787 = vmatprep.subr.bf16.mxu0 %v3703
      %3788 = vmatpush1.bf16.msra.mxu0 %v3702
      %3789 = vmatprep.subr.bf16.mxu0 %v3706
      %3790 = vmatpush1.bf16.msra.mxu0 %v3705
      %3791 = vmatprep.subr.bf16.mxu0 %v3709
      %3792 = vmatpush1.bf16.msra.mxu0 %v3708
      %3793 = vmatprep.subr.bf16.mxu0 %v3712
      %3794 = vmatpush1.bf16.msra.mxu0 %v3711
      %3795 = vmatprep.subr.bf16.mxu0 %v3715
      %3796 = vmatpush1.bf16.msra.mxu0 %v3714
      %3797 = vmatprep.mubr.bf16.mxu0 %v3430
      %3798 = vmatmul.mubr.bf16.gmra.mrb[0].mxu0 %v3429
      %v3799 = vpop.f32.mrb[0].mxu0
      %v3800 = vadd.f32 0.0, %v3799
      %v3801 = vpop.f32.mrb[0].mxu0
      %v3802 = vadd.f32 0.0, %v3801
      %v3803 = vpop.f32.mrb[0].mxu0
      %v3804 = vadd.f32 0.0, %v3803
      %v3805 = vpop.f32.mrb[0].mxu0
      %v3806 = vadd.f32 0.0, %v3805
      %3807 = vmatprep.mubr.bf16.mxu0 %v3432
      %3808 = vmatmul.mubr.bf16.gmra.mrb[0].mxu0 %v3431
      %v3809 = vpop.f32.mrb[0].mxu0
      %v3810 = vadd.f32 0.0, %v3809
      %v3811 = vpop.f32.mrb[0].mxu0
      %v3812 = vadd.f32 0.0, %v3811
      %v3813 = vpop.f32.mrb[0].mxu0
      %v3814 = vadd.f32 0.0, %v3813
      %v3815 = vpop.f32.mrb[0].mxu0
      %v3816 = vadd.f32 0.0, %v3815
      %3817 = vmatprep.mubr.bf16.mxu0 %v3434
      %3818 = vmatmul.mubr.bf16.gmra.mrb[0].mxu0 %v3433
      %v3819 = vpop.f32.mrb[0].mxu0
      %v3820 = vadd.f32 0.0, %v3819
      %v3821 = vpop.f32.mrb[0].mxu0
      %v3822 = vadd.f32 0.0, %v3821
      %v3823 = vpop.f32.mrb[0].mxu0
      %v3824 = vadd.f32 0.0, %v3823
      %v3825 = vpop.f32.mrb[0].mxu0
      %v3826 = vadd.f32 0.0, %v3825
      %3827 = vmatprep.mubr.bf16.mxu0 %v3436
      %3828 = vmatmul.mubr.bf16.gmra.mrb[0].mxu0 %v3435
      %v3829 = vpop.f32.mrb[0].mxu0
      %v3830 = vadd.f32 0.0, %v3829
      %v3831 = vpop.f32.mrb[0].mxu0
      %v3832 = vadd.f32 0.0, %v3831
      %v3833 = vpop.f32.mrb[0].mxu0
      %v3834 = vadd.f32 0.0, %v3833
      %v3835 = vpop.f32.mrb[0].mxu0
      %v3836 = vadd.f32 0.0, %v3835
      %3837 = vmatprep.mubr.bf16.mxu0 %v3438
      %3838 = vmatmul.mubr.bf16.gmra.mrb[0].mxu0 %v3437
      %v3839 = vpop.f32.mrb[0].mxu0
      %v3840 = vadd.f32 0.0, %v3839
      %v3841 = vpop.f32.mrb[0].mxu0
      %v3842 = vadd.f32 0.0, %v3841
      %v3843 = vpop.f32.mrb[0].mxu0
      %v3844 = vadd.f32 0.0, %v3843
      %v3845 = vpop.f32.mrb[0].mxu0
      %v3846 = vadd.f32 0.0, %v3845
      %3847 = vmatprep.mubr.bf16.mxu0 %v3440
      %3848 = vmatmul.mubr.bf16.gmra.mrb[0].mxu0 %v3439
      %v3849 = vpop.f32.mrb[0].mxu0
      %v3850 = vadd.f32 0.0, %v3849
      %v3851 = vpop.f32.mrb[0].mxu0
      %v3852 = vadd.f32 0.0, %v3851
      %v3853 = vpop.f32.mrb[0].mxu0
      %v3854 = vadd.f32 0.0, %v3853
      %v3855 = vpop.f32.mrb[0].mxu0
      %v3856 = vadd.f32 0.0, %v3855
      %3857 = vmatprep.mubr.bf16.mxu0 %v3442
      %3858 = vmatmul.mubr.bf16.gmra.mrb[0].mxu0 %v3441
      %v3859 = vpop.f32.mrb[0].mxu0
      %v3860 = vadd.f32 0.0, %v3859
      %v3861 = vpop.f32.mrb[0].mxu0
      %v3862 = vadd.f32 0.0, %v3861
      %v3863 = vpop.f32.mrb[0].mxu0
      %v3864 = vadd.f32 0.0, %v3863
      %v3865 = vpop.f32.mrb[0].mxu0
      %v3866 = vadd.f32 0.0, %v3865
      %3867 = vmatprep.mubr.bf16.mxu0 %v3444
      %3868 = vmatmul.mubr.bf16.gmra.mrb[0].mxu0 %v3443
      %v3869 = vpop.f32.mrb[0].mxu0
      %v3870 = vadd.f32 0.0, %v3869
      %v3871 = vpop.f32.mrb[0].mxu0
      %v3872 = vadd.f32 0.0, %v3871
      %v3873 = vpop.f32.mrb[0].mxu0
      %v3874 = vadd.f32 0.0, %v3873
      %v3875 = vpop.f32.mrb[0].mxu0
      %v3876 = vadd.f32 0.0, %v3875
      %3877 = vdwg.mxu0
      %3878 = vmatprep.subr.bf16.mxu0 0
      %3879 = vmatpush1.bf16.msra.mxu0 %v3671
      %3880 = vmatprep.subr.bf16.mxu0 0
      %3881 = vmatpush1.bf16.msra.mxu0 %v3674
      %3882 = vmatprep.subr.bf16.mxu0 0
      %3883 = vmatpush1.bf16.msra.mxu0 %v3677
      %3884 = vmatprep.subr.bf16.mxu0 0
      %3885 = vmatpush1.bf16.msra.mxu0 %v3680
      %3886 = vmatprep.subr.bf16.mxu0 0
      %3887 = vmatpush1.bf16.msra.mxu0 %v3683
      %3888 = vmatprep.subr.bf16.mxu0 0
      %3889 = vmatpush1.bf16.msra.mxu0 %v3686
      %3890 = vmatprep.subr.bf16.mxu0 0
      %3891 = vmatpush1.bf16.msra.mxu0 %v3689
      %3892 = vmatprep.subr.bf16.mxu0 0
      %3893 = vmatpush1.bf16.msra.mxu0 %v3692
      %3894 = vmatprep.subr.bf16.mxu0 0
      %3895 = vmatpush1.bf16.msra.mxu0 %v3695
      %3896 = vmatprep.subr.bf16.mxu0 0
      %3897 = vmatpush1.bf16.msra.mxu0 %v3698
      %3898 = vmatprep.subr.bf16.mxu0 0
      %3899 = vmatpush1.bf16.msra.mxu0 %v3701
      %3900 = vmatprep.subr.bf16.mxu0 0
      %3901 = vmatpush1.bf16.msra.mxu0 %v3704
      %3902 = vmatprep.subr.bf16.mxu0 0
      %3903 = vmatpush1.bf16.msra.mxu0 %v3707
      %3904 = vmatprep.subr.bf16.mxu0 0
      %3905 = vmatpush1.bf16.msra.mxu0 %v3710
      %3906 = vmatprep.subr.bf16.mxu0 0
      %3907 = vmatpush1.bf16.msra.mxu0 %v3713
      %3908 = vmatprep.subr.bf16.mxu0 0
      %3909 = vmatpush1.bf16.msra.mxu0 %v3716
      %3910 = vmatprep.mubr.bf16.mxu0 %v3430
      %3911 = vmatmul.mubr.bf16.gmra.mrb[0].mxu0 %v3429
      %v3912 = vpop.f32.mrb[0].mxu0
      %v3913 = vadd.f32 0.0, %v3912
      %v3914 = vpop.f32.mrb[0].mxu0
      %v3915 = vpop.f32.mrb[0].mxu0
      %v3916 = vadd.f32 0.0, %v3915
      %v3917 = vpop.f32.mrb[0].mxu0
      %3918 = vmatprep.mubr.bf16.mxu0 %v3432
      %3919 = vmatmul.mubr.bf16.gmra.mrb[0].mxu0 %v3431
      %v3920 = vpop.f32.mrb[0].mxu0
      %v3921 = vadd.f32 0.0, %v3920
      %v3922 = vpop.f32.mrb[0].mxu0
      %v3923 = vpop.f32.mrb[0].mxu0
      %v3924 = vadd.f32 0.0, %v3923
      %v3925 = vpop.f32.mrb[0].mxu0
      %3926 = vmatprep.mubr.bf16.mxu0 %v3434
      %3927 = vmatmul.mubr.bf16.gmra.mrb[0].mxu0 %v3433
      %v3928 = vpop.f32.mrb[0].mxu0
      %v3929 = vadd.f32 0.0, %v3928
      %v3930 = vpop.f32.mrb[0].mxu0
      %v3931 = vpop.f32.mrb[0].mxu0
      %v3932 = vadd.f32 0.0, %v3931
      %v3933 = vpop.f32.mrb[0].mxu0
      %3934 = vmatprep.mubr.bf16.mxu0 %v3436
      %3935 = vmatmul.mubr.bf16.gmra.mrb[0].mxu0 %v3435
      %v3936 = vpop.f32.mrb[0].mxu0
      %v3937 = vadd.f32 0.0, %v3936
      %v3938 = vpop.f32.mrb[0].mxu0
      %v3939 = vpop.f32.mrb[0].mxu0
      %v3940 = vadd.f32 0.0, %v3939
      %v3941 = vpop.f32.mrb[0].mxu0
      %3942 = vmatprep.mubr.bf16.mxu0 %v3438
      %3943 = vmatmul.mubr.bf16.gmra.mrb[0].mxu0 %v3437
      %v3944 = vpop.f32.mrb[0].mxu0
      %v3945 = vadd.f32 0.0, %v3944
      %v3946 = vpop.f32.mrb[0].mxu0
      %v3947 = vpop.f32.mrb[0].mxu0
      %v3948 = vadd.f32 0.0, %v3947
      %v3949 = vpop.f32.mrb[0].mxu0
      %3950 = vmatprep.mubr.bf16.mxu0 %v3440
      %3951 = vmatmul.mubr.bf16.gmra.mrb[0].mxu0 %v3439
      %v3952 = vpop.f32.mrb[0].mxu0
      %v3953 = vadd.f32 0.0, %v3952
      %v3954 = vpop.f32.mrb[0].mxu0
      %v3955 = vpop.f32.mrb[0].mxu0
      %v3956 = vadd.f32 0.0, %v3955
      %v3957 = vpop.f32.mrb[0].mxu0
      %3958 = vmatprep.mubr.bf16.mxu0 %v3442
      %3959 = vmatmul.mubr.bf16.gmra.mrb[0].mxu0 %v3441
      %v3960 = vpop.f32.mrb[0].mxu0
      %v3961 = vadd.f32 0.0, %v3960
      %v3962 = vpop.f32.mrb[0].mxu0
      %v3963 = vpop.f32.mrb[0].mxu0
      %v3964 = vadd.f32 0.0, %v3963
      %v3965 = vpop.f32.mrb[0].mxu0
      %3966 = vmatprep.mubr.bf16.mxu0 %v3444
      %3967 = vmatmul.mubr.bf16.gmra.mrb[0].mxu0 %v3443
      %v3968 = vpop.f32.mrb[0].mxu0
      %v3969 = vadd.f32 0.0, %v3968
      %v3970 = vpop.f32.mrb[0].mxu0
      %v3971 = vpop.f32.mrb[0].mxu0
      %v3972 = vadd.f32 0.0, %v3971
      %v3973 = vpop.f32.mrb[0].mxu0
      %3974 = vdwg.mxu0
      %v3975 = vld [vmem:[%s6 + $0x10] ss:$0 sm:$0xff]
      %v3976 = vadd.f32 %v3913, %v3975
      %v3977 = vadd.f32 %v3916, %v3975
      %v3978 = vadd.f32 %v3921, %v3975
      %v3979 = vadd.f32 %v3924, %v3975
      %v3980 = vadd.f32 %v3929, %v3975
      %v3981 = vadd.f32 %v3932, %v3975
      %v3982 = vadd.f32 %v3937, %v3975
      %v3983 = vadd.f32 %v3940, %v3975
      %v3984 = vadd.f32 %v3945, %v3975
      %v3985 = vadd.f32 %v3948, %v3975
      %v3986 = vadd.f32 %v3953, %v3975
      %v3987 = vadd.f32 %v3956, %v3975
      %v3988 = vadd.f32 %v3961, %v3975
      %v3989 = vadd.f32 %v3964, %v3975
      %v3990 = vadd.f32 %v3969, %v3975
      %v3991 = vadd.f32 %v3972, %v3975
      %s3992 = scalar_lea.vmem %s2, 256
      %v3993 = vld [vmem:[%s3992] sm:$0xff]
      %v3994 = vld [vmem:[%s3992 + $0x8] sm:$0xff]
      %v3995 = vld [vmem:[%s3992 + $0x10] sm:$0xff]
      %v3996 = vld [vmem:[%s3992 + $0x18] sm:$0xff]
      %v3997 = vld [vmem:[%s3992 + $0x20] sm:$0xff]
      %v3998 = vld [vmem:[%s3992 + $0x28] sm:$0xff]
      %v3999 = vld [vmem:[%s3992 + $0x30] sm:$0xff]
      %v4000 = vld [vmem:[%s3992 + $0x38] sm:$0xff]
      %v4001 = vld [vmem:[%s3992 + $0x40] sm:$0xff]
      %v4002 = vld [vmem:[%s3992 + $0x48] sm:$0xff]
      %v4003 = vld [vmem:[%s3992 + $0x50] sm:$0xff]
      %v4004 = vld [vmem:[%s3992 + $0x58] sm:$0xff]
      %v4005 = vld [vmem:[%s3992 + $0x60] sm:$0xff]
      %v4006 = vld [vmem:[%s3992 + $0x68] sm:$0xff]
      %v4007 = vld [vmem:[%s3992 + $0x70] sm:$0xff]
      %v4008 = vld [vmem:[%s3992 + $0x78] sm:$0xff]
      %v4025 = vunpack.c.l.b16 %v302
      %v4026 = vunpack.c.l.b16 %v303
      %v4027 = vunpack.c.l.b16 %v304
      %v4028 = vunpack.c.l.b16 %v305
      %v4029 = vunpack.c.l.b16 %v306
      %v4030 = vunpack.c.l.b16 %v307
      %v4031 = vunpack.c.l.b16 %v308
      %v4032 = vunpack.c.l.b16 %v309
      %v4033 = vunpack.c.l.b16 %v310
      %v4034 = vunpack.c.l.b16 %v311
      %v4035 = vunpack.c.l.b16 %v312
      %v4036 = vunpack.c.l.b16 %v313
      %v4037 = vunpack.c.l.b16 %v314
      %v4038 = vunpack.c.l.b16 %v315
      %v4039 = vunpack.c.l.b16 %v316
      %v4040 = vunpack.c.l.b16 %v317
      %v4041 = vpack.c.b16 %v4026, %v4025
      %v4042 = vpack.c.b16 %v4028, %v4027
      %v4043 = vpack.c.b16 %v4030, %v4029
      %v4044 = vpack.c.b16 %v4032, %v4031
      %v4045 = vpack.c.b16 %v4034, %v4033
      %v4046 = vpack.c.b16 %v4036, %v4035
      %v4047 = vpack.c.b16 %v4038, %v4037
      %v4048 = vpack.c.b16 %v4040, %v4039
      %v4073 = vunpack.c.l.b16 %v3993
      %v4074 = vunpack.c.h.b16 %v3993
      %v4075 = vunpack.c.l.b16 %v3994
      %v4076 = vunpack.c.h.b16 %v3994
      %v4077 = vunpack.c.l.b16 %v3995
      %v4078 = vunpack.c.h.b16 %v3995
      %v4079 = vunpack.c.l.b16 %v3996
      %v4080 = vunpack.c.h.b16 %v3996
      %v4081 = vunpack.c.l.b16 %v3997
      %v4082 = vunpack.c.h.b16 %v3997
      %v4083 = vunpack.c.l.b16 %v3998
      %v4084 = vunpack.c.h.b16 %v3998
      %v4085 = vunpack.c.l.b16 %v3999
      %v4086 = vunpack.c.h.b16 %v3999
      %v4087 = vunpack.c.l.b16 %v4000
      %v4088 = vunpack.c.h.b16 %v4000
      %v4089 = vunpack.c.l.b16 %v4001
      %v4090 = vunpack.c.h.b16 %v4001
      %v4091 = vunpack.c.l.b16 %v4002
      %v4092 = vunpack.c.h.b16 %v4002
      %v4093 = vunpack.c.l.b16 %v4003
      %v4094 = vunpack.c.h.b16 %v4003
      %v4095 = vunpack.c.l.b16 %v4004
      %v4096 = vunpack.c.h.b16 %v4004
      %v4097 = vunpack.c.l.b16 %v4005
      %v4098 = vunpack.c.h.b16 %v4005
      %v4099 = vunpack.c.l.b16 %v4006
      %v4100 = vunpack.c.h.b16 %v4006
      %v4101 = vunpack.c.l.b16 %v4007
      %v4102 = vunpack.c.h.b16 %v4007
      %v4103 = vunpack.c.l.b16 %v4008
      %v4104 = vunpack.c.h.b16 %v4008
      %v4105 = vpack.c.b16 %v4075, %v4073
      %v4106 = vpack.c.b16 %v4076, %v4074
      %v4107 = vpack.c.b16 %v4079, %v4077
      %v4108 = vpack.c.b16 %v4080, %v4078
      %v4109 = vpack.c.b16 %v4083, %v4081
      %v4110 = vpack.c.b16 %v4084, %v4082
      %v4111 = vpack.c.b16 %v4087, %v4085
      %v4112 = vpack.c.b16 %v4088, %v4086
      %v4113 = vpack.c.b16 %v4091, %v4089
      %v4114 = vpack.c.b16 %v4092, %v4090
      %v4115 = vpack.c.b16 %v4095, %v4093
      %v4116 = vpack.c.b16 %v4096, %v4094
      %v4117 = vpack.c.b16 %v4099, %v4097
      %v4118 = vpack.c.b16 %v4100, %v4098
      %v4119 = vpack.c.b16 %v4103, %v4101
      %v4120 = vpack.c.b16 %v4104, %v4102
      %4137 = vmatprep.subr.bf16.mxu0 %v4106
      %4138 = vmatpush1.bf16.msra.mxu0 %v4105
      %4139 = vmatprep.subr.bf16.mxu0 %v4108
      %4140 = vmatpush1.bf16.msra.mxu0 %v4107
      %4141 = vmatprep.subr.bf16.mxu0 %v4110
      %4142 = vmatpush1.bf16.msra.mxu0 %v4109
      %4143 = vmatprep.subr.bf16.mxu0 %v4112
      %4144 = vmatpush1.bf16.msra.mxu0 %v4111
      %4145 = vmatprep.subr.bf16.mxu0 %v4114
      %4146 = vmatpush1.bf16.msra.mxu0 %v4113
      %4147 = vmatprep.subr.bf16.mxu0 %v4116
      %4148 = vmatpush1.bf16.msra.mxu0 %v4115
      %4149 = vmatprep.subr.bf16.mxu0 %v4118
      %4150 = vmatpush1.bf16.msra.mxu0 %v4117
      %4151 = vmatprep.subr.bf16.mxu0 %v4120
      %4152 = vmatpush1.bf16.msra.mxu0 %v4119
      %4153 = vmatprep.subr.bf16.mxu0 0
      %4154 = vmatpush1.bf16.msra.mxu0 0
      %4155 = vmatprep.subr.bf16.mxu0 0
      %4156 = vmatpush1.bf16.msra.mxu0 0
      %4157 = vmatprep.subr.bf16.mxu0 0
      %4158 = vmatpush1.bf16.msra.mxu0 0
      %4159 = vmatprep.subr.bf16.mxu0 0
      %4160 = vmatpush1.bf16.msra.mxu0 0
      %4161 = vmatprep.subr.bf16.mxu0 0
      %4162 = vmatpush1.bf16.msra.mxu0 0
      %4163 = vmatprep.subr.bf16.mxu0 0
      %4164 = vmatpush1.bf16.msra.mxu0 0
      %4165 = vmatprep.subr.bf16.mxu0 0
      %4166 = vmatpush1.bf16.msra.mxu0 0
      %4167 = vmatprep.subr.bf16.mxu0 0
      %4168 = vmatpush1.bf16.msra.mxu0 0
      %4169 = vmatprep.mubr.bf16.mxu0 0
      %4170 = vmatmul.mubr.bf16.gmra.mrb[0].mxu0 %v4041
      %v4171 = vpop.f32.mrb[0].mxu0
      %v4172 = vadd.f32 0.0, %v4171
      %v4173 = vpop.f32.mrb[0].mxu0
      %v4174 = vadd.f32 0.0, %v4173
      %v4175 = vpop.f32.mrb[0].mxu0
      %v4176 = vadd.f32 0.0, %v4175
      %v4177 = vpop.f32.mrb[0].mxu0
      %v4178 = vadd.f32 0.0, %v4177
      %4179 = vmatprep.mubr.bf16.mxu0 0
      %4180 = vmatmul.mubr.bf16.gmra.mrb[0].mxu0 %v4042
      %v4181 = vpop.f32.mrb[0].mxu0
      %v4182 = vadd.f32 0.0, %v4181
      %v4183 = vpop.f32.mrb[0].mxu0
      %v4184 = vadd.f32 0.0, %v4183
      %v4185 = vpop.f32.mrb[0].mxu0
      %v4186 = vadd.f32 0.0, %v4185
      %v4187 = vpop.f32.mrb[0].mxu0
      %v4188 = vadd.f32 0.0, %v4187
      %4189 = vmatprep.mubr.bf16.mxu0 0
      %4190 = vmatmul.mubr.bf16.gmra.mrb[0].mxu0 %v4043
      %v4191 = vpop.f32.mrb[0].mxu0
      %v4192 = vadd.f32 0.0, %v4191
      %v4193 = vpop.f32.mrb[0].mxu0
      %v4194 = vadd.f32 0.0, %v4193
      %v4195 = vpop.f32.mrb[0].mxu0
      %v4196 = vadd.f32 0.0, %v4195
      %v4197 = vpop.f32.mrb[0].mxu0
      %v4198 = vadd.f32 0.0, %v4197
      %4199 = vmatprep.mubr.bf16.mxu0 0
      %4200 = vmatmul.mubr.bf16.gmra.mrb[0].mxu0 %v4044
      %v4201 = vpop.f32.mrb[0].mxu0
      %v4202 = vadd.f32 0.0, %v4201
      %v4203 = vpop.f32.mrb[0].mxu0
      %v4204 = vadd.f32 0.0, %v4203
      %v4205 = vpop.f32.mrb[0].mxu0
      %v4206 = vadd.f32 0.0, %v4205
      %v4207 = vpop.f32.mrb[0].mxu0
      %v4208 = vadd.f32 0.0, %v4207
      %4209 = vmatprep.mubr.bf16.mxu0 0
      %4210 = vmatmul.mubr.bf16.gmra.mrb[0].mxu0 %v4045
      %v4211 = vpop.f32.mrb[0].mxu0
      %v4212 = vadd.f32 0.0, %v4211
      %v4213 = vpop.f32.mrb[0].mxu0
      %v4214 = vadd.f32 0.0, %v4213
      %v4215 = vpop.f32.mrb[0].mxu0
      %v4216 = vadd.f32 0.0, %v4215
      %v4217 = vpop.f32.mrb[0].mxu0
      %v4218 = vadd.f32 0.0, %v4217
      %4219 = vmatprep.mubr.bf16.mxu0 0
      %4220 = vmatmul.mubr.bf16.gmra.mrb[0].mxu0 %v4046
      %v4221 = vpop.f32.mrb[0].mxu0
      %v4222 = vadd.f32 0.0, %v4221
      %v4223 = vpop.f32.mrb[0].mxu0
      %v4224 = vadd.f32 0.0, %v4223
      %v4225 = vpop.f32.mrb[0].mxu0
      %v4226 = vadd.f32 0.0, %v4225
      %v4227 = vpop.f32.mrb[0].mxu0
      %v4228 = vadd.f32 0.0, %v4227
      %4229 = vmatprep.mubr.bf16.mxu0 0
      %4230 = vmatmul.mubr.bf16.gmra.mrb[0].mxu0 %v4047
      %v4231 = vpop.f32.mrb[0].mxu0
      %v4232 = vadd.f32 0.0, %v4231
      %v4233 = vpop.f32.mrb[0].mxu0
      %v4234 = vadd.f32 0.0, %v4233
      %v4235 = vpop.f32.mrb[0].mxu0
      %v4236 = vadd.f32 0.0, %v4235
      %v4237 = vpop.f32.mrb[0].mxu0
      %v4238 = vadd.f32 0.0, %v4237
      %4239 = vmatprep.mubr.bf16.mxu0 0
      %4240 = vmatmul.mubr.bf16.gmra.mrb[0].mxu0 %v4048
      %v4241 = vpop.f32.mrb[0].mxu0
      %v4242 = vadd.f32 0.0, %v4241
      %v4243 = vpop.f32.mrb[0].mxu0
      %v4244 = vadd.f32 0.0, %v4243
      %v4245 = vpop.f32.mrb[0].mxu0
      %v4246 = vadd.f32 0.0, %v4245
      %v4247 = vpop.f32.mrb[0].mxu0
      %v4248 = vadd.f32 0.0, %v4247
      %4249 = vdwg.mxu0
      %v4250 = vadd.f32 %v3800, %v4172
      %v4251 = vadd.f32 %v3802, %v4174
      %v4252 = vadd.f32 %v3804, %v4176
      %v4253 = vadd.f32 %v3806, %v4178
      %v4254 = vadd.f32 %v3810, %v4182
      %v4255 = vadd.f32 %v3812, %v4184
      %v4256 = vadd.f32 %v3814, %v4186
      %v4257 = vadd.f32 %v3816, %v4188
      %v4258 = vadd.f32 %v3820, %v4192
      %v4259 = vadd.f32 %v3822, %v4194
      %v4260 = vadd.f32 %v3824, %v4196
      %v4261 = vadd.f32 %v3826, %v4198
      %v4262 = vadd.f32 %v3830, %v4202
      %v4263 = vadd.f32 %v3832, %v4204
      %v4264 = vadd.f32 %v3834, %v4206
      %v4265 = vadd.f32 %v3836, %v4208
      %v4266 = vadd.f32 %v3840, %v4212
      %v4267 = vadd.f32 %v3842, %v4214
      %v4268 = vadd.f32 %v3844, %v4216
      %v4269 = vadd.f32 %v3846, %v4218
      %v4270 = vadd.f32 %v3850, %v4222
      %v4271 = vadd.f32 %v3852, %v4224
      %v4272 = vadd.f32 %v3854, %v4226
      %v4273 = vadd.f32 %v3856, %v4228
      %v4274 = vadd.f32 %v3860, %v4232
      %v4275 = vadd.f32 %v3862, %v4234
      %v4276 = vadd.f32 %v3864, %v4236
      %v4277 = vadd.f32 %v3866, %v4238
      %v4278 = vadd.f32 %v3870, %v4242
      %v4279 = vadd.f32 %v3872, %v4244
      %v4280 = vadd.f32 %v3874, %v4246
      %v4281 = vadd.f32 %v3876, %v4248
      %s4282 = scalar_lea.vmem %s6, 17
      %v4283 = vld [vmem:[%s4282] ss:$8 sm:$0x3]
      %v4285 = vlaneseq
      %v4286 = vshrl.u32 %v4285, 7
      %v4287 = vsub.s32 0, %v4286
      %v4288 = vrot.slane %v4283, %v4287
      %v4289 = vlaneseq
      %v4290 = vshrl.u32 %v4289, 7
      %v4291 = vsub.s32 1, %v4290
      %v4292 = vrot.slane %v4283, %v4291
      %v4295 = vadd.f32 %v4250, %v4288
      %v4296 = vadd.f32 %v4251, %v4292
      %v4297 = vadd.f32 %v4252, %v4288
      %v4298 = vadd.f32 %v4253, %v4292
      %v4299 = vadd.f32 %v4254, %v4288
      %v4300 = vadd.f32 %v4255, %v4292
      %v4301 = vadd.f32 %v4256, %v4288
      %v4302 = vadd.f32 %v4257, %v4292
      %v4303 = vadd.f32 %v4258, %v4288
      %v4304 = vadd.f32 %v4259, %v4292
      %v4305 = vadd.f32 %v4260, %v4288
      %v4306 = vadd.f32 %v4261, %v4292
      %v4307 = vadd.f32 %v4262, %v4288
      %v4308 = vadd.f32 %v4263, %v4292
      %v4309 = vadd.f32 %v4264, %v4288
      %v4310 = vadd.f32 %v4265, %v4292
      %v4311 = vadd.f32 %v4266, %v4288
      %v4312 = vadd.f32 %v4267, %v4292
      %v4313 = vadd.f32 %v4268, %v4288
      %v4314 = vadd.f32 %v4269, %v4292
      %v4315 = vadd.f32 %v4270, %v4288
      %v4316 = vadd.f32 %v4271, %v4292
      %v4317 = vadd.f32 %v4272, %v4288
      %v4318 = vadd.f32 %v4273, %v4292
      %v4319 = vadd.f32 %v4274, %v4288
      %v4320 = vadd.f32 %v4275, %v4292
      %v4321 = vadd.f32 %v4276, %v4288
      %v4322 = vadd.f32 %v4277, %v4292
      %v4323 = vadd.f32 %v4278, %v4288
      %v4324 = vadd.f32 %v4279, %v4292
      %v4325 = vadd.f32 %v4280, %v4288
      %v4326 = vadd.f32 %v4281, %v4292
      %v4327 = vmax.f32 %v4295, 0.0
      %v4328 = vmax.f32 %v4296, 0.0
      %v4329 = vmax.f32 %v4297, 0.0
      %v4330 = vmax.f32 %v4298, 0.0
      %v4331 = vmax.f32 %v4299, 0.0
      %v4332 = vmax.f32 %v4300, 0.0
      %v4333 = vmax.f32 %v4301, 0.0
      %v4334 = vmax.f32 %v4302, 0.0
      %v4335 = vmax.f32 %v4303, 0.0
      %v4336 = vmax.f32 %v4304, 0.0
      %v4337 = vmax.f32 %v4305, 0.0
      %v4338 = vmax.f32 %v4306, 0.0
      %v4339 = vmax.f32 %v4307, 0.0
      %v4340 = vmax.f32 %v4308, 0.0
      %v4341 = vmax.f32 %v4309, 0.0
      %v4342 = vmax.f32 %v4310, 0.0
      %v4343 = vmax.f32 %v4311, 0.0
      %v4344 = vmax.f32 %v4312, 0.0
      %v4345 = vmax.f32 %v4313, 0.0
      %v4346 = vmax.f32 %v4314, 0.0
      %v4347 = vmax.f32 %v4315, 0.0
      %v4348 = vmax.f32 %v4316, 0.0
      %v4349 = vmax.f32 %v4317, 0.0
      %v4350 = vmax.f32 %v4318, 0.0
      %v4351 = vmax.f32 %v4319, 0.0
      %v4352 = vmax.f32 %v4320, 0.0
      %v4353 = vmax.f32 %v4321, 0.0
      %v4354 = vmax.f32 %v4322, 0.0
      %v4355 = vmax.f32 %v4323, 0.0
      %v4356 = vmax.f32 %v4324, 0.0
      %v4357 = vmax.f32 %v4325, 0.0
      %v4358 = vmax.f32 %v4326, 0.0
      %v4359 = vpack.c.bf16 %v4329, %v4327
      %v4360 = vpack.c.bf16 %v4330, %v4328
      %v4361 = vpack.c.bf16 %v4333, %v4331
      %v4362 = vpack.c.bf16 %v4334, %v4332
      %v4363 = vpack.c.bf16 %v4337, %v4335
      %v4364 = vpack.c.bf16 %v4338, %v4336
      %v4365 = vpack.c.bf16 %v4341, %v4339
      %v4366 = vpack.c.bf16 %v4342, %v4340
      %v4367 = vpack.c.bf16 %v4345, %v4343
      %v4368 = vpack.c.bf16 %v4346, %v4344
      %v4369 = vpack.c.bf16 %v4349, %v4347
      %v4370 = vpack.c.bf16 %v4350, %v4348
      %v4371 = vpack.c.bf16 %v4353, %v4351
      %v4372 = vpack.c.bf16 %v4354, %v4352
      %v4373 = vpack.c.bf16 %v4357, %v4355
      %v4374 = vpack.c.bf16 %v4358, %v4356
      %v4375 = vld [vmem:[%s4] sm:$0xf]
      %v4376 = vld [vmem:[%s4 + $0x4] sm:$0xf]
      %v4377 = vld [vmem:[%s4 + $0x8] sm:$0xf]
      %v4378 = vld [vmem:[%s4 + $0xc] sm:$0xf]
      %v4379 = vld [vmem:[%s4 + $0x10] sm:$0xf]
      %v4380 = vld [vmem:[%s4 + $0x14] sm:$0xf]
      %v4381 = vld [vmem:[%s4 + $0x18] sm:$0xf]
      %v4382 = vld [vmem:[%s4 + $0x1c] sm:$0xf]
      %v4383 = vld [vmem:[%s4 + $0x20] sm:$0xf]
      %v4384 = vld [vmem:[%s4 + $0x24] sm:$0xf]
      %v4385 = vld [vmem:[%s4 + $0x28] sm:$0xf]
      %v4386 = vld [vmem:[%s4 + $0x2c] sm:$0xf]
      %v4387 = vld [vmem:[%s4 + $0x30] sm:$0xf]
      %v4388 = vld [vmem:[%s4 + $0x34] sm:$0xf]
      %v4389 = vld [vmem:[%s4 + $0x38] sm:$0xf]
      %v4390 = vld [vmem:[%s4 + $0x3c] sm:$0xf]
      %v4391 = vld [vmem:[%s4 + $0x40] sm:$0xf]
      %v4392 = vld [vmem:[%s4 + $0x44] sm:$0xf]
      %v4393 = vld [vmem:[%s4 + $0x48] sm:$0xf]
      %v4394 = vld [vmem:[%s4 + $0x4c] sm:$0xf]
      %v4395 = vld [vmem:[%s4 + $0x50] sm:$0xf]
      %v4396 = vld [vmem:[%s4 + $0x54] sm:$0xf]
      %v4397 = vld [vmem:[%s4 + $0x58] sm:$0xf]
      %v4398 = vld [vmem:[%s4 + $0x5c] sm:$0xf]
      %v4399 = vld [vmem:[%s4 + $0x60] sm:$0xf]
      %v4400 = vld [vmem:[%s4 + $0x64] sm:$0xf]
      %v4401 = vld [vmem:[%s4 + $0x68] sm:$0xf]
      %v4402 = vld [vmem:[%s4 + $0x6c] sm:$0xf]
      %v4403 = vld [vmem:[%s4 + $0x70] sm:$0xf]
      %v4404 = vld [vmem:[%s4 + $0x74] sm:$0xf]
      %v4405 = vld [vmem:[%s4 + $0x78] sm:$0xf]
      %v4406 = vld [vmem:[%s4 + $0x7c] sm:$0xf]
      %v4407 = vld [vmem:[%s6 + $0x12] ss:$0 sm:$0xff]
      %v4440 = vunpack.c.l.b16 %v4375
      %v4441 = vunpack.c.l.b16 %v4376
      %v4442 = vunpack.c.l.b16 %v4377
      %v4443 = vunpack.c.l.b16 %v4378
      %v4444 = vunpack.c.l.b16 %v4379
      %v4445 = vunpack.c.l.b16 %v4380
      %v4446 = vunpack.c.l.b16 %v4381
      %v4447 = vunpack.c.l.b16 %v4382
      %v4448 = vunpack.c.l.b16 %v4383
      %v4449 = vunpack.c.l.b16 %v4384
      %v4450 = vunpack.c.l.b16 %v4385
      %v4451 = vunpack.c.l.b16 %v4386
      %v4452 = vunpack.c.l.b16 %v4387
      %v4453 = vunpack.c.l.b16 %v4388
      %v4454 = vunpack.c.l.b16 %v4389
      %v4455 = vunpack.c.l.b16 %v4390
      %v4456 = vunpack.c.l.b16 %v4391
      %v4457 = vunpack.c.l.b16 %v4392
      %v4458 = vunpack.c.l.b16 %v4393
      %v4459 = vunpack.c.l.b16 %v4394
      %v4460 = vunpack.c.l.b16 %v4395
      %v4461 = vunpack.c.l.b16 %v4396
      %v4462 = vunpack.c.l.b16 %v4397
      %v4463 = vunpack.c.l.b16 %v4398
      %v4464 = vunpack.c.l.b16 %v4399
      %v4465 = vunpack.c.l.b16 %v4400
      %v4466 = vunpack.c.l.b16 %v4401
      %v4467 = vunpack.c.l.b16 %v4402
      %v4468 = vunpack.c.l.b16 %v4403
      %v4469 = vunpack.c.l.b16 %v4404
      %v4470 = vunpack.c.l.b16 %v4405
      %v4471 = vunpack.c.l.b16 %v4406
      %v4472 = vpack.c.b16 %v4441, %v4440
      %v4473 = vpack.c.b16 %v4443, %v4442
      %v4474 = vpack.c.b16 %v4445, %v4444
      %v4475 = vpack.c.b16 %v4447, %v4446
      %v4476 = vpack.c.b16 %v4449, %v4448
      %v4477 = vpack.c.b16 %v4451, %v4450
      %v4478 = vpack.c.b16 %v4453, %v4452
      %v4479 = vpack.c.b16 %v4455, %v4454
      %v4480 = vpack.c.b16 %v4457, %v4456
      %v4481 = vpack.c.b16 %v4459, %v4458
      %v4482 = vpack.c.b16 %v4461, %v4460
      %v4483 = vpack.c.b16 %v4463, %v4462
      %v4484 = vpack.c.b16 %v4465, %v4464
      %v4485 = vpack.c.b16 %v4467, %v4466
      %v4486 = vpack.c.b16 %v4469, %v4468
      %v4487 = vpack.c.b16 %v4471, %v4470
      %4504 = vmatprep.subr.bf16.mxu0 0
      %4505 = vmatpush1.bf16.msra.mxu0 %v4472
      %4506 = vmatprep.subr.bf16.mxu0 0
      %4507 = vmatpush1.bf16.msra.mxu0 %v4473
      %4508 = vmatprep.subr.bf16.mxu0 0
      %4509 = vmatpush1.bf16.msra.mxu0 %v4474
      %4510 = vmatprep.subr.bf16.mxu0 0
      %4511 = vmatpush1.bf16.msra.mxu0 %v4475
      %4512 = vmatprep.subr.bf16.mxu0 0
      %4513 = vmatpush1.bf16.msra.mxu0 %v4476
      %4514 = vmatprep.subr.bf16.mxu0 0
      %4515 = vmatpush1.bf16.msra.mxu0 %v4477
      %4516 = vmatprep.subr.bf16.mxu0 0
      %4517 = vmatpush1.bf16.msra.mxu0 %v4478
      %4518 = vmatprep.subr.bf16.mxu0 0
      %4519 = vmatpush1.bf16.msra.mxu0 %v4479
      %4520 = vmatprep.subr.bf16.mxu0 0
      %4521 = vmatpush1.bf16.msra.mxu0 %v4480
      %4522 = vmatprep.subr.bf16.mxu0 0
      %4523 = vmatpush1.bf16.msra.mxu0 %v4481
      %4524 = vmatprep.subr.bf16.mxu0 0
      %4525 = vmatpush1.bf16.msra.mxu0 %v4482
      %4526 = vmatprep.subr.bf16.mxu0 0
      %4527 = vmatpush1.bf16.msra.mxu0 %v4483
      %4528 = vmatprep.subr.bf16.mxu0 0
      %4529 = vmatpush1.bf16.msra.mxu0 %v4484
      %4530 = vmatprep.subr.bf16.mxu0 0
      %4531 = vmatpush1.bf16.msra.mxu0 %v4485
      %4532 = vmatprep.subr.bf16.mxu0 0
      %4533 = vmatpush1.bf16.msra.mxu0 %v4486
      %4534 = vmatprep.subr.bf16.mxu0 0
      %4535 = vmatpush1.bf16.msra.mxu0 %v4487
      %4536 = vmatprep.mubr.bf16.mxu0 %v4360
      %4537 = vmatmul.mubr.bf16.gmra.mrb[0].mxu0 %v4359
      %v4538 = vpop.f32.mrb[0].mxu0
      %v4539 = vadd.f32 %v4407, %v4538
      %v4540 = vpop.f32.mrb[0].mxu0
      %v4541 = vpop.f32.mrb[0].mxu0
      %v4542 = vadd.f32 %v4407, %v4541
      %v4543 = vpop.f32.mrb[0].mxu0
      %4544 = vmatprep.mubr.bf16.mxu0 %v4362
      %4545 = vmatmul.mubr.bf16.gmra.mrb[0].mxu0 %v4361
      %v4546 = vpop.f32.mrb[0].mxu0
      %v4547 = vadd.f32 %v4407, %v4546
      %v4548 = vpop.f32.mrb[0].mxu0
      %v4549 = vpop.f32.mrb[0].mxu0
      %v4550 = vadd.f32 %v4407, %v4549
      %v4551 = vpop.f32.mrb[0].mxu0
      %4552 = vmatprep.mubr.bf16.mxu0 %v4364
      %4553 = vmatmul.mubr.bf16.gmra.mrb[0].mxu0 %v4363
      %v4554 = vpop.f32.mrb[0].mxu0
      %v4555 = vadd.f32 %v4407, %v4554
      %v4556 = vpop.f32.mrb[0].mxu0
      %v4557 = vpop.f32.mrb[0].mxu0
      %v4558 = vadd.f32 %v4407, %v4557
      %v4559 = vpop.f32.mrb[0].mxu0
      %4560 = vmatprep.mubr.bf16.mxu0 %v4366
      %4561 = vmatmul.mubr.bf16.gmra.mrb[0].mxu0 %v4365
      %v4562 = vpop.f32.mrb[0].mxu0
      %v4563 = vadd.f32 %v4407, %v4562
      %v4564 = vpop.f32.mrb[0].mxu0
      %v4565 = vpop.f32.mrb[0].mxu0
      %v4566 = vadd.f32 %v4407, %v4565
      %v4567 = vpop.f32.mrb[0].mxu0
      %4568 = vmatprep.mubr.bf16.mxu0 %v4368
      %4569 = vmatmul.mubr.bf16.gmra.mrb[0].mxu0 %v4367
      %v4570 = vpop.f32.mrb[0].mxu0
      %v4571 = vadd.f32 %v4407, %v4570
      %v4572 = vpop.f32.mrb[0].mxu0
      %v4573 = vpop.f32.mrb[0].mxu0
      %v4574 = vadd.f32 %v4407, %v4573
      %v4575 = vpop.f32.mrb[0].mxu0
      %4576 = vmatprep.mubr.bf16.mxu0 %v4370
      %4577 = vmatmul.mubr.bf16.gmra.mrb[0].mxu0 %v4369
      %v4578 = vpop.f32.mrb[0].mxu0
      %v4579 = vadd.f32 %v4407, %v4578
      %v4580 = vpop.f32.mrb[0].mxu0
      %v4581 = vpop.f32.mrb[0].mxu0
      %v4582 = vadd.f32 %v4407, %v4581
      %v4583 = vpop.f32.mrb[0].mxu0
      %4584 = vmatprep.mubr.bf16.mxu0 %v4372
      %4585 = vmatmul.mubr.bf16.gmra.mrb[0].mxu0 %v4371
      %v4586 = vpop.f32.mrb[0].mxu0
      %v4587 = vadd.f32 %v4407, %v4586
      %v4588 = vpop.f32.mrb[0].mxu0
      %v4589 = vpop.f32.mrb[0].mxu0
      %v4590 = vadd.f32 %v4407, %v4589
      %v4591 = vpop.f32.mrb[0].mxu0
      %4592 = vmatprep.mubr.bf16.mxu0 %v4374
      %4593 = vmatmul.mubr.bf16.gmra.mrb[0].mxu0 %v4373
      %v4594 = vpop.f32.mrb[0].mxu0
      %v4595 = vadd.f32 %v4407, %v4594
      %v4596 = vpop.f32.mrb[0].mxu0
      %v4597 = vpop.f32.mrb[0].mxu0
      %v4598 = vadd.f32 %v4407, %v4597
      %v4599 = vpop.f32.mrb[0].mxu0
      %4600 = vdwg.mxu0
      %v4601 = vmax.f32 %v4539, 0.0
      %v4602 = vmax.f32 %v4542, 0.0
      %v4603 = vmax.f32 %v4547, 0.0
      %v4604 = vmax.f32 %v4550, 0.0
      %v4605 = vmax.f32 %v4555, 0.0
      %v4606 = vmax.f32 %v4558, 0.0
      %v4607 = vmax.f32 %v4563, 0.0
      %v4608 = vmax.f32 %v4566, 0.0
      %v4609 = vmax.f32 %v4571, 0.0
      %v4610 = vmax.f32 %v4574, 0.0
      %v4611 = vmax.f32 %v4579, 0.0
      %v4612 = vmax.f32 %v4582, 0.0
      %v4613 = vmax.f32 %v4587, 0.0
      %v4614 = vmax.f32 %v4590, 0.0
      %v4615 = vmax.f32 %v4595, 0.0
      %v4616 = vmax.f32 %v4598, 0.0
      %v4617 = vpack.c.bf16 %v4602, %v4601
      %v4618 = vpack.c.bf16 %v4604, %v4603
      %v4619 = vpack.c.bf16 %v4606, %v4605
      %v4620 = vpack.c.bf16 %v4608, %v4607
      %v4621 = vpack.c.bf16 %v4610, %v4609
      %v4622 = vpack.c.bf16 %v4612, %v4611
      %v4623 = vpack.c.bf16 %v4614, %v4613
      %v4624 = vpack.c.bf16 %v4616, %v4615
      %v4625 = vld [vmem:[%s5] sm:$0xf]
      %v4626 = vld [vmem:[%s5 + $0x4] sm:$0xf]
      %v4627 = vld [vmem:[%s5 + $0x8] sm:$0xf]
      %v4628 = vld [vmem:[%s5 + $0xc] sm:$0xf]
      %v4629 = vld [vmem:[%s5 + $0x10] sm:$0xf]
      %v4630 = vld [vmem:[%s5 + $0x14] sm:$0xf]
      %v4631 = vld [vmem:[%s5 + $0x18] sm:$0xf]
      %v4632 = vld [vmem:[%s5 + $0x1c] sm:$0xf]
      %v4633 = vld [vmem:[%s5 + $0x20] sm:$0xf]
      %v4634 = vld [vmem:[%s5 + $0x24] sm:$0xf]
      %v4635 = vld [vmem:[%s5 + $0x28] sm:$0xf]
      %v4636 = vld [vmem:[%s5 + $0x2c] sm:$0xf]
      %v4637 = vld [vmem:[%s5 + $0x30] sm:$0xf]
      %v4638 = vld [vmem:[%s5 + $0x34] sm:$0xf]
      %v4639 = vld [vmem:[%s5 + $0x38] sm:$0xf]
      %v4640 = vld [vmem:[%s5 + $0x3c] sm:$0xf]
      %v4641 = vld [vmem:[%s6 + $0x13] ss:$0 sm:$0xff]
      %v4658 = vunpack.c.l.b16 %v4625
      %v4659 = vunpack.c.l.b16 %v4626
      %v4660 = vunpack.c.l.b16 %v4627
      %v4661 = vunpack.c.l.b16 %v4628
      %v4662 = vunpack.c.l.b16 %v4629
      %v4663 = vunpack.c.l.b16 %v4630
      %v4664 = vunpack.c.l.b16 %v4631
      %v4665 = vunpack.c.l.b16 %v4632
      %v4666 = vunpack.c.l.b16 %v4633
      %v4667 = vunpack.c.l.b16 %v4634
      %v4668 = vunpack.c.l.b16 %v4635
      %v4669 = vunpack.c.l.b16 %v4636
      %v4670 = vunpack.c.l.b16 %v4637
      %v4671 = vunpack.c.l.b16 %v4638
      %v4672 = vunpack.c.l.b16 %v4639
      %v4673 = vunpack.c.l.b16 %v4640
      %v4674 = vpack.c.b16 %v4659, %v4658
      %v4675 = vpack.c.b16 %v4661, %v4660
      %v4676 = vpack.c.b16 %v4663, %v4662
      %v4677 = vpack.c.b16 %v4665, %v4664
      %v4678 = vpack.c.b16 %v4667, %v4666
      %v4679 = vpack.c.b16 %v4669, %v4668
      %v4680 = vpack.c.b16 %v4671, %v4670
      %v4681 = vpack.c.b16 %v4673, %v4672
      %4690 = vmatprep.subr.bf16.mxu0 0
      %4691 = vmatpush1.bf16.msra.mxu0 %v4674
      %4692 = vmatprep.subr.bf16.mxu0 0
      %4693 = vmatpush1.bf16.msra.mxu0 %v4675
      %4694 = vmatprep.subr.bf16.mxu0 0
      %4695 = vmatpush1.bf16.msra.mxu0 %v4676
      %4696 = vmatprep.subr.bf16.mxu0 0
      %4697 = vmatpush1.bf16.msra.mxu0 %v4677
      %4698 = vmatprep.subr.bf16.mxu0 0
      %4699 = vmatpush1.bf16.msra.mxu0 %v4678
      %4700 = vmatprep.subr.bf16.mxu0 0
      %4701 = vmatpush1.bf16.msra.mxu0 %v4679
      %4702 = vmatprep.subr.bf16.mxu0 0
      %4703 = vmatpush1.bf16.msra.mxu0 %v4680
      %4704 = vmatprep.subr.bf16.mxu0 0
      %4705 = vmatpush1.bf16.msra.mxu0 %v4681
      %4706 = vmatprep.subr.bf16.mxu0 0
      %4707 = vmatpush1.bf16.msra.mxu0 0
      %4708 = vmatprep.subr.bf16.mxu0 0
      %4709 = vmatpush1.bf16.msra.mxu0 0
      %4710 = vmatprep.subr.bf16.mxu0 0
      %4711 = vmatpush1.bf16.msra.mxu0 0
      %4712 = vmatprep.subr.bf16.mxu0 0
      %4713 = vmatpush1.bf16.msra.mxu0 0
      %4714 = vmatprep.subr.bf16.mxu0 0
      %4715 = vmatpush1.bf16.msra.mxu0 0
      %4716 = vmatprep.subr.bf16.mxu0 0
      %4717 = vmatpush1.bf16.msra.mxu0 0
      %4718 = vmatprep.subr.bf16.mxu0 0
      %4719 = vmatpush1.bf16.msra.mxu0 0
      %4720 = vmatprep.subr.bf16.mxu0 0
      %4721 = vmatpush1.bf16.msra.mxu0 0
      %4722 = vmatprep.mubr.bf16.mxu0 0
      %4723 = vmatmul.mubr.bf16.gmra.mrb[0].mxu0 %v4617
      %v4724 = vpop.f32.mrb[0].mxu0
      %v4725 = vadd.f32 %v4641, %v4724
      %v4726 = vpop.f32.mrb[0].mxu0
      %v4727 = vpop.f32.mrb[0].mxu0
      %v4728 = vadd.f32 %v4641, %v4727
      %v4729 = vpop.f32.mrb[0].mxu0
      %4730 = vmatprep.mubr.bf16.mxu0 0
      %4731 = vmatmul.mubr.bf16.gmra.mrb[0].mxu0 %v4618
      %v4732 = vpop.f32.mrb[0].mxu0
      %v4733 = vadd.f32 %v4641, %v4732
      %v4734 = vpop.f32.mrb[0].mxu0
      %v4735 = vpop.f32.mrb[0].mxu0
      %v4736 = vadd.f32 %v4641, %v4735
      %v4737 = vpop.f32.mrb[0].mxu0
      %4738 = vmatprep.mubr.bf16.mxu0 0
      %4739 = vmatmul.mubr.bf16.gmra.mrb[0].mxu0 %v4619
      %v4740 = vpop.f32.mrb[0].mxu0
      %v4741 = vadd.f32 %v4641, %v4740
      %v4742 = vpop.f32.mrb[0].mxu0
      %v4743 = vpop.f32.mrb[0].mxu0
      %v4744 = vadd.f32 %v4641, %v4743
      %v4745 = vpop.f32.mrb[0].mxu0
      %4746 = vmatprep.mubr.bf16.mxu0 0
      %4747 = vmatmul.mubr.bf16.gmra.mrb[0].mxu0 %v4620
      %v4748 = vpop.f32.mrb[0].mxu0
      %v4749 = vadd.f32 %v4641, %v4748
      %v4750 = vpop.f32.mrb[0].mxu0
      %v4751 = vpop.f32.mrb[0].mxu0
      %v4752 = vadd.f32 %v4641, %v4751
      %v4753 = vpop.f32.mrb[0].mxu0
      %4754 = vmatprep.mubr.bf16.mxu0 0
      %4755 = vmatmul.mubr.bf16.gmra.mrb[0].mxu0 %v4621
      %v4756 = vpop.f32.mrb[0].mxu0
      %v4757 = vadd.f32 %v4641, %v4756
      %v4758 = vpop.f32.mrb[0].mxu0
      %v4759 = vpop.f32.mrb[0].mxu0
      %v4760 = vadd.f32 %v4641, %v4759
      %v4761 = vpop.f32.mrb[0].mxu0
      %4762 = vmatprep.mubr.bf16.mxu0 0
      %4763 = vmatmul.mubr.bf16.gmra.mrb[0].mxu0 %v4622
      %v4764 = vpop.f32.mrb[0].mxu0
      %v4765 = vadd.f32 %v4641, %v4764
      %v4766 = vpop.f32.mrb[0].mxu0
      %v4767 = vpop.f32.mrb[0].mxu0
      %v4768 = vadd.f32 %v4641, %v4767
      %v4769 = vpop.f32.mrb[0].mxu0
      %4770 = vmatprep.mubr.bf16.mxu0 0
      %4771 = vmatmul.mubr.bf16.gmra.mrb[0].mxu0 %v4623
      %v4772 = vpop.f32.mrb[0].mxu0
      %v4773 = vadd.f32 %v4641, %v4772
      %v4774 = vpop.f32.mrb[0].mxu0
      %v4775 = vpop.f32.mrb[0].mxu0
      %v4776 = vadd.f32 %v4641, %v4775
      %v4777 = vpop.f32.mrb[0].mxu0
      %4778 = vmatprep.mubr.bf16.mxu0 0
      %4779 = vmatmul.mubr.bf16.gmra.mrb[0].mxu0 %v4624
      %v4780 = vpop.f32.mrb[0].mxu0
      %v4781 = vadd.f32 %v4641, %v4780
      %v4782 = vpop.f32.mrb[0].mxu0
      %v4783 = vpop.f32.mrb[0].mxu0
      %v4784 = vadd.f32 %v4641, %v4783
      %v4785 = vpop.f32.mrb[0].mxu0
      %4786 = vdwg.mxu0
      %4803 = vrot.lane.b32.xlu0 %v4725, 2
      %v4804 = vpop.permute.xlu0 %4803
      %4805 = vrot.lane.b32.xlu0 %v4728, 2
      %v4806 = vpop.permute.xlu0 %4805
      %4807 = vrot.lane.b32.xlu0 %v4733, 2
      %v4808 = vpop.permute.xlu0 %4807
      %4809 = vrot.lane.b32.xlu0 %v4736, 2
      %v4810 = vpop.permute.xlu0 %4809
      %4811 = vrot.lane.b32.xlu0 %v4741, 2
      %v4812 = vpop.permute.xlu0 %4811
      %4813 = vrot.lane.b32.xlu0 %v4744, 2
      %v4814 = vpop.permute.xlu0 %4813
      %4815 = vrot.lane.b32.xlu0 %v4749, 2
      %v4816 = vpop.permute.xlu0 %4815
      %4817 = vrot.lane.b32.xlu0 %v4752, 2
      %v4818 = vpop.permute.xlu0 %4817
      %4819 = vrot.lane.b32.xlu0 %v4757, 2
      %v4820 = vpop.permute.xlu0 %4819
      %4821 = vrot.lane.b32.xlu0 %v4760, 2
      %v4822 = vpop.permute.xlu0 %4821
      %4823 = vrot.lane.b32.xlu0 %v4765, 2
      %v4824 = vpop.permute.xlu0 %4823
      %4825 = vrot.lane.b32.xlu0 %v4768, 2
      %v4826 = vpop.permute.xlu0 %4825
      %4827 = vrot.lane.b32.xlu0 %v4773, 2
      %v4828 = vpop.permute.xlu0 %4827
      %4829 = vrot.lane.b32.xlu0 %v4776, 2
      %v4830 = vpop.permute.xlu0 %4829
      %4831 = vrot.lane.b32.xlu0 %v4781, 2
      %v4832 = vpop.permute.xlu0 %4831
      %4833 = vrot.lane.b32.xlu0 %v4784, 2
      %v4834 = vpop.permute.xlu0 %4833
      %vm4851 = vcmask 15360
      %v4852 = vsel %vm4851, %v3976, %v4804
      %v4853 = vsel %vm4851, %v3977, %v4806
      %v4854 = vsel %vm4851, %v3978, %v4808
      %v4855 = vsel %vm4851, %v3979, %v4810
      %v4856 = vsel %vm4851, %v3980, %v4812
      %v4857 = vsel %vm4851, %v3981, %v4814
      %v4858 = vsel %vm4851, %v3982, %v4816
      %v4859 = vsel %vm4851, %v3983, %v4818
      %v4860 = vsel %vm4851, %v3984, %v4820
      %v4861 = vsel %vm4851, %v3985, %v4822
      %v4862 = vsel %vm4851, %v3986, %v4824
      %v4863 = vsel %vm4851, %v3987, %v4826
      %v4864 = vsel %vm4851, %v3988, %v4828
      %v4865 = vsel %vm4851, %v3989, %v4830
      %v4866 = vsel %vm4851, %v3990, %v4832
      %v4867 = vsel %vm4851, %v3991, %v4834
      %vm4868 = vcmask 31744
      %4869 = vst.msk [vmem:[%s283] sm:$0xff] %vm4868, %v4852
      %4870 = vst.msk [vmem:[%s283 + $0x8] sm:$0xff] %vm4868, %v4853
      %4871 = vst.msk [vmem:[%s283 + $0x10] sm:$0xff] %vm4868, %v4854
      %4872 = vst.msk [vmem:[%s283 + $0x18] sm:$0xff] %vm4868, %v4855
      %4873 = vst.msk [vmem:[%s283 + $0x20] sm:$0xff] %vm4868, %v4856
      %4874 = vst.msk [vmem:[%s283 + $0x28] sm:$0xff] %vm4868, %v4857
      %4875 = vst.msk [vmem:[%s283 + $0x30] sm:$0xff] %vm4868, %v4858
      %4876 = vst.msk [vmem:[%s283 + $0x38] sm:$0xff] %vm4868, %v4859
      %4877 = vst.msk [vmem:[%s283 + $0x40] sm:$0xff] %vm4868, %v4860
      %4878 = vst.msk [vmem:[%s283 + $0x48] sm:$0xff] %vm4868, %v4861
      %4879 = vst.msk [vmem:[%s283 + $0x50] sm:$0xff] %vm4868, %v4862
      %4880 = vst.msk [vmem:[%s283 + $0x58] sm:$0xff] %vm4868, %v4863
      %4881 = vst.msk [vmem:[%s283 + $0x60] sm:$0xff] %vm4868, %v4864
      %4882 = vst.msk [vmem:[%s283 + $0x68] sm:$0xff] %vm4868, %v4865
      %4883 = vst.msk [vmem:[%s283 + $0x70] sm:$0xff] %vm4868, %v4866
      %4884 = vst.msk [vmem:[%s283 + $0x78] sm:$0xff] %vm4868, %v4867
      %s4885 = smul.u32 16, %s18
      %p4886 = scmp.lt.s32.totalorder %s4885, 31
      %s4887 = scalar_select %p4886, %s4885, 31
      %s4888 = smul.addr %s4887, 8
      %s4889 = scalar_lea.vmem %s7, %s4888
      // Predicated region
      $region49: #{nerf2_forward.1} parent=47 // pred_check
        %p4890 = pneg %p188
      $region50: #{nerf2_forward.1} parent=47 // pred_check_branch
        %4892 = sbr.rel (%p4890) target = $region52
      $region51: #{nerf2_forward.1} parent=47 // pred_region
        %s4893 = smul.u32 16, %s18
      $region52: #{nerf2_forward.1} parent=47 // pred_fallthru
        _
    $region48: #{nerf2_forward.1} parent=5 // pred_fallthru
      _
    %p4894 = scmp.le.s32.totalorder 2, %s13
    // Predicated region
    $region53: #{nerf2_forward.1} parent=5 // pred_check
      %p4895 = pneg %p4894
    $region54: #{nerf2_forward.1} parent=5 // pred_check_branch
      %4897 = sbr.rel (%p4895) target = $region56
    $region55: #{nerf2_forward.1} parent=5 // pred_region
      %s4898 = ssub.s32 %s13, 2
      // Predicated region
      $region57: #{nerf2_forward.1} parent=55 // pred_check
        %p4899 = pneg %p194
      $region58: #{nerf2_forward.1} parent=55 // pred_check_branch
        %4901 = sbr.rel (%p4899) target = $region60
      $region59: #{nerf2_forward.1} parent=55 // pred_region
        %s4902 = smul.u32 16, %s19
        %p4903 = scmp.lt.s32.totalorder %s4902, 31
        %s4904 = scalar_select %p4903, %s4902, 31
        %s4905 = smul.addr %s4904, 8
        %s4906 = scalar_lea.vmem %s7, %s4905
      $region60: #{nerf2_forward.1} parent=55 // pred_fallthru
        _
    $region56: #{nerf2_forward.1} parent=5 // pred_fallthru
      _
  $region6: #{nerf2_forward.1} parent=0 // loop_footer
    %s17 = sadd.s32 1, %s13
  $region7: #{nerf2_forward.1} parent=0 // loop_footer_branch
    %12 = sbr.rel target = $region3
  $region8: #{nerf2_forward.1} parent=0 // loop_exit
    _

</llo_original>
